<compile_context>
chip_gen: v7x
topology: tpu7x:2x2x1
jax: 0.10.0
libtpu: 0.0.40
codegen_flags: <defaults>
</compile_context>

<pallas_src>
import functools

import jax
import jax.numpy as jnp
from jax.experimental import pallas as pl
from jax.experimental.pallas import tpu as pltpu

GRID_SIZE = 5
SPLINE_ORDER = 3
GRID_RANGE = (-1.0, 1.0)
NUM_COEF = GRID_SIZE + SPLINE_ORDER      # 8 B-spline basis functions per input feature
NUM_BLOCKS = NUM_COEF + 1                # [silu | B_0 .. B_7]
KNOT_STEP = (GRID_RANGE[1] - GRID_RANGE[0]) / GRID_SIZE
LANE = 128


def _grid_knots():
    """Static uniform extended knot vector (same for every input feature)."""
    return tuple(
        GRID_RANGE[0] + (j - SPLINE_ORDER) * KNOT_STEP
        for j in range(GRID_SIZE + 2 * SPLINE_ORDER + 1)
    )


def _round_up(n, m):
    return (n + m - 1) // m * m


# ---------------------------------------------------------------------------
# In-kernel math
# ---------------------------------------------------------------------------
def _spline_bases(x, g):
    """Cox-de Boor recursion, fully unrolled; returns NUM_COEF (B, in_pad) tiles.

    Uniform-knot form:  t_j = x - g[j] is computed once; (g[j+k+1]-x) = -t_{j+k+1};
    the denominators g[j+k]-g[j] = k*h are compile-time Python-float reciprocals.
    Degree-0 bases are step differences (x>=g[j]) - (x>=g[j+1])."""
    n_knots = len(g)
    t = [x - g[j] for j in range(n_knots)]                       # 12 subs, once
    ge = [(x >= g[j]).astype(jnp.float32) for j in range(n_knots)]
    b = [ge[j] - ge[j + 1] for j in range(n_knots - 1)]
    for k in range(1, SPLINE_ORDER + 1):
        inv_kh = 1.0 / (k * KNOT_STEP)                           # compile-time constant
        b = [(t[j] * b[j] - t[j + k + 1] * b[j + 1]) * inv_kh
             for j in range(len(b) - 1)]
    return b                                                      # len(b) == NUM_COEF


def _kan_layer(x, w_packed, g):
    """One KAN-linear layer as a single (B, 9*in_pad) x (9*in_pad, out_pad) MXU matmul.

    Feature columns: [silu(x) | B_0(x) | ... | B_7(x)], each block in_pad (=k*128)
    lanes wide, matching the row-block layout of the packed weight (pack_kan_layer).
    The concat of 128-aligned blocks is pure vreg placement; the dot runs on the
    native bf16 MXU path with f32 accumulation."""
    feats = jnp.concatenate([x * jax.nn.sigmoid(x)] + _spline_bases(x, g), axis=-1)
    return jnp.dot(feats.astype(jnp.bfloat16), w_packed,
                   preferred_element_type=jnp.float32)


def kq_forward_kernel(x_ref, w1_ref, w2_ref, w3_ref, w4_ref, o_ref, *, knots):
    """Fused KQNetwork forward: 4 KAN-linear layers, intermediates stay on-core."""
    h = _kan_layer(x_ref[...], w1_ref[...], knots)
    h = _kan_layer(h, w2_ref[...], knots)
    h = _kan_layer(h, w3_ref[...], knots)
    o_ref[...] = _kan_layer(h, w4_ref[...], knots).astype(o_ref.dtype)


# ---------------------------------------------------------------------------
# Once-per-parameter-update weight preprocessing (hoisted out of forward)
# ---------------------------------------------------------------------------
def pack_kan_layer(p):
    """Pack one layer into a single lane-padded ((NUM_BLOCKS)*in_pad, out_pad) bf16 slab.

    Row blocks: [base_weight.T ; (spline*scaler)[:,:,0].T ; ... ; [:,:,7].T], each
    zero-padded to (in_pad, out_pad) with in_pad/out_pad multiples of 128 so the
    in-kernel feature blocks are 128-lane aligned.  Padded rows/cols are zero, so
    garbage spline bases of padded (zero) inputs contribute nothing."""
    bw = jnp.asarray(p["base_weight"], jnp.float32)                        # (out, in)
    scaled = (jnp.asarray(p["spline_weight"], jnp.float32)
              * jnp.asarray(p["spline_scaler"], jnp.float32)[:, :, None])   # (out, in, coef)
    out_f, in_f = bw.shape
    in_pad = _round_up(in_f, LANE)
    out_pad = _round_up(out_f, LANE)

    def pad_t(m):  # (out, in) -> (in_pad, out_pad), zero-padded transpose
        return jnp.pad(m.T, ((0, in_pad - in_f), (0, out_pad - out_f)))

    blocks = [pad_t(bw)] + [pad_t(scaled[:, :, j]) for j in range(NUM_COEF)]
    return jnp.concatenate(blocks, axis=0).astype(jnp.bfloat16)            # (9*in_pad, out_pad)


def prepare_kqnetwork(params):
    """Pack all four layers.  Re-run this after every optimizer step in training."""
    return [pack_kan_layer(p) for p in params]


# ---------------------------------------------------------------------------
# Forward wrapper (single fused pallas_call)
# ---------------------------------------------------------------------------
def _pick_batch_tile(batch):
    """Large tiles amortize ~0.35us/grid-step; keep grid >= 2 where possible so the
    'parallel' batch axis spreads over both v7x TensorCores; per-tile VMEM stays a
    few MiB (feats slab is tb * 9*in_pad * 4 B)."""
    for tb in (1024, 512, 256, 128):
        if batch >= 2 * tb:
            return tb
    if batch > 128:
        return 128
    return _round_up(batch, 8)          # tiny eval batches: one sublane-aligned block


@functools.partial(jax.jit, static_argnames=("n_actions",))
def kqnetwork_forward(packed_weights, state, n_actions):
    w1, w2, w3, w4 = packed_weights
    batch, in_f = state.shape
    in_pad = w1.shape[0] // NUM_BLOCKS
    out_pad = w4.shape[1]

    tb = _pick_batch_tile(batch)
    grid = pl.cdiv(batch, tb)
    batch_pad = grid * tb
    x = jnp.pad(state.astype(jnp.float32),
                ((0, batch_pad - batch), (0, in_pad - in_f)))

    def resident(a):  # weight slab: constant index_map -> resident across batch tiles
        return pl.BlockSpec(a.shape, lambda i: (0, 0))

    kernel = functools.partial(kq_forward_kernel, knots=_grid_knots())
    out = pl.pallas_call(
        kernel,
        out_shape=jax.ShapeDtypeStruct((batch_pad, out_pad), jnp.float32),
        grid=(grid,),
        in_specs=[
            pl.BlockSpec((tb, in_pad), lambda i: (i, 0)),
            resident(w1), resident(w2), resident(w3), resident(w4),
        ],
        out_specs=pl.BlockSpec((tb, out_pad), lambda i: (i, 0)),
        compiler_params=pltpu.CompilerParams(
            dimension_semantics=("parallel",),       # shard batch tiles across TCs
            vmem_limit_bytes=48 * 1024 * 1024,       # < v7x 64 MiB physical; plenty on v5e/v6e
        ),
    )(x, w1, w2, w3, w4)
    return out[:batch, :n_actions]


# ---------------------------------------------------------------------------
# Parameter init (deterministic, synthetic)
# ---------------------------------------------------------------------------
def init_kan_linear(key, in_f, out_f):
    k1, k2, k3 = jax.random.split(key, 3)
    scale = 1.0 / jnp.sqrt(jnp.float32(in_f))
    return dict(
        base_weight=jax.random.uniform(k1, (out_f, in_f), jnp.float32, -1.0, 1.0) * scale,
        spline_weight=jax.random.normal(k2, (out_f, in_f, NUM_COEF), jnp.float32) * 0.1,
        spline_scaler=jax.random.uniform(k3, (out_f, in_f), jnp.float32, -1.0, 1.0) * scale,
    )


def init_kqnetwork(key, input_dims, fc1_dims, fc2_dims, n_actions):
    # fc1 = KAN([input_dims, fc1_dims, fc2_dims]); fc2 = KAN([fc2_dims, fc1_dims, n_actions])
    widths = [(input_dims, fc1_dims), (fc1_dims, fc2_dims),
              (fc2_dims, fc1_dims), (fc1_dims, n_actions)]
    keys = jax.random.split(key, len(widths))
    return [init_kan_linear(k, i, o) for k, (i, o) in zip(keys, widths)]
    # TODO(synk): Adam optimizer / MSELoss / .to(device) are training-only; not part of forward.


# ---------------------------------------------------------------------------
# Pure-JAX f32 reference (mirrors torch efficient-kan math) for a sanity check
# ---------------------------------------------------------------------------
def _ref_kan_linear(x, p):
    g = jnp.asarray(_grid_knots(), jnp.float32)
    base = jax.nn.silu(x) @ p["base_weight"].T
    xu = x[:, :, None]
    bases = ((xu >= g[:-1]) & (xu < g[1:])).astype(jnp.float32)
    for k in range(1, SPLINE_ORDER + 1):
        bases = ((xu - g[: -(k + 1)]) / (g[k:-1] - g[: -(k + 1)]) * bases[:, :, :-1]
                 + (g[k + 1:] - xu) / (g[k + 1:] - g[1:-k]) * bases[:, :, 1:])
    scaled = p["spline_weight"] * p["spline_scaler"][:, :, None]
    spline = bases.reshape(x.shape[0], -1) @ scaled.reshape(scaled.shape[0], -1).T
    return base + spline


def _ref_forward(params, state):
    x = state
    for p in params:
        x = _ref_kan_linear(x, p)
    return x


if __name__ == "__main__":
    # Small shapes consistent with the module: state is a flat feature vector.
    batch, input_dims, fc1_dims, fc2_dims, n_actions = 8, 16, 32, 64, 24

    key = jax.random.PRNGKey(0)
    k_param, k_state = jax.random.split(key)
    params = init_kqnetwork(k_param, input_dims, fc1_dims, fc2_dims, n_actions)
    state = jax.random.normal(k_state, (batch, input_dims), jnp.float32)

    packed = prepare_kqnetwork(params)          # once per parameter update
    out = kqnetwork_forward(packed, state, n_actions)
    out = jax.block_until_ready(out)

    ref = _ref_forward(params, state)
    assert out.shape == (batch, n_actions), out.shape
    max_err = float(jnp.max(jnp.abs(out - ref)))
    # bf16 MXU operands (f32 accumulation) -> looser tolerance than pure-f32 path.
    assert jnp.allclose(out, ref, atol=2e-2, rtol=2e-2), max_err

    print("KERNEL_OK")
</pallas_src>

<mosaic_0001>
module attributes {stable_mosaic.version = 11 : i64} {
  func.func @kq_forward_kernel(%arg0: i32, %arg1: memref<8x128xf32, #tpu.memory_space<vmem>>, %arg2: memref<1152x128xbf16, #tpu.memory_space<vmem>>, %arg3: memref<1152x128xbf16, #tpu.memory_space<vmem>>, %arg4: memref<1152x128xbf16, #tpu.memory_space<vmem>>, %arg5: memref<1152x128xbf16, #tpu.memory_space<vmem>>, %arg6: memref<8x128xf32, #tpu.memory_space<vmem>>) attributes {dimension_semantics = [#tpu.dimension_semantics<parallel>], iteration_bounds = array<i64: 1>, scalar_prefetch = 0 : i64, scratch_operands = 0 : i64, tpu.core_type = #tpu.core_type<tc>, window_params = [{transform_indices = @transform_0, window_bounds = array<i64: 8, 128>}, {pipeline_mode = #tpu.pipeline_mode<synchronous>, transform_indices = @transform_1, window_bounds = array<i64: 1152, 128>}, {pipeline_mode = #tpu.pipeline_mode<synchronous>, transform_indices = @transform_2, window_bounds = array<i64: 1152, 128>}, {pipeline_mode = #tpu.pipeline_mode<synchronous>, transform_indices = @transform_3, window_bounds = array<i64: 1152, 128>}, {pipeline_mode = #tpu.pipeline_mode<synchronous>, transform_indices = @transform_4, window_bounds = array<i64: 1152, 128>}, {transform_indices = @transform_5, window_bounds = array<i64: 8, 128>}]} {
    %c0 = arith.constant 0 : index
    %c0_0 = arith.constant 0 : index
    %0 = vector.load %arg1[%c0, %c0_0] : memref<8x128xf32, #tpu.memory_space<vmem>>, vector<8x128xf32>
    %c0_1 = arith.constant 0 : index
    %c0_2 = arith.constant 0 : index
    %1 = vector.load %arg2[%c0_1, %c0_2] : memref<1152x128xbf16, #tpu.memory_space<vmem>>, vector<1152x128xbf16>
    %2 = arith.negf %0 : vector<8x128xf32>
    %3 = math.exp %2 : vector<8x128xf32>
    %cst = arith.constant 1.000000e+00 : f32
    %4 = vector.broadcast %cst : f32 to vector<8x128xf32>
    %5 = arith.addf %4, %3 : vector<8x128xf32>
    %6 = arith.divf %4, %5 : vector<8x128xf32>
    %7 = arith.mulf %0, %6 : vector<8x128xf32>
    %cst_3 = arith.constant -2.200000e+00 : f32
    %8 = vector.broadcast %cst_3 : f32 to vector<8x128xf32>
    %9 = arith.subf %0, %8 : vector<8x128xf32>
    %cst_4 = arith.constant -1.800000e+00 : f32
    %10 = vector.broadcast %cst_4 : f32 to vector<8x128xf32>
    %11 = arith.subf %0, %10 : vector<8x128xf32>
    %cst_5 = arith.constant -1.400000e+00 : f32
    %12 = vector.broadcast %cst_5 : f32 to vector<8x128xf32>
    %13 = arith.subf %0, %12 : vector<8x128xf32>
    %cst_6 = arith.constant -1.000000e+00 : f32
    %14 = vector.broadcast %cst_6 : f32 to vector<8x128xf32>
    %15 = arith.subf %0, %14 : vector<8x128xf32>
    %cst_7 = arith.constant -6.000000e-01 : f32
    %16 = vector.broadcast %cst_7 : f32 to vector<8x128xf32>
    %17 = arith.subf %0, %16 : vector<8x128xf32>
    %cst_8 = arith.constant -2.000000e-01 : f32
    %18 = vector.broadcast %cst_8 : f32 to vector<8x128xf32>
    %19 = arith.subf %0, %18 : vector<8x128xf32>
    %cst_9 = arith.constant 2.000000e-01 : f32
    %20 = vector.broadcast %cst_9 : f32 to vector<8x128xf32>
    %21 = arith.subf %0, %20 : vector<8x128xf32>
    %cst_10 = arith.constant 6.000000e-01 : f32
    %22 = vector.broadcast %cst_10 : f32 to vector<8x128xf32>
    %23 = arith.subf %0, %22 : vector<8x128xf32>
    %cst_11 = arith.constant 1.000000e+00 : f32
    %24 = vector.broadcast %cst_11 : f32 to vector<8x128xf32>
    %25 = arith.subf %0, %24 : vector<8x128xf32>
    %cst_12 = arith.constant 1.400000e+00 : f32
    %26 = vector.broadcast %cst_12 : f32 to vector<8x128xf32>
    %27 = arith.subf %0, %26 : vector<8x128xf32>
    %cst_13 = arith.constant 1.800000e+00 : f32
    %28 = vector.broadcast %cst_13 : f32 to vector<8x128xf32>
    %29 = arith.subf %0, %28 : vector<8x128xf32>
    %cst_14 = arith.constant 2.200000e+00 : f32
    %30 = vector.broadcast %cst_14 : f32 to vector<8x128xf32>
    %31 = arith.subf %0, %30 : vector<8x128xf32>
    %cst_15 = arith.constant -2.200000e+00 : f32
    %32 = vector.broadcast %cst_15 : f32 to vector<8x128xf32>
    %33 = arith.cmpf oge, %0, %32 : vector<8x128xf32>
    %34 = arith.extui %33 : vector<8x128xi1> to vector<8x128xi32>
    %35 = arith.sitofp %34 : vector<8x128xi32> to vector<8x128xf32>
    %cst_16 = arith.constant -1.800000e+00 : f32
    %36 = vector.broadcast %cst_16 : f32 to vector<8x128xf32>
    %37 = arith.cmpf oge, %0, %36 : vector<8x128xf32>
    %38 = arith.extui %37 : vector<8x128xi1> to vector<8x128xi32>
    %39 = arith.sitofp %38 : vector<8x128xi32> to vector<8x128xf32>
    %cst_17 = arith.constant -1.400000e+00 : f32
    %40 = vector.broadcast %cst_17 : f32 to vector<8x128xf32>
    %41 = arith.cmpf oge, %0, %40 : vector<8x128xf32>
    %42 = arith.extui %41 : vector<8x128xi1> to vector<8x128xi32>
    %43 = arith.sitofp %42 : vector<8x128xi32> to vector<8x128xf32>
    %cst_18 = arith.constant -1.000000e+00 : f32
    %44 = vector.broadcast %cst_18 : f32 to vector<8x128xf32>
    %45 = arith.cmpf oge, %0, %44 : vector<8x128xf32>
    %46 = arith.extui %45 : vector<8x128xi1> to vector<8x128xi32>
    %47 = arith.sitofp %46 : vector<8x128xi32> to vector<8x128xf32>
    %cst_19 = arith.constant -6.000000e-01 : f32
    %48 = vector.broadcast %cst_19 : f32 to vector<8x128xf32>
    %49 = arith.cmpf oge, %0, %48 : vector<8x128xf32>
    %50 = arith.extui %49 : vector<8x128xi1> to vector<8x128xi32>
    %51 = arith.sitofp %50 : vector<8x128xi32> to vector<8x128xf32>
    %cst_20 = arith.constant -2.000000e-01 : f32
    %52 = vector.broadcast %cst_20 : f32 to vector<8x128xf32>
    %53 = arith.cmpf oge, %0, %52 : vector<8x128xf32>
    %54 = arith.extui %53 : vector<8x128xi1> to vector<8x128xi32>
    %55 = arith.sitofp %54 : vector<8x128xi32> to vector<8x128xf32>
    %cst_21 = arith.constant 2.000000e-01 : f32
    %56 = vector.broadcast %cst_21 : f32 to vector<8x128xf32>
    %57 = arith.cmpf oge, %0, %56 : vector<8x128xf32>
    %58 = arith.extui %57 : vector<8x128xi1> to vector<8x128xi32>
    %59 = arith.sitofp %58 : vector<8x128xi32> to vector<8x128xf32>
    %cst_22 = arith.constant 6.000000e-01 : f32
    %60 = vector.broadcast %cst_22 : f32 to vector<8x128xf32>
    %61 = arith.cmpf oge, %0, %60 : vector<8x128xf32>
    %62 = arith.extui %61 : vector<8x128xi1> to vector<8x128xi32>
    %63 = arith.sitofp %62 : vector<8x128xi32> to vector<8x128xf32>
    %cst_23 = arith.constant 1.000000e+00 : f32
    %64 = vector.broadcast %cst_23 : f32 to vector<8x128xf32>
    %65 = arith.cmpf oge, %0, %64 : vector<8x128xf32>
    %66 = arith.extui %65 : vector<8x128xi1> to vector<8x128xi32>
    %67 = arith.sitofp %66 : vector<8x128xi32> to vector<8x128xf32>
    %cst_24 = arith.constant 1.400000e+00 : f32
    %68 = vector.broadcast %cst_24 : f32 to vector<8x128xf32>
    %69 = arith.cmpf oge, %0, %68 : vector<8x128xf32>
    %70 = arith.extui %69 : vector<8x128xi1> to vector<8x128xi32>
    %71 = arith.sitofp %70 : vector<8x128xi32> to vector<8x128xf32>
    %cst_25 = arith.constant 1.800000e+00 : f32
    %72 = vector.broadcast %cst_25 : f32 to vector<8x128xf32>
    %73 = arith.cmpf oge, %0, %72 : vector<8x128xf32>
    %74 = arith.extui %73 : vector<8x128xi1> to vector<8x128xi32>
    %75 = arith.sitofp %74 : vector<8x128xi32> to vector<8x128xf32>
    %cst_26 = arith.constant 2.200000e+00 : f32
    %76 = vector.broadcast %cst_26 : f32 to vector<8x128xf32>
    %77 = arith.cmpf oge, %0, %76 : vector<8x128xf32>
    %78 = arith.extui %77 : vector<8x128xi1> to vector<8x128xi32>
    %79 = arith.sitofp %78 : vector<8x128xi32> to vector<8x128xf32>
    %80 = arith.subf %35, %39 : vector<8x128xf32>
    %81 = arith.subf %39, %43 : vector<8x128xf32>
    %82 = arith.subf %43, %47 : vector<8x128xf32>
    %83 = arith.subf %47, %51 : vector<8x128xf32>
    %84 = arith.subf %51, %55 : vector<8x128xf32>
    %85 = arith.subf %55, %59 : vector<8x128xf32>
    %86 = arith.subf %59, %63 : vector<8x128xf32>
    %87 = arith.subf %63, %67 : vector<8x128xf32>
    %88 = arith.subf %67, %71 : vector<8x128xf32>
    %89 = arith.subf %71, %75 : vector<8x128xf32>
    %90 = arith.subf %75, %79 : vector<8x128xf32>
    %91 = arith.mulf %9, %80 : vector<8x128xf32>
    %92 = arith.mulf %13, %81 : vector<8x128xf32>
    %93 = arith.subf %91, %92 : vector<8x128xf32>
    %cst_27 = arith.constant 2.500000e+00 : f32
    %94 = vector.broadcast %cst_27 : f32 to vector<8x128xf32>
    %95 = arith.mulf %93, %94 : vector<8x128xf32>
    %96 = arith.mulf %11, %81 : vector<8x128xf32>
    %97 = arith.mulf %15, %82 : vector<8x128xf32>
    %98 = arith.subf %96, %97 : vector<8x128xf32>
    %cst_28 = arith.constant 2.500000e+00 : f32
    %99 = vector.broadcast %cst_28 : f32 to vector<8x128xf32>
    %100 = arith.mulf %98, %99 : vector<8x128xf32>
    %101 = arith.mulf %13, %82 : vector<8x128xf32>
    %102 = arith.mulf %17, %83 : vector<8x128xf32>
    %103 = arith.subf %101, %102 : vector<8x128xf32>
    %cst_29 = arith.constant 2.500000e+00 : f32
    %104 = vector.broadcast %cst_29 : f32 to vector<8x128xf32>
    %105 = arith.mulf %103, %104 : vector<8x128xf32>
    %106 = arith.mulf %15, %83 : vector<8x128xf32>
    %107 = arith.mulf %19, %84 : vector<8x128xf32>
    %108 = arith.subf %106, %107 : vector<8x128xf32>
    %cst_30 = arith.constant 2.500000e+00 : f32
    %109 = vector.broadcast %cst_30 : f32 to vector<8x128xf32>
    %110 = arith.mulf %108, %109 : vector<8x128xf32>
    %111 = arith.mulf %17, %84 : vector<8x128xf32>
    %112 = arith.mulf %21, %85 : vector<8x128xf32>
    %113 = arith.subf %111, %112 : vector<8x128xf32>
    %cst_31 = arith.constant 2.500000e+00 : f32
    %114 = vector.broadcast %cst_31 : f32 to vector<8x128xf32>
    %115 = arith.mulf %113, %114 : vector<8x128xf32>
    %116 = arith.mulf %19, %85 : vector<8x128xf32>
    %117 = arith.mulf %23, %86 : vector<8x128xf32>
    %118 = arith.subf %116, %117 : vector<8x128xf32>
    %cst_32 = arith.constant 2.500000e+00 : f32
    %119 = vector.broadcast %cst_32 : f32 to vector<8x128xf32>
    %120 = arith.mulf %118, %119 : vector<8x128xf32>
    %121 = arith.mulf %21, %86 : vector<8x128xf32>
    %122 = arith.mulf %25, %87 : vector<8x128xf32>
    %123 = arith.subf %121, %122 : vector<8x128xf32>
    %cst_33 = arith.constant 2.500000e+00 : f32
    %124 = vector.broadcast %cst_33 : f32 to vector<8x128xf32>
    %125 = arith.mulf %123, %124 : vector<8x128xf32>
    %126 = arith.mulf %23, %87 : vector<8x128xf32>
    %127 = arith.mulf %27, %88 : vector<8x128xf32>
    %128 = arith.subf %126, %127 : vector<8x128xf32>
    %cst_34 = arith.constant 2.500000e+00 : f32
    %129 = vector.broadcast %cst_34 : f32 to vector<8x128xf32>
    %130 = arith.mulf %128, %129 : vector<8x128xf32>
    %131 = arith.mulf %25, %88 : vector<8x128xf32>
    %132 = arith.mulf %29, %89 : vector<8x128xf32>
    %133 = arith.subf %131, %132 : vector<8x128xf32>
    %cst_35 = arith.constant 2.500000e+00 : f32
    %134 = vector.broadcast %cst_35 : f32 to vector<8x128xf32>
    %135 = arith.mulf %133, %134 : vector<8x128xf32>
    %136 = arith.mulf %27, %89 : vector<8x128xf32>
    %137 = arith.mulf %31, %90 : vector<8x128xf32>
    %138 = arith.subf %136, %137 : vector<8x128xf32>
    %cst_36 = arith.constant 2.500000e+00 : f32
    %139 = vector.broadcast %cst_36 : f32 to vector<8x128xf32>
    %140 = arith.mulf %138, %139 : vector<8x128xf32>
    %141 = arith.mulf %9, %95 : vector<8x128xf32>
    %142 = arith.mulf %15, %100 : vector<8x128xf32>
    %143 = arith.subf %141, %142 : vector<8x128xf32>
    %cst_37 = arith.constant 1.250000e+00 : f32
    %144 = vector.broadcast %cst_37 : f32 to vector<8x128xf32>
    %145 = arith.mulf %143, %144 : vector<8x128xf32>
    %146 = arith.mulf %11, %100 : vector<8x128xf32>
    %147 = arith.mulf %17, %105 : vector<8x128xf32>
    %148 = arith.subf %146, %147 : vector<8x128xf32>
    %cst_38 = arith.constant 1.250000e+00 : f32
    %149 = vector.broadcast %cst_38 : f32 to vector<8x128xf32>
    %150 = arith.mulf %148, %149 : vector<8x128xf32>
    %151 = arith.mulf %13, %105 : vector<8x128xf32>
    %152 = arith.mulf %19, %110 : vector<8x128xf32>
    %153 = arith.subf %151, %152 : vector<8x128xf32>
    %cst_39 = arith.constant 1.250000e+00 : f32
    %154 = vector.broadcast %cst_39 : f32 to vector<8x128xf32>
    %155 = arith.mulf %153, %154 : vector<8x128xf32>
    %156 = arith.mulf %15, %110 : vector<8x128xf32>
    %157 = arith.mulf %21, %115 : vector<8x128xf32>
    %158 = arith.subf %156, %157 : vector<8x128xf32>
    %cst_40 = arith.constant 1.250000e+00 : f32
    %159 = vector.broadcast %cst_40 : f32 to vector<8x128xf32>
    %160 = arith.mulf %158, %159 : vector<8x128xf32>
    %161 = arith.mulf %17, %115 : vector<8x128xf32>
    %162 = arith.mulf %23, %120 : vector<8x128xf32>
    %163 = arith.subf %161, %162 : vector<8x128xf32>
    %cst_41 = arith.constant 1.250000e+00 : f32
    %164 = vector.broadcast %cst_41 : f32 to vector<8x128xf32>
    %165 = arith.mulf %163, %164 : vector<8x128xf32>
    %166 = arith.mulf %19, %120 : vector<8x128xf32>
    %167 = arith.mulf %25, %125 : vector<8x128xf32>
    %168 = arith.subf %166, %167 : vector<8x128xf32>
    %cst_42 = arith.constant 1.250000e+00 : f32
    %169 = vector.broadcast %cst_42 : f32 to vector<8x128xf32>
    %170 = arith.mulf %168, %169 : vector<8x128xf32>
    %171 = arith.mulf %21, %125 : vector<8x128xf32>
    %172 = arith.mulf %27, %130 : vector<8x128xf32>
    %173 = arith.subf %171, %172 : vector<8x128xf32>
    %cst_43 = arith.constant 1.250000e+00 : f32
    %174 = vector.broadcast %cst_43 : f32 to vector<8x128xf32>
    %175 = arith.mulf %173, %174 : vector<8x128xf32>
    %176 = arith.mulf %23, %130 : vector<8x128xf32>
    %177 = arith.mulf %29, %135 : vector<8x128xf32>
    %178 = arith.subf %176, %177 : vector<8x128xf32>
    %cst_44 = arith.constant 1.250000e+00 : f32
    %179 = vector.broadcast %cst_44 : f32 to vector<8x128xf32>
    %180 = arith.mulf %178, %179 : vector<8x128xf32>
    %181 = arith.mulf %25, %135 : vector<8x128xf32>
    %182 = arith.mulf %31, %140 : vector<8x128xf32>
    %183 = arith.subf %181, %182 : vector<8x128xf32>
    %cst_45 = arith.constant 1.250000e+00 : f32
    %184 = vector.broadcast %cst_45 : f32 to vector<8x128xf32>
    %185 = arith.mulf %183, %184 : vector<8x128xf32>
    %186 = arith.mulf %9, %145 : vector<8x128xf32>
    %187 = arith.mulf %17, %150 : vector<8x128xf32>
    %188 = arith.subf %186, %187 : vector<8x128xf32>
    %cst_46 = arith.constant 0.833333313 : f32
    %189 = vector.broadcast %cst_46 : f32 to vector<8x128xf32>
    %190 = arith.mulf %188, %189 : vector<8x128xf32>
    %191 = arith.mulf %11, %150 : vector<8x128xf32>
    %192 = arith.mulf %19, %155 : vector<8x128xf32>
    %193 = arith.subf %191, %192 : vector<8x128xf32>
    %cst_47 = arith.constant 0.833333313 : f32
    %194 = vector.broadcast %cst_47 : f32 to vector<8x128xf32>
    %195 = arith.mulf %193, %194 : vector<8x128xf32>
    %196 = arith.mulf %13, %155 : vector<8x128xf32>
    %197 = arith.mulf %21, %160 : vector<8x128xf32>
    %198 = arith.subf %196, %197 : vector<8x128xf32>
    %cst_48 = arith.constant 0.833333313 : f32
    %199 = vector.broadcast %cst_48 : f32 to vector<8x128xf32>
    %200 = arith.mulf %198, %199 : vector<8x128xf32>
    %201 = arith.mulf %15, %160 : vector<8x128xf32>
    %202 = arith.mulf %23, %165 : vector<8x128xf32>
    %203 = arith.subf %201, %202 : vector<8x128xf32>
    %cst_49 = arith.constant 0.833333313 : f32
    %204 = vector.broadcast %cst_49 : f32 to vector<8x128xf32>
    %205 = arith.mulf %203, %204 : vector<8x128xf32>
    %206 = arith.mulf %17, %165 : vector<8x128xf32>
    %207 = arith.mulf %25, %170 : vector<8x128xf32>
    %208 = arith.subf %206, %207 : vector<8x128xf32>
    %cst_50 = arith.constant 0.833333313 : f32
    %209 = vector.broadcast %cst_50 : f32 to vector<8x128xf32>
    %210 = arith.mulf %208, %209 : vector<8x128xf32>
    %211 = arith.mulf %19, %170 : vector<8x128xf32>
    %212 = arith.mulf %27, %175 : vector<8x128xf32>
    %213 = arith.subf %211, %212 : vector<8x128xf32>
    %cst_51 = arith.constant 0.833333313 : f32
    %214 = vector.broadcast %cst_51 : f32 to vector<8x128xf32>
    %215 = arith.mulf %213, %214 : vector<8x128xf32>
    %216 = arith.mulf %21, %175 : vector<8x128xf32>
    %217 = arith.mulf %29, %180 : vector<8x128xf32>
    %218 = arith.subf %216, %217 : vector<8x128xf32>
    %cst_52 = arith.constant 0.833333313 : f32
    %219 = vector.broadcast %cst_52 : f32 to vector<8x128xf32>
    %220 = arith.mulf %218, %219 : vector<8x128xf32>
    %221 = arith.mulf %23, %180 : vector<8x128xf32>
    %222 = arith.mulf %31, %185 : vector<8x128xf32>
    %223 = arith.subf %221, %222 : vector<8x128xf32>
    %cst_53 = arith.constant 0.833333313 : f32
    %224 = vector.broadcast %cst_53 : f32 to vector<8x128xf32>
    %225 = arith.mulf %223, %224 : vector<8x128xf32>
    %226 = tpu.concatenate %7, %190, %195, %200, %205, %210, %215, %220, %225 in 1 : vector<8x128xf32>, vector<8x128xf32>, vector<8x128xf32>, vector<8x128xf32>, vector<8x128xf32>, vector<8x128xf32>, vector<8x128xf32>, vector<8x128xf32>, vector<8x128xf32> -> vector<8x1152xf32>
    %227 = arith.truncf %226 : vector<8x1152xf32> to vector<8x1152xbf16>
    %cst_54 = arith.constant dense<0.000000e+00> : vector<8x128xf32>
    %228 = tpu.matmul %227, %1, %cst_54 {dimension_numbers = #tpu.dot_dimension_numbers<[1], [0], [0], [1], [0, 0, 1, 1], [], []>} : vector<8x1152xbf16>, vector<1152x128xbf16>, vector<8x128xf32> -> vector<8x128xf32>
    %c0_55 = arith.constant 0 : index
    %c0_56 = arith.constant 0 : index
    %229 = vector.load %arg3[%c0_55, %c0_56] : memref<1152x128xbf16, #tpu.memory_space<vmem>>, vector<1152x128xbf16>
    %230 = arith.negf %228 : vector<8x128xf32>
    %231 = math.exp %230 : vector<8x128xf32>
    %cst_57 = arith.constant 1.000000e+00 : f32
    %232 = vector.broadcast %cst_57 : f32 to vector<8x128xf32>
    %233 = arith.addf %232, %231 : vector<8x128xf32>
    %234 = arith.divf %232, %233 : vector<8x128xf32>
    %235 = arith.mulf %228, %234 : vector<8x128xf32>
    %cst_58 = arith.constant -2.200000e+00 : f32
    %236 = vector.broadcast %cst_58 : f32 to vector<8x128xf32>
    %237 = arith.subf %228, %236 : vector<8x128xf32>
    %cst_59 = arith.constant -1.800000e+00 : f32
    %238 = vector.broadcast %cst_59 : f32 to vector<8x128xf32>
    %239 = arith.subf %228, %238 : vector<8x128xf32>
    %cst_60 = arith.constant -1.400000e+00 : f32
    %240 = vector.broadcast %cst_60 : f32 to vector<8x128xf32>
    %241 = arith.subf %228, %240 : vector<8x128xf32>
    %cst_61 = arith.constant -1.000000e+00 : f32
    %242 = vector.broadcast %cst_61 : f32 to vector<8x128xf32>
    %243 = arith.subf %228, %242 : vector<8x128xf32>
    %cst_62 = arith.constant -6.000000e-01 : f32
    %244 = vector.broadcast %cst_62 : f32 to vector<8x128xf32>
    %245 = arith.subf %228, %244 : vector<8x128xf32>
    %cst_63 = arith.constant -2.000000e-01 : f32
    %246 = vector.broadcast %cst_63 : f32 to vector<8x128xf32>
    %247 = arith.subf %228, %246 : vector<8x128xf32>
    %cst_64 = arith.constant 2.000000e-01 : f32
    %248 = vector.broadcast %cst_64 : f32 to vector<8x128xf32>
    %249 = arith.subf %228, %248 : vector<8x128xf32>
    %cst_65 = arith.constant 6.000000e-01 : f32
    %250 = vector.broadcast %cst_65 : f32 to vector<8x128xf32>
    %251 = arith.subf %228, %250 : vector<8x128xf32>
    %cst_66 = arith.constant 1.000000e+00 : f32
    %252 = vector.broadcast %cst_66 : f32 to vector<8x128xf32>
    %253 = arith.subf %228, %252 : vector<8x128xf32>
    %cst_67 = arith.constant 1.400000e+00 : f32
    %254 = vector.broadcast %cst_67 : f32 to vector<8x128xf32>
    %255 = arith.subf %228, %254 : vector<8x128xf32>
    %cst_68 = arith.constant 1.800000e+00 : f32
    %256 = vector.broadcast %cst_68 : f32 to vector<8x128xf32>
    %257 = arith.subf %228, %256 : vector<8x128xf32>
    %cst_69 = arith.constant 2.200000e+00 : f32
    %258 = vector.broadcast %cst_69 : f32 to vector<8x128xf32>
    %259 = arith.subf %228, %258 : vector<8x128xf32>
    %cst_70 = arith.constant -2.200000e+00 : f32
    %260 = vector.broadcast %cst_70 : f32 to vector<8x128xf32>
    %261 = arith.cmpf oge, %228, %260 : vector<8x128xf32>
    %262 = arith.extui %261 : vector<8x128xi1> to vector<8x128xi32>
    %263 = arith.sitofp %262 : vector<8x128xi32> to vector<8x128xf32>
    %cst_71 = arith.constant -1.800000e+00 : f32
    %264 = vector.broadcast %cst_71 : f32 to vector<8x128xf32>
    %265 = arith.cmpf oge, %228, %264 : vector<8x128xf32>
    %266 = arith.extui %265 : vector<8x128xi1> to vector<8x128xi32>
    %267 = arith.sitofp %266 : vector<8x128xi32> to vector<8x128xf32>
    %cst_72 = arith.constant -1.400000e+00 : f32
    %268 = vector.broadcast %cst_72 : f32 to vector<8x128xf32>
    %269 = arith.cmpf oge, %228, %268 : vector<8x128xf32>
    %270 = arith.extui %269 : vector<8x128xi1> to vector<8x128xi32>
    %271 = arith.sitofp %270 : vector<8x128xi32> to vector<8x128xf32>
    %cst_73 = arith.constant -1.000000e+00 : f32
    %272 = vector.broadcast %cst_73 : f32 to vector<8x128xf32>
    %273 = arith.cmpf oge, %228, %272 : vector<8x128xf32>
    %274 = arith.extui %273 : vector<8x128xi1> to vector<8x128xi32>
    %275 = arith.sitofp %274 : vector<8x128xi32> to vector<8x128xf32>
    %cst_74 = arith.constant -6.000000e-01 : f32
    %276 = vector.broadcast %cst_74 : f32 to vector<8x128xf32>
    %277 = arith.cmpf oge, %228, %276 : vector<8x128xf32>
    %278 = arith.extui %277 : vector<8x128xi1> to vector<8x128xi32>
    %279 = arith.sitofp %278 : vector<8x128xi32> to vector<8x128xf32>
    %cst_75 = arith.constant -2.000000e-01 : f32
    %280 = vector.broadcast %cst_75 : f32 to vector<8x128xf32>
    %281 = arith.cmpf oge, %228, %280 : vector<8x128xf32>
    %282 = arith.extui %281 : vector<8x128xi1> to vector<8x128xi32>
    %283 = arith.sitofp %282 : vector<8x128xi32> to vector<8x128xf32>
    %cst_76 = arith.constant 2.000000e-01 : f32
    %284 = vector.broadcast %cst_76 : f32 to vector<8x128xf32>
    %285 = arith.cmpf oge, %228, %284 : vector<8x128xf32>
    %286 = arith.extui %285 : vector<8x128xi1> to vector<8x128xi32>
    %287 = arith.sitofp %286 : vector<8x128xi32> to vector<8x128xf32>
    %cst_77 = arith.constant 6.000000e-01 : f32
    %288 = vector.broadcast %cst_77 : f32 to vector<8x128xf32>
    %289 = arith.cmpf oge, %228, %288 : vector<8x128xf32>
    %290 = arith.extui %289 : vector<8x128xi1> to vector<8x128xi32>
    %291 = arith.sitofp %290 : vector<8x128xi32> to vector<8x128xf32>
    %cst_78 = arith.constant 1.000000e+00 : f32
    %292 = vector.broadcast %cst_78 : f32 to vector<8x128xf32>
    %293 = arith.cmpf oge, %228, %292 : vector<8x128xf32>
    %294 = arith.extui %293 : vector<8x128xi1> to vector<8x128xi32>
    %295 = arith.sitofp %294 : vector<8x128xi32> to vector<8x128xf32>
    %cst_79 = arith.constant 1.400000e+00 : f32
    %296 = vector.broadcast %cst_79 : f32 to vector<8x128xf32>
    %297 = arith.cmpf oge, %228, %296 : vector<8x128xf32>
    %298 = arith.extui %297 : vector<8x128xi1> to vector<8x128xi32>
    %299 = arith.sitofp %298 : vector<8x128xi32> to vector<8x128xf32>
    %cst_80 = arith.constant 1.800000e+00 : f32
    %300 = vector.broadcast %cst_80 : f32 to vector<8x128xf32>
    %301 = arith.cmpf oge, %228, %300 : vector<8x128xf32>
    %302 = arith.extui %301 : vector<8x128xi1> to vector<8x128xi32>
    %303 = arith.sitofp %302 : vector<8x128xi32> to vector<8x128xf32>
    %cst_81 = arith.constant 2.200000e+00 : f32
    %304 = vector.broadcast %cst_81 : f32 to vector<8x128xf32>
    %305 = arith.cmpf oge, %228, %304 : vector<8x128xf32>
    %306 = arith.extui %305 : vector<8x128xi1> to vector<8x128xi32>
    %307 = arith.sitofp %306 : vector<8x128xi32> to vector<8x128xf32>
    %308 = arith.subf %263, %267 : vector<8x128xf32>
    %309 = arith.subf %267, %271 : vector<8x128xf32>
    %310 = arith.subf %271, %275 : vector<8x128xf32>
    %311 = arith.subf %275, %279 : vector<8x128xf32>
    %312 = arith.subf %279, %283 : vector<8x128xf32>
    %313 = arith.subf %283, %287 : vector<8x128xf32>
    %314 = arith.subf %287, %291 : vector<8x128xf32>
    %315 = arith.subf %291, %295 : vector<8x128xf32>
    %316 = arith.subf %295, %299 : vector<8x128xf32>
    %317 = arith.subf %299, %303 : vector<8x128xf32>
    %318 = arith.subf %303, %307 : vector<8x128xf32>
    %319 = arith.mulf %237, %308 : vector<8x128xf32>
    %320 = arith.mulf %241, %309 : vector<8x128xf32>
    %321 = arith.subf %319, %320 : vector<8x128xf32>
    %cst_82 = arith.constant 2.500000e+00 : f32
    %322 = vector.broadcast %cst_82 : f32 to vector<8x128xf32>
    %323 = arith.mulf %321, %322 : vector<8x128xf32>
    %324 = arith.mulf %239, %309 : vector<8x128xf32>
    %325 = arith.mulf %243, %310 : vector<8x128xf32>
    %326 = arith.subf %324, %325 : vector<8x128xf32>
    %cst_83 = arith.constant 2.500000e+00 : f32
    %327 = vector.broadcast %cst_83 : f32 to vector<8x128xf32>
    %328 = arith.mulf %326, %327 : vector<8x128xf32>
    %329 = arith.mulf %241, %310 : vector<8x128xf32>
    %330 = arith.mulf %245, %311 : vector<8x128xf32>
    %331 = arith.subf %329, %330 : vector<8x128xf32>
    %cst_84 = arith.constant 2.500000e+00 : f32
    %332 = vector.broadcast %cst_84 : f32 to vector<8x128xf32>
    %333 = arith.mulf %331, %332 : vector<8x128xf32>
    %334 = arith.mulf %243, %311 : vector<8x128xf32>
    %335 = arith.mulf %247, %312 : vector<8x128xf32>
    %336 = arith.subf %334, %335 : vector<8x128xf32>
    %cst_85 = arith.constant 2.500000e+00 : f32
    %337 = vector.broadcast %cst_85 : f32 to vector<8x128xf32>
    %338 = arith.mulf %336, %337 : vector<8x128xf32>
    %339 = arith.mulf %245, %312 : vector<8x128xf32>
    %340 = arith.mulf %249, %313 : vector<8x128xf32>
    %341 = arith.subf %339, %340 : vector<8x128xf32>
    %cst_86 = arith.constant 2.500000e+00 : f32
    %342 = vector.broadcast %cst_86 : f32 to vector<8x128xf32>
    %343 = arith.mulf %341, %342 : vector<8x128xf32>
    %344 = arith.mulf %247, %313 : vector<8x128xf32>
    %345 = arith.mulf %251, %314 : vector<8x128xf32>
    %346 = arith.subf %344, %345 : vector<8x128xf32>
    %cst_87 = arith.constant 2.500000e+00 : f32
    %347 = vector.broadcast %cst_87 : f32 to vector<8x128xf32>
    %348 = arith.mulf %346, %347 : vector<8x128xf32>
    %349 = arith.mulf %249, %314 : vector<8x128xf32>
    %350 = arith.mulf %253, %315 : vector<8x128xf32>
    %351 = arith.subf %349, %350 : vector<8x128xf32>
    %cst_88 = arith.constant 2.500000e+00 : f32
    %352 = vector.broadcast %cst_88 : f32 to vector<8x128xf32>
    %353 = arith.mulf %351, %352 : vector<8x128xf32>
    %354 = arith.mulf %251, %315 : vector<8x128xf32>
    %355 = arith.mulf %255, %316 : vector<8x128xf32>
    %356 = arith.subf %354, %355 : vector<8x128xf32>
    %cst_89 = arith.constant 2.500000e+00 : f32
    %357 = vector.broadcast %cst_89 : f32 to vector<8x128xf32>
    %358 = arith.mulf %356, %357 : vector<8x128xf32>
    %359 = arith.mulf %253, %316 : vector<8x128xf32>
    %360 = arith.mulf %257, %317 : vector<8x128xf32>
    %361 = arith.subf %359, %360 : vector<8x128xf32>
    %cst_90 = arith.constant 2.500000e+00 : f32
    %362 = vector.broadcast %cst_90 : f32 to vector<8x128xf32>
    %363 = arith.mulf %361, %362 : vector<8x128xf32>
    %364 = arith.mulf %255, %317 : vector<8x128xf32>
    %365 = arith.mulf %259, %318 : vector<8x128xf32>
    %366 = arith.subf %364, %365 : vector<8x128xf32>
    %cst_91 = arith.constant 2.500000e+00 : f32
    %367 = vector.broadcast %cst_91 : f32 to vector<8x128xf32>
    %368 = arith.mulf %366, %367 : vector<8x128xf32>
    %369 = arith.mulf %237, %323 : vector<8x128xf32>
    %370 = arith.mulf %243, %328 : vector<8x128xf32>
    %371 = arith.subf %369, %370 : vector<8x128xf32>
    %cst_92 = arith.constant 1.250000e+00 : f32
    %372 = vector.broadcast %cst_92 : f32 to vector<8x128xf32>
    %373 = arith.mulf %371, %372 : vector<8x128xf32>
    %374 = arith.mulf %239, %328 : vector<8x128xf32>
    %375 = arith.mulf %245, %333 : vector<8x128xf32>
    %376 = arith.subf %374, %375 : vector<8x128xf32>
    %cst_93 = arith.constant 1.250000e+00 : f32
    %377 = vector.broadcast %cst_93 : f32 to vector<8x128xf32>
    %378 = arith.mulf %376, %377 : vector<8x128xf32>
    %379 = arith.mulf %241, %333 : vector<8x128xf32>
    %380 = arith.mulf %247, %338 : vector<8x128xf32>
    %381 = arith.subf %379, %380 : vector<8x128xf32>
    %cst_94 = arith.constant 1.250000e+00 : f32
    %382 = vector.broadcast %cst_94 : f32 to vector<8x128xf32>
    %383 = arith.mulf %381, %382 : vector<8x128xf32>
    %384 = arith.mulf %243, %338 : vector<8x128xf32>
    %385 = arith.mulf %249, %343 : vector<8x128xf32>
    %386 = arith.subf %384, %385 : vector<8x128xf32>
    %cst_95 = arith.constant 1.250000e+00 : f32
    %387 = vector.broadcast %cst_95 : f32 to vector<8x128xf32>
    %388 = arith.mulf %386, %387 : vector<8x128xf32>
    %389 = arith.mulf %245, %343 : vector<8x128xf32>
    %390 = arith.mulf %251, %348 : vector<8x128xf32>
    %391 = arith.subf %389, %390 : vector<8x128xf32>
    %cst_96 = arith.constant 1.250000e+00 : f32
    %392 = vector.broadcast %cst_96 : f32 to vector<8x128xf32>
    %393 = arith.mulf %391, %392 : vector<8x128xf32>
    %394 = arith.mulf %247, %348 : vector<8x128xf32>
    %395 = arith.mulf %253, %353 : vector<8x128xf32>
    %396 = arith.subf %394, %395 : vector<8x128xf32>
    %cst_97 = arith.constant 1.250000e+00 : f32
    %397 = vector.broadcast %cst_97 : f32 to vector<8x128xf32>
    %398 = arith.mulf %396, %397 : vector<8x128xf32>
    %399 = arith.mulf %249, %353 : vector<8x128xf32>
    %400 = arith.mulf %255, %358 : vector<8x128xf32>
    %401 = arith.subf %399, %400 : vector<8x128xf32>
    %cst_98 = arith.constant 1.250000e+00 : f32
    %402 = vector.broadcast %cst_98 : f32 to vector<8x128xf32>
    %403 = arith.mulf %401, %402 : vector<8x128xf32>
    %404 = arith.mulf %251, %358 : vector<8x128xf32>
    %405 = arith.mulf %257, %363 : vector<8x128xf32>
    %406 = arith.subf %404, %405 : vector<8x128xf32>
    %cst_99 = arith.constant 1.250000e+00 : f32
    %407 = vector.broadcast %cst_99 : f32 to vector<8x128xf32>
    %408 = arith.mulf %406, %407 : vector<8x128xf32>
    %409 = arith.mulf %253, %363 : vector<8x128xf32>
    %410 = arith.mulf %259, %368 : vector<8x128xf32>
    %411 = arith.subf %409, %410 : vector<8x128xf32>
    %cst_100 = arith.constant 1.250000e+00 : f32
    %412 = vector.broadcast %cst_100 : f32 to vector<8x128xf32>
    %413 = arith.mulf %411, %412 : vector<8x128xf32>
    %414 = arith.mulf %237, %373 : vector<8x128xf32>
    %415 = arith.mulf %245, %378 : vector<8x128xf32>
    %416 = arith.subf %414, %415 : vector<8x128xf32>
    %cst_101 = arith.constant 0.833333313 : f32
    %417 = vector.broadcast %cst_101 : f32 to vector<8x128xf32>
    %418 = arith.mulf %416, %417 : vector<8x128xf32>
    %419 = arith.mulf %239, %378 : vector<8x128xf32>
    %420 = arith.mulf %247, %383 : vector<8x128xf32>
    %421 = arith.subf %419, %420 : vector<8x128xf32>
    %cst_102 = arith.constant 0.833333313 : f32
    %422 = vector.broadcast %cst_102 : f32 to vector<8x128xf32>
    %423 = arith.mulf %421, %422 : vector<8x128xf32>
    %424 = arith.mulf %241, %383 : vector<8x128xf32>
    %425 = arith.mulf %249, %388 : vector<8x128xf32>
    %426 = arith.subf %424, %425 : vector<8x128xf32>
    %cst_103 = arith.constant 0.833333313 : f32
    %427 = vector.broadcast %cst_103 : f32 to vector<8x128xf32>
    %428 = arith.mulf %426, %427 : vector<8x128xf32>
    %429 = arith.mulf %243, %388 : vector<8x128xf32>
    %430 = arith.mulf %251, %393 : vector<8x128xf32>
    %431 = arith.subf %429, %430 : vector<8x128xf32>
    %cst_104 = arith.constant 0.833333313 : f32
    %432 = vector.broadcast %cst_104 : f32 to vector<8x128xf32>
    %433 = arith.mulf %431, %432 : vector<8x128xf32>
    %434 = arith.mulf %245, %393 : vector<8x128xf32>
    %435 = arith.mulf %253, %398 : vector<8x128xf32>
    %436 = arith.subf %434, %435 : vector<8x128xf32>
    %cst_105 = arith.constant 0.833333313 : f32
    %437 = vector.broadcast %cst_105 : f32 to vector<8x128xf32>
    %438 = arith.mulf %436, %437 : vector<8x128xf32>
    %439 = arith.mulf %247, %398 : vector<8x128xf32>
    %440 = arith.mulf %255, %403 : vector<8x128xf32>
    %441 = arith.subf %439, %440 : vector<8x128xf32>
    %cst_106 = arith.constant 0.833333313 : f32
    %442 = vector.broadcast %cst_106 : f32 to vector<8x128xf32>
    %443 = arith.mulf %441, %442 : vector<8x128xf32>
    %444 = arith.mulf %249, %403 : vector<8x128xf32>
    %445 = arith.mulf %257, %408 : vector<8x128xf32>
    %446 = arith.subf %444, %445 : vector<8x128xf32>
    %cst_107 = arith.constant 0.833333313 : f32
    %447 = vector.broadcast %cst_107 : f32 to vector<8x128xf32>
    %448 = arith.mulf %446, %447 : vector<8x128xf32>
    %449 = arith.mulf %251, %408 : vector<8x128xf32>
    %450 = arith.mulf %259, %413 : vector<8x128xf32>
    %451 = arith.subf %449, %450 : vector<8x128xf32>
    %cst_108 = arith.constant 0.833333313 : f32
    %452 = vector.broadcast %cst_108 : f32 to vector<8x128xf32>
    %453 = arith.mulf %451, %452 : vector<8x128xf32>
    %454 = tpu.concatenate %235, %418, %423, %428, %433, %438, %443, %448, %453 in 1 : vector<8x128xf32>, vector<8x128xf32>, vector<8x128xf32>, vector<8x128xf32>, vector<8x128xf32>, vector<8x128xf32>, vector<8x128xf32>, vector<8x128xf32>, vector<8x128xf32> -> vector<8x1152xf32>
    %455 = arith.truncf %454 : vector<8x1152xf32> to vector<8x1152xbf16>
    %cst_109 = arith.constant dense<0.000000e+00> : vector<8x128xf32>
    %456 = tpu.matmul %455, %229, %cst_109 {dimension_numbers = #tpu.dot_dimension_numbers<[1], [0], [0], [1], [0, 0, 1, 1], [], []>} : vector<8x1152xbf16>, vector<1152x128xbf16>, vector<8x128xf32> -> vector<8x128xf32>
    %c0_110 = arith.constant 0 : index
    %c0_111 = arith.constant 0 : index
    %457 = vector.load %arg4[%c0_110, %c0_111] : memref<1152x128xbf16, #tpu.memory_space<vmem>>, vector<1152x128xbf16>
    %458 = arith.negf %456 : vector<8x128xf32>
    %459 = math.exp %458 : vector<8x128xf32>
    %cst_112 = arith.constant 1.000000e+00 : f32
    %460 = vector.broadcast %cst_112 : f32 to vector<8x128xf32>
    %461 = arith.addf %460, %459 : vector<8x128xf32>
    %462 = arith.divf %460, %461 : vector<8x128xf32>
    %463 = arith.mulf %456, %462 : vector<8x128xf32>
    %cst_113 = arith.constant -2.200000e+00 : f32
    %464 = vector.broadcast %cst_113 : f32 to vector<8x128xf32>
    %465 = arith.subf %456, %464 : vector<8x128xf32>
    %cst_114 = arith.constant -1.800000e+00 : f32
    %466 = vector.broadcast %cst_114 : f32 to vector<8x128xf32>
    %467 = arith.subf %456, %466 : vector<8x128xf32>
    %cst_115 = arith.constant -1.400000e+00 : f32
    %468 = vector.broadcast %cst_115 : f32 to vector<8x128xf32>
    %469 = arith.subf %456, %468 : vector<8x128xf32>
    %cst_116 = arith.constant -1.000000e+00 : f32
    %470 = vector.broadcast %cst_116 : f32 to vector<8x128xf32>
    %471 = arith.subf %456, %470 : vector<8x128xf32>
    %cst_117 = arith.constant -6.000000e-01 : f32
    %472 = vector.broadcast %cst_117 : f32 to vector<8x128xf32>
    %473 = arith.subf %456, %472 : vector<8x128xf32>
    %cst_118 = arith.constant -2.000000e-01 : f32
    %474 = vector.broadcast %cst_118 : f32 to vector<8x128xf32>
    %475 = arith.subf %456, %474 : vector<8x128xf32>
    %cst_119 = arith.constant 2.000000e-01 : f32
    %476 = vector.broadcast %cst_119 : f32 to vector<8x128xf32>
    %477 = arith.subf %456, %476 : vector<8x128xf32>
    %cst_120 = arith.constant 6.000000e-01 : f32
    %478 = vector.broadcast %cst_120 : f32 to vector<8x128xf32>
    %479 = arith.subf %456, %478 : vector<8x128xf32>
    %cst_121 = arith.constant 1.000000e+00 : f32
    %480 = vector.broadcast %cst_121 : f32 to vector<8x128xf32>
    %481 = arith.subf %456, %480 : vector<8x128xf32>
    %cst_122 = arith.constant 1.400000e+00 : f32
    %482 = vector.broadcast %cst_122 : f32 to vector<8x128xf32>
    %483 = arith.subf %456, %482 : vector<8x128xf32>
    %cst_123 = arith.constant 1.800000e+00 : f32
    %484 = vector.broadcast %cst_123 : f32 to vector<8x128xf32>
    %485 = arith.subf %456, %484 : vector<8x128xf32>
    %cst_124 = arith.constant 2.200000e+00 : f32
    %486 = vector.broadcast %cst_124 : f32 to vector<8x128xf32>
    %487 = arith.subf %456, %486 : vector<8x128xf32>
    %cst_125 = arith.constant -2.200000e+00 : f32
    %488 = vector.broadcast %cst_125 : f32 to vector<8x128xf32>
    %489 = arith.cmpf oge, %456, %488 : vector<8x128xf32>
    %490 = arith.extui %489 : vector<8x128xi1> to vector<8x128xi32>
    %491 = arith.sitofp %490 : vector<8x128xi32> to vector<8x128xf32>
    %cst_126 = arith.constant -1.800000e+00 : f32
    %492 = vector.broadcast %cst_126 : f32 to vector<8x128xf32>
    %493 = arith.cmpf oge, %456, %492 : vector<8x128xf32>
    %494 = arith.extui %493 : vector<8x128xi1> to vector<8x128xi32>
    %495 = arith.sitofp %494 : vector<8x128xi32> to vector<8x128xf32>
    %cst_127 = arith.constant -1.400000e+00 : f32
    %496 = vector.broadcast %cst_127 : f32 to vector<8x128xf32>
    %497 = arith.cmpf oge, %456, %496 : vector<8x128xf32>
    %498 = arith.extui %497 : vector<8x128xi1> to vector<8x128xi32>
    %499 = arith.sitofp %498 : vector<8x128xi32> to vector<8x128xf32>
    %cst_128 = arith.constant -1.000000e+00 : f32
    %500 = vector.broadcast %cst_128 : f32 to vector<8x128xf32>
    %501 = arith.cmpf oge, %456, %500 : vector<8x128xf32>
    %502 = arith.extui %501 : vector<8x128xi1> to vector<8x128xi32>
    %503 = arith.sitofp %502 : vector<8x128xi32> to vector<8x128xf32>
    %cst_129 = arith.constant -6.000000e-01 : f32
    %504 = vector.broadcast %cst_129 : f32 to vector<8x128xf32>
    %505 = arith.cmpf oge, %456, %504 : vector<8x128xf32>
    %506 = arith.extui %505 : vector<8x128xi1> to vector<8x128xi32>
    %507 = arith.sitofp %506 : vector<8x128xi32> to vector<8x128xf32>
    %cst_130 = arith.constant -2.000000e-01 : f32
    %508 = vector.broadcast %cst_130 : f32 to vector<8x128xf32>
    %509 = arith.cmpf oge, %456, %508 : vector<8x128xf32>
    %510 = arith.extui %509 : vector<8x128xi1> to vector<8x128xi32>
    %511 = arith.sitofp %510 : vector<8x128xi32> to vector<8x128xf32>
    %cst_131 = arith.constant 2.000000e-01 : f32
    %512 = vector.broadcast %cst_131 : f32 to vector<8x128xf32>
    %513 = arith.cmpf oge, %456, %512 : vector<8x128xf32>
    %514 = arith.extui %513 : vector<8x128xi1> to vector<8x128xi32>
    %515 = arith.sitofp %514 : vector<8x128xi32> to vector<8x128xf32>
    %cst_132 = arith.constant 6.000000e-01 : f32
    %516 = vector.broadcast %cst_132 : f32 to vector<8x128xf32>
    %517 = arith.cmpf oge, %456, %516 : vector<8x128xf32>
    %518 = arith.extui %517 : vector<8x128xi1> to vector<8x128xi32>
    %519 = arith.sitofp %518 : vector<8x128xi32> to vector<8x128xf32>
    %cst_133 = arith.constant 1.000000e+00 : f32
    %520 = vector.broadcast %cst_133 : f32 to vector<8x128xf32>
    %521 = arith.cmpf oge, %456, %520 : vector<8x128xf32>
    %522 = arith.extui %521 : vector<8x128xi1> to vector<8x128xi32>
    %523 = arith.sitofp %522 : vector<8x128xi32> to vector<8x128xf32>
    %cst_134 = arith.constant 1.400000e+00 : f32
    %524 = vector.broadcast %cst_134 : f32 to vector<8x128xf32>
    %525 = arith.cmpf oge, %456, %524 : vector<8x128xf32>
    %526 = arith.extui %525 : vector<8x128xi1> to vector<8x128xi32>
    %527 = arith.sitofp %526 : vector<8x128xi32> to vector<8x128xf32>
    %cst_135 = arith.constant 1.800000e+00 : f32
    %528 = vector.broadcast %cst_135 : f32 to vector<8x128xf32>
    %529 = arith.cmpf oge, %456, %528 : vector<8x128xf32>
    %530 = arith.extui %529 : vector<8x128xi1> to vector<8x128xi32>
    %531 = arith.sitofp %530 : vector<8x128xi32> to vector<8x128xf32>
    %cst_136 = arith.constant 2.200000e+00 : f32
    %532 = vector.broadcast %cst_136 : f32 to vector<8x128xf32>
    %533 = arith.cmpf oge, %456, %532 : vector<8x128xf32>
    %534 = arith.extui %533 : vector<8x128xi1> to vector<8x128xi32>
    %535 = arith.sitofp %534 : vector<8x128xi32> to vector<8x128xf32>
    %536 = arith.subf %491, %495 : vector<8x128xf32>
    %537 = arith.subf %495, %499 : vector<8x128xf32>
    %538 = arith.subf %499, %503 : vector<8x128xf32>
    %539 = arith.subf %503, %507 : vector<8x128xf32>
    %540 = arith.subf %507, %511 : vector<8x128xf32>
    %541 = arith.subf %511, %515 : vector<8x128xf32>
    %542 = arith.subf %515, %519 : vector<8x128xf32>
    %543 = arith.subf %519, %523 : vector<8x128xf32>
    %544 = arith.subf %523, %527 : vector<8x128xf32>
    %545 = arith.subf %527, %531 : vector<8x128xf32>
    %546 = arith.subf %531, %535 : vector<8x128xf32>
    %547 = arith.mulf %465, %536 : vector<8x128xf32>
    %548 = arith.mulf %469, %537 : vector<8x128xf32>
    %549 = arith.subf %547, %548 : vector<8x128xf32>
    %cst_137 = arith.constant 2.500000e+00 : f32
    %550 = vector.broadcast %cst_137 : f32 to vector<8x128xf32>
    %551 = arith.mulf %549, %550 : vector<8x128xf32>
    %552 = arith.mulf %467, %537 : vector<8x128xf32>
    %553 = arith.mulf %471, %538 : vector<8x128xf32>
    %554 = arith.subf %552, %553 : vector<8x128xf32>
    %cst_138 = arith.constant 2.500000e+00 : f32
    %555 = vector.broadcast %cst_138 : f32 to vector<8x128xf32>
    %556 = arith.mulf %554, %555 : vector<8x128xf32>
    %557 = arith.mulf %469, %538 : vector<8x128xf32>
    %558 = arith.mulf %473, %539 : vector<8x128xf32>
    %559 = arith.subf %557, %558 : vector<8x128xf32>
    %cst_139 = arith.constant 2.500000e+00 : f32
    %560 = vector.broadcast %cst_139 : f32 to vector<8x128xf32>
    %561 = arith.mulf %559, %560 : vector<8x128xf32>
    %562 = arith.mulf %471, %539 : vector<8x128xf32>
    %563 = arith.mulf %475, %540 : vector<8x128xf32>
    %564 = arith.subf %562, %563 : vector<8x128xf32>
    %cst_140 = arith.constant 2.500000e+00 : f32
    %565 = vector.broadcast %cst_140 : f32 to vector<8x128xf32>
    %566 = arith.mulf %564, %565 : vector<8x128xf32>
    %567 = arith.mulf %473, %540 : vector<8x128xf32>
    %568 = arith.mulf %477, %541 : vector<8x128xf32>
    %569 = arith.subf %567, %568 : vector<8x128xf32>
    %cst_141 = arith.constant 2.500000e+00 : f32
    %570 = vector.broadcast %cst_141 : f32 to vector<8x128xf32>
    %571 = arith.mulf %569, %570 : vector<8x128xf32>
    %572 = arith.mulf %475, %541 : vector<8x128xf32>
    %573 = arith.mulf %479, %542 : vector<8x128xf32>
    %574 = arith.subf %572, %573 : vector<8x128xf32>
    %cst_142 = arith.constant 2.500000e+00 : f32
    %575 = vector.broadcast %cst_142 : f32 to vector<8x128xf32>
    %576 = arith.mulf %574, %575 : vector<8x128xf32>
    %577 = arith.mulf %477, %542 : vector<8x128xf32>
    %578 = arith.mulf %481, %543 : vector<8x128xf32>
    %579 = arith.subf %577, %578 : vector<8x128xf32>
    %cst_143 = arith.constant 2.500000e+00 : f32
    %580 = vector.broadcast %cst_143 : f32 to vector<8x128xf32>
    %581 = arith.mulf %579, %580 : vector<8x128xf32>
    %582 = arith.mulf %479, %543 : vector<8x128xf32>
    %583 = arith.mulf %483, %544 : vector<8x128xf32>
    %584 = arith.subf %582, %583 : vector<8x128xf32>
    %cst_144 = arith.constant 2.500000e+00 : f32
    %585 = vector.broadcast %cst_144 : f32 to vector<8x128xf32>
    %586 = arith.mulf %584, %585 : vector<8x128xf32>
    %587 = arith.mulf %481, %544 : vector<8x128xf32>
    %588 = arith.mulf %485, %545 : vector<8x128xf32>
    %589 = arith.subf %587, %588 : vector<8x128xf32>
    %cst_145 = arith.constant 2.500000e+00 : f32
    %590 = vector.broadcast %cst_145 : f32 to vector<8x128xf32>
    %591 = arith.mulf %589, %590 : vector<8x128xf32>
    %592 = arith.mulf %483, %545 : vector<8x128xf32>
    %593 = arith.mulf %487, %546 : vector<8x128xf32>
    %594 = arith.subf %592, %593 : vector<8x128xf32>
    %cst_146 = arith.constant 2.500000e+00 : f32
    %595 = vector.broadcast %cst_146 : f32 to vector<8x128xf32>
    %596 = arith.mulf %594, %595 : vector<8x128xf32>
    %597 = arith.mulf %465, %551 : vector<8x128xf32>
    %598 = arith.mulf %471, %556 : vector<8x128xf32>
    %599 = arith.subf %597, %598 : vector<8x128xf32>
    %cst_147 = arith.constant 1.250000e+00 : f32
    %600 = vector.broadcast %cst_147 : f32 to vector<8x128xf32>
    %601 = arith.mulf %599, %600 : vector<8x128xf32>
    %602 = arith.mulf %467, %556 : vector<8x128xf32>
    %603 = arith.mulf %473, %561 : vector<8x128xf32>
    %604 = arith.subf %602, %603 : vector<8x128xf32>
    %cst_148 = arith.constant 1.250000e+00 : f32
    %605 = vector.broadcast %cst_148 : f32 to vector<8x128xf32>
    %606 = arith.mulf %604, %605 : vector<8x128xf32>
    %607 = arith.mulf %469, %561 : vector<8x128xf32>
    %608 = arith.mulf %475, %566 : vector<8x128xf32>
    %609 = arith.subf %607, %608 : vector<8x128xf32>
    %cst_149 = arith.constant 1.250000e+00 : f32
    %610 = vector.broadcast %cst_149 : f32 to vector<8x128xf32>
    %611 = arith.mulf %609, %610 : vector<8x128xf32>
    %612 = arith.mulf %471, %566 : vector<8x128xf32>
    %613 = arith.mulf %477, %571 : vector<8x128xf32>
    %614 = arith.subf %612, %613 : vector<8x128xf32>
    %cst_150 = arith.constant 1.250000e+00 : f32
    %615 = vector.broadcast %cst_150 : f32 to vector<8x128xf32>
    %616 = arith.mulf %614, %615 : vector<8x128xf32>
    %617 = arith.mulf %473, %571 : vector<8x128xf32>
    %618 = arith.mulf %479, %576 : vector<8x128xf32>
    %619 = arith.subf %617, %618 : vector<8x128xf32>
    %cst_151 = arith.constant 1.250000e+00 : f32
    %620 = vector.broadcast %cst_151 : f32 to vector<8x128xf32>
    %621 = arith.mulf %619, %620 : vector<8x128xf32>
    %622 = arith.mulf %475, %576 : vector<8x128xf32>
    %623 = arith.mulf %481, %581 : vector<8x128xf32>
    %624 = arith.subf %622, %623 : vector<8x128xf32>
    %cst_152 = arith.constant 1.250000e+00 : f32
    %625 = vector.broadcast %cst_152 : f32 to vector<8x128xf32>
    %626 = arith.mulf %624, %625 : vector<8x128xf32>
    %627 = arith.mulf %477, %581 : vector<8x128xf32>
    %628 = arith.mulf %483, %586 : vector<8x128xf32>
    %629 = arith.subf %627, %628 : vector<8x128xf32>
    %cst_153 = arith.constant 1.250000e+00 : f32
    %630 = vector.broadcast %cst_153 : f32 to vector<8x128xf32>
    %631 = arith.mulf %629, %630 : vector<8x128xf32>
    %632 = arith.mulf %479, %586 : vector<8x128xf32>
    %633 = arith.mulf %485, %591 : vector<8x128xf32>
    %634 = arith.subf %632, %633 : vector<8x128xf32>
    %cst_154 = arith.constant 1.250000e+00 : f32
    %635 = vector.broadcast %cst_154 : f32 to vector<8x128xf32>
    %636 = arith.mulf %634, %635 : vector<8x128xf32>
    %637 = arith.mulf %481, %591 : vector<8x128xf32>
    %638 = arith.mulf %487, %596 : vector<8x128xf32>
    %639 = arith.subf %637, %638 : vector<8x128xf32>
    %cst_155 = arith.constant 1.250000e+00 : f32
    %640 = vector.broadcast %cst_155 : f32 to vector<8x128xf32>
    %641 = arith.mulf %639, %640 : vector<8x128xf32>
    %642 = arith.mulf %465, %601 : vector<8x128xf32>
    %643 = arith.mulf %473, %606 : vector<8x128xf32>
    %644 = arith.subf %642, %643 : vector<8x128xf32>
    %cst_156 = arith.constant 0.833333313 : f32
    %645 = vector.broadcast %cst_156 : f32 to vector<8x128xf32>
    %646 = arith.mulf %644, %645 : vector<8x128xf32>
    %647 = arith.mulf %467, %606 : vector<8x128xf32>
    %648 = arith.mulf %475, %611 : vector<8x128xf32>
    %649 = arith.subf %647, %648 : vector<8x128xf32>
    %cst_157 = arith.constant 0.833333313 : f32
    %650 = vector.broadcast %cst_157 : f32 to vector<8x128xf32>
    %651 = arith.mulf %649, %650 : vector<8x128xf32>
    %652 = arith.mulf %469, %611 : vector<8x128xf32>
    %653 = arith.mulf %477, %616 : vector<8x128xf32>
    %654 = arith.subf %652, %653 : vector<8x128xf32>
    %cst_158 = arith.constant 0.833333313 : f32
    %655 = vector.broadcast %cst_158 : f32 to vector<8x128xf32>
    %656 = arith.mulf %654, %655 : vector<8x128xf32>
    %657 = arith.mulf %471, %616 : vector<8x128xf32>
    %658 = arith.mulf %479, %621 : vector<8x128xf32>
    %659 = arith.subf %657, %658 : vector<8x128xf32>
    %cst_159 = arith.constant 0.833333313 : f32
    %660 = vector.broadcast %cst_159 : f32 to vector<8x128xf32>
    %661 = arith.mulf %659, %660 : vector<8x128xf32>
    %662 = arith.mulf %473, %621 : vector<8x128xf32>
    %663 = arith.mulf %481, %626 : vector<8x128xf32>
    %664 = arith.subf %662, %663 : vector<8x128xf32>
    %cst_160 = arith.constant 0.833333313 : f32
    %665 = vector.broadcast %cst_160 : f32 to vector<8x128xf32>
    %666 = arith.mulf %664, %665 : vector<8x128xf32>
    %667 = arith.mulf %475, %626 : vector<8x128xf32>
    %668 = arith.mulf %483, %631 : vector<8x128xf32>
    %669 = arith.subf %667, %668 : vector<8x128xf32>
    %cst_161 = arith.constant 0.833333313 : f32
    %670 = vector.broadcast %cst_161 : f32 to vector<8x128xf32>
    %671 = arith.mulf %669, %670 : vector<8x128xf32>
    %672 = arith.mulf %477, %631 : vector<8x128xf32>
    %673 = arith.mulf %485, %636 : vector<8x128xf32>
    %674 = arith.subf %672, %673 : vector<8x128xf32>
    %cst_162 = arith.constant 0.833333313 : f32
    %675 = vector.broadcast %cst_162 : f32 to vector<8x128xf32>
    %676 = arith.mulf %674, %675 : vector<8x128xf32>
    %677 = arith.mulf %479, %636 : vector<8x128xf32>
    %678 = arith.mulf %487, %641 : vector<8x128xf32>
    %679 = arith.subf %677, %678 : vector<8x128xf32>
    %cst_163 = arith.constant 0.833333313 : f32
    %680 = vector.broadcast %cst_163 : f32 to vector<8x128xf32>
    %681 = arith.mulf %679, %680 : vector<8x128xf32>
    %682 = tpu.concatenate %463, %646, %651, %656, %661, %666, %671, %676, %681 in 1 : vector<8x128xf32>, vector<8x128xf32>, vector<8x128xf32>, vector<8x128xf32>, vector<8x128xf32>, vector<8x128xf32>, vector<8x128xf32>, vector<8x128xf32>, vector<8x128xf32> -> vector<8x1152xf32>
    %683 = arith.truncf %682 : vector<8x1152xf32> to vector<8x1152xbf16>
    %cst_164 = arith.constant dense<0.000000e+00> : vector<8x128xf32>
    %684 = tpu.matmul %683, %457, %cst_164 {dimension_numbers = #tpu.dot_dimension_numbers<[1], [0], [0], [1], [0, 0, 1, 1], [], []>} : vector<8x1152xbf16>, vector<1152x128xbf16>, vector<8x128xf32> -> vector<8x128xf32>
    %c0_165 = arith.constant 0 : index
    %c0_166 = arith.constant 0 : index
    %685 = vector.load %arg5[%c0_165, %c0_166] : memref<1152x128xbf16, #tpu.memory_space<vmem>>, vector<1152x128xbf16>
    %686 = arith.negf %684 : vector<8x128xf32>
    %687 = math.exp %686 : vector<8x128xf32>
    %cst_167 = arith.constant 1.000000e+00 : f32
    %688 = vector.broadcast %cst_167 : f32 to vector<8x128xf32>
    %689 = arith.addf %688, %687 : vector<8x128xf32>
    %690 = arith.divf %688, %689 : vector<8x128xf32>
    %691 = arith.mulf %684, %690 : vector<8x128xf32>
    %cst_168 = arith.constant -2.200000e+00 : f32
    %692 = vector.broadcast %cst_168 : f32 to vector<8x128xf32>
    %693 = arith.subf %684, %692 : vector<8x128xf32>
    %cst_169 = arith.constant -1.800000e+00 : f32
    %694 = vector.broadcast %cst_169 : f32 to vector<8x128xf32>
    %695 = arith.subf %684, %694 : vector<8x128xf32>
    %cst_170 = arith.constant -1.400000e+00 : f32
    %696 = vector.broadcast %cst_170 : f32 to vector<8x128xf32>
    %697 = arith.subf %684, %696 : vector<8x128xf32>
    %cst_171 = arith.constant -1.000000e+00 : f32
    %698 = vector.broadcast %cst_171 : f32 to vector<8x128xf32>
    %699 = arith.subf %684, %698 : vector<8x128xf32>
    %cst_172 = arith.constant -6.000000e-01 : f32
    %700 = vector.broadcast %cst_172 : f32 to vector<8x128xf32>
    %701 = arith.subf %684, %700 : vector<8x128xf32>
    %cst_173 = arith.constant -2.000000e-01 : f32
    %702 = vector.broadcast %cst_173 : f32 to vector<8x128xf32>
    %703 = arith.subf %684, %702 : vector<8x128xf32>
    %cst_174 = arith.constant 2.000000e-01 : f32
    %704 = vector.broadcast %cst_174 : f32 to vector<8x128xf32>
    %705 = arith.subf %684, %704 : vector<8x128xf32>
    %cst_175 = arith.constant 6.000000e-01 : f32
    %706 = vector.broadcast %cst_175 : f32 to vector<8x128xf32>
    %707 = arith.subf %684, %706 : vector<8x128xf32>
    %cst_176 = arith.constant 1.000000e+00 : f32
    %708 = vector.broadcast %cst_176 : f32 to vector<8x128xf32>
    %709 = arith.subf %684, %708 : vector<8x128xf32>
    %cst_177 = arith.constant 1.400000e+00 : f32
    %710 = vector.broadcast %cst_177 : f32 to vector<8x128xf32>
    %711 = arith.subf %684, %710 : vector<8x128xf32>
    %cst_178 = arith.constant 1.800000e+00 : f32
    %712 = vector.broadcast %cst_178 : f32 to vector<8x128xf32>
    %713 = arith.subf %684, %712 : vector<8x128xf32>
    %cst_179 = arith.constant 2.200000e+00 : f32
    %714 = vector.broadcast %cst_179 : f32 to vector<8x128xf32>
    %715 = arith.subf %684, %714 : vector<8x128xf32>
    %cst_180 = arith.constant -2.200000e+00 : f32
    %716 = vector.broadcast %cst_180 : f32 to vector<8x128xf32>
    %717 = arith.cmpf oge, %684, %716 : vector<8x128xf32>
    %718 = arith.extui %717 : vector<8x128xi1> to vector<8x128xi32>
    %719 = arith.sitofp %718 : vector<8x128xi32> to vector<8x128xf32>
    %cst_181 = arith.constant -1.800000e+00 : f32
    %720 = vector.broadcast %cst_181 : f32 to vector<8x128xf32>
    %721 = arith.cmpf oge, %684, %720 : vector<8x128xf32>
    %722 = arith.extui %721 : vector<8x128xi1> to vector<8x128xi32>
    %723 = arith.sitofp %722 : vector<8x128xi32> to vector<8x128xf32>
    %cst_182 = arith.constant -1.400000e+00 : f32
    %724 = vector.broadcast %cst_182 : f32 to vector<8x128xf32>
    %725 = arith.cmpf oge, %684, %724 : vector<8x128xf32>
    %726 = arith.extui %725 : vector<8x128xi1> to vector<8x128xi32>
    %727 = arith.sitofp %726 : vector<8x128xi32> to vector<8x128xf32>
    %cst_183 = arith.constant -1.000000e+00 : f32
    %728 = vector.broadcast %cst_183 : f32 to vector<8x128xf32>
    %729 = arith.cmpf oge, %684, %728 : vector<8x128xf32>
    %730 = arith.extui %729 : vector<8x128xi1> to vector<8x128xi32>
    %731 = arith.sitofp %730 : vector<8x128xi32> to vector<8x128xf32>
    %cst_184 = arith.constant -6.000000e-01 : f32
    %732 = vector.broadcast %cst_184 : f32 to vector<8x128xf32>
    %733 = arith.cmpf oge, %684, %732 : vector<8x128xf32>
    %734 = arith.extui %733 : vector<8x128xi1> to vector<8x128xi32>
    %735 = arith.sitofp %734 : vector<8x128xi32> to vector<8x128xf32>
    %cst_185 = arith.constant -2.000000e-01 : f32
    %736 = vector.broadcast %cst_185 : f32 to vector<8x128xf32>
    %737 = arith.cmpf oge, %684, %736 : vector<8x128xf32>
    %738 = arith.extui %737 : vector<8x128xi1> to vector<8x128xi32>
    %739 = arith.sitofp %738 : vector<8x128xi32> to vector<8x128xf32>
    %cst_186 = arith.constant 2.000000e-01 : f32
    %740 = vector.broadcast %cst_186 : f32 to vector<8x128xf32>
    %741 = arith.cmpf oge, %684, %740 : vector<8x128xf32>
    %742 = arith.extui %741 : vector<8x128xi1> to vector<8x128xi32>
    %743 = arith.sitofp %742 : vector<8x128xi32> to vector<8x128xf32>
    %cst_187 = arith.constant 6.000000e-01 : f32
    %744 = vector.broadcast %cst_187 : f32 to vector<8x128xf32>
    %745 = arith.cmpf oge, %684, %744 : vector<8x128xf32>
    %746 = arith.extui %745 : vector<8x128xi1> to vector<8x128xi32>
    %747 = arith.sitofp %746 : vector<8x128xi32> to vector<8x128xf32>
    %cst_188 = arith.constant 1.000000e+00 : f32
    %748 = vector.broadcast %cst_188 : f32 to vector<8x128xf32>
    %749 = arith.cmpf oge, %684, %748 : vector<8x128xf32>
    %750 = arith.extui %749 : vector<8x128xi1> to vector<8x128xi32>
    %751 = arith.sitofp %750 : vector<8x128xi32> to vector<8x128xf32>
    %cst_189 = arith.constant 1.400000e+00 : f32
    %752 = vector.broadcast %cst_189 : f32 to vector<8x128xf32>
    %753 = arith.cmpf oge, %684, %752 : vector<8x128xf32>
    %754 = arith.extui %753 : vector<8x128xi1> to vector<8x128xi32>
    %755 = arith.sitofp %754 : vector<8x128xi32> to vector<8x128xf32>
    %cst_190 = arith.constant 1.800000e+00 : f32
    %756 = vector.broadcast %cst_190 : f32 to vector<8x128xf32>
    %757 = arith.cmpf oge, %684, %756 : vector<8x128xf32>
    %758 = arith.extui %757 : vector<8x128xi1> to vector<8x128xi32>
    %759 = arith.sitofp %758 : vector<8x128xi32> to vector<8x128xf32>
    %cst_191 = arith.constant 2.200000e+00 : f32
    %760 = vector.broadcast %cst_191 : f32 to vector<8x128xf32>
    %761 = arith.cmpf oge, %684, %760 : vector<8x128xf32>
    %762 = arith.extui %761 : vector<8x128xi1> to vector<8x128xi32>
    %763 = arith.sitofp %762 : vector<8x128xi32> to vector<8x128xf32>
    %764 = arith.subf %719, %723 : vector<8x128xf32>
    %765 = arith.subf %723, %727 : vector<8x128xf32>
    %766 = arith.subf %727, %731 : vector<8x128xf32>
    %767 = arith.subf %731, %735 : vector<8x128xf32>
    %768 = arith.subf %735, %739 : vector<8x128xf32>
    %769 = arith.subf %739, %743 : vector<8x128xf32>
    %770 = arith.subf %743, %747 : vector<8x128xf32>
    %771 = arith.subf %747, %751 : vector<8x128xf32>
    %772 = arith.subf %751, %755 : vector<8x128xf32>
    %773 = arith.subf %755, %759 : vector<8x128xf32>
    %774 = arith.subf %759, %763 : vector<8x128xf32>
    %775 = arith.mulf %693, %764 : vector<8x128xf32>
    %776 = arith.mulf %697, %765 : vector<8x128xf32>
    %777 = arith.subf %775, %776 : vector<8x128xf32>
    %cst_192 = arith.constant 2.500000e+00 : f32
    %778 = vector.broadcast %cst_192 : f32 to vector<8x128xf32>
    %779 = arith.mulf %777, %778 : vector<8x128xf32>
    %780 = arith.mulf %695, %765 : vector<8x128xf32>
    %781 = arith.mulf %699, %766 : vector<8x128xf32>
    %782 = arith.subf %780, %781 : vector<8x128xf32>
    %cst_193 = arith.constant 2.500000e+00 : f32
    %783 = vector.broadcast %cst_193 : f32 to vector<8x128xf32>
    %784 = arith.mulf %782, %783 : vector<8x128xf32>
    %785 = arith.mulf %697, %766 : vector<8x128xf32>
    %786 = arith.mulf %701, %767 : vector<8x128xf32>
    %787 = arith.subf %785, %786 : vector<8x128xf32>
    %cst_194 = arith.constant 2.500000e+00 : f32
    %788 = vector.broadcast %cst_194 : f32 to vector<8x128xf32>
    %789 = arith.mulf %787, %788 : vector<8x128xf32>
    %790 = arith.mulf %699, %767 : vector<8x128xf32>
    %791 = arith.mulf %703, %768 : vector<8x128xf32>
    %792 = arith.subf %790, %791 : vector<8x128xf32>
    %cst_195 = arith.constant 2.500000e+00 : f32
    %793 = vector.broadcast %cst_195 : f32 to vector<8x128xf32>
    %794 = arith.mulf %792, %793 : vector<8x128xf32>
    %795 = arith.mulf %701, %768 : vector<8x128xf32>
    %796 = arith.mulf %705, %769 : vector<8x128xf32>
    %797 = arith.subf %795, %796 : vector<8x128xf32>
    %cst_196 = arith.constant 2.500000e+00 : f32
    %798 = vector.broadcast %cst_196 : f32 to vector<8x128xf32>
    %799 = arith.mulf %797, %798 : vector<8x128xf32>
    %800 = arith.mulf %703, %769 : vector<8x128xf32>
    %801 = arith.mulf %707, %770 : vector<8x128xf32>
    %802 = arith.subf %800, %801 : vector<8x128xf32>
    %cst_197 = arith.constant 2.500000e+00 : f32
    %803 = vector.broadcast %cst_197 : f32 to vector<8x128xf32>
    %804 = arith.mulf %802, %803 : vector<8x128xf32>
    %805 = arith.mulf %705, %770 : vector<8x128xf32>
    %806 = arith.mulf %709, %771 : vector<8x128xf32>
    %807 = arith.subf %805, %806 : vector<8x128xf32>
    %cst_198 = arith.constant 2.500000e+00 : f32
    %808 = vector.broadcast %cst_198 : f32 to vector<8x128xf32>
    %809 = arith.mulf %807, %808 : vector<8x128xf32>
    %810 = arith.mulf %707, %771 : vector<8x128xf32>
    %811 = arith.mulf %711, %772 : vector<8x128xf32>
    %812 = arith.subf %810, %811 : vector<8x128xf32>
    %cst_199 = arith.constant 2.500000e+00 : f32
    %813 = vector.broadcast %cst_199 : f32 to vector<8x128xf32>
    %814 = arith.mulf %812, %813 : vector<8x128xf32>
    %815 = arith.mulf %709, %772 : vector<8x128xf32>
    %816 = arith.mulf %713, %773 : vector<8x128xf32>
    %817 = arith.subf %815, %816 : vector<8x128xf32>
    %cst_200 = arith.constant 2.500000e+00 : f32
    %818 = vector.broadcast %cst_200 : f32 to vector<8x128xf32>
    %819 = arith.mulf %817, %818 : vector<8x128xf32>
    %820 = arith.mulf %711, %773 : vector<8x128xf32>
    %821 = arith.mulf %715, %774 : vector<8x128xf32>
    %822 = arith.subf %820, %821 : vector<8x128xf32>
    %cst_201 = arith.constant 2.500000e+00 : f32
    %823 = vector.broadcast %cst_201 : f32 to vector<8x128xf32>
    %824 = arith.mulf %822, %823 : vector<8x128xf32>
    %825 = arith.mulf %693, %779 : vector<8x128xf32>
    %826 = arith.mulf %699, %784 : vector<8x128xf32>
    %827 = arith.subf %825, %826 : vector<8x128xf32>
    %cst_202 = arith.constant 1.250000e+00 : f32
    %828 = vector.broadcast %cst_202 : f32 to vector<8x128xf32>
    %829 = arith.mulf %827, %828 : vector<8x128xf32>
    %830 = arith.mulf %695, %784 : vector<8x128xf32>
    %831 = arith.mulf %701, %789 : vector<8x128xf32>
    %832 = arith.subf %830, %831 : vector<8x128xf32>
    %cst_203 = arith.constant 1.250000e+00 : f32
    %833 = vector.broadcast %cst_203 : f32 to vector<8x128xf32>
    %834 = arith.mulf %832, %833 : vector<8x128xf32>
    %835 = arith.mulf %697, %789 : vector<8x128xf32>
    %836 = arith.mulf %703, %794 : vector<8x128xf32>
    %837 = arith.subf %835, %836 : vector<8x128xf32>
    %cst_204 = arith.constant 1.250000e+00 : f32
    %838 = vector.broadcast %cst_204 : f32 to vector<8x128xf32>
    %839 = arith.mulf %837, %838 : vector<8x128xf32>
    %840 = arith.mulf %699, %794 : vector<8x128xf32>
    %841 = arith.mulf %705, %799 : vector<8x128xf32>
    %842 = arith.subf %840, %841 : vector<8x128xf32>
    %cst_205 = arith.constant 1.250000e+00 : f32
    %843 = vector.broadcast %cst_205 : f32 to vector<8x128xf32>
    %844 = arith.mulf %842, %843 : vector<8x128xf32>
    %845 = arith.mulf %701, %799 : vector<8x128xf32>
    %846 = arith.mulf %707, %804 : vector<8x128xf32>
    %847 = arith.subf %845, %846 : vector<8x128xf32>
    %cst_206 = arith.constant 1.250000e+00 : f32
    %848 = vector.broadcast %cst_206 : f32 to vector<8x128xf32>
    %849 = arith.mulf %847, %848 : vector<8x128xf32>
    %850 = arith.mulf %703, %804 : vector<8x128xf32>
    %851 = arith.mulf %709, %809 : vector<8x128xf32>
    %852 = arith.subf %850, %851 : vector<8x128xf32>
    %cst_207 = arith.constant 1.250000e+00 : f32
    %853 = vector.broadcast %cst_207 : f32 to vector<8x128xf32>
    %854 = arith.mulf %852, %853 : vector<8x128xf32>
    %855 = arith.mulf %705, %809 : vector<8x128xf32>
    %856 = arith.mulf %711, %814 : vector<8x128xf32>
    %857 = arith.subf %855, %856 : vector<8x128xf32>
    %cst_208 = arith.constant 1.250000e+00 : f32
    %858 = vector.broadcast %cst_208 : f32 to vector<8x128xf32>
    %859 = arith.mulf %857, %858 : vector<8x128xf32>
    %860 = arith.mulf %707, %814 : vector<8x128xf32>
    %861 = arith.mulf %713, %819 : vector<8x128xf32>
    %862 = arith.subf %860, %861 : vector<8x128xf32>
    %cst_209 = arith.constant 1.250000e+00 : f32
    %863 = vector.broadcast %cst_209 : f32 to vector<8x128xf32>
    %864 = arith.mulf %862, %863 : vector<8x128xf32>
    %865 = arith.mulf %709, %819 : vector<8x128xf32>
    %866 = arith.mulf %715, %824 : vector<8x128xf32>
    %867 = arith.subf %865, %866 : vector<8x128xf32>
    %cst_210 = arith.constant 1.250000e+00 : f32
    %868 = vector.broadcast %cst_210 : f32 to vector<8x128xf32>
    %869 = arith.mulf %867, %868 : vector<8x128xf32>
    %870 = arith.mulf %693, %829 : vector<8x128xf32>
    %871 = arith.mulf %701, %834 : vector<8x128xf32>
    %872 = arith.subf %870, %871 : vector<8x128xf32>
    %cst_211 = arith.constant 0.833333313 : f32
    %873 = vector.broadcast %cst_211 : f32 to vector<8x128xf32>
    %874 = arith.mulf %872, %873 : vector<8x128xf32>
    %875 = arith.mulf %695, %834 : vector<8x128xf32>
    %876 = arith.mulf %703, %839 : vector<8x128xf32>
    %877 = arith.subf %875, %876 : vector<8x128xf32>
    %cst_212 = arith.constant 0.833333313 : f32
    %878 = vector.broadcast %cst_212 : f32 to vector<8x128xf32>
    %879 = arith.mulf %877, %878 : vector<8x128xf32>
    %880 = arith.mulf %697, %839 : vector<8x128xf32>
    %881 = arith.mulf %705, %844 : vector<8x128xf32>
    %882 = arith.subf %880, %881 : vector<8x128xf32>
    %cst_213 = arith.constant 0.833333313 : f32
    %883 = vector.broadcast %cst_213 : f32 to vector<8x128xf32>
    %884 = arith.mulf %882, %883 : vector<8x128xf32>
    %885 = arith.mulf %699, %844 : vector<8x128xf32>
    %886 = arith.mulf %707, %849 : vector<8x128xf32>
    %887 = arith.subf %885, %886 : vector<8x128xf32>
    %cst_214 = arith.constant 0.833333313 : f32
    %888 = vector.broadcast %cst_214 : f32 to vector<8x128xf32>
    %889 = arith.mulf %887, %888 : vector<8x128xf32>
    %890 = arith.mulf %701, %849 : vector<8x128xf32>
    %891 = arith.mulf %709, %854 : vector<8x128xf32>
    %892 = arith.subf %890, %891 : vector<8x128xf32>
    %cst_215 = arith.constant 0.833333313 : f32
    %893 = vector.broadcast %cst_215 : f32 to vector<8x128xf32>
    %894 = arith.mulf %892, %893 : vector<8x128xf32>
    %895 = arith.mulf %703, %854 : vector<8x128xf32>
    %896 = arith.mulf %711, %859 : vector<8x128xf32>
    %897 = arith.subf %895, %896 : vector<8x128xf32>
    %cst_216 = arith.constant 0.833333313 : f32
    %898 = vector.broadcast %cst_216 : f32 to vector<8x128xf32>
    %899 = arith.mulf %897, %898 : vector<8x128xf32>
    %900 = arith.mulf %705, %859 : vector<8x128xf32>
    %901 = arith.mulf %713, %864 : vector<8x128xf32>
    %902 = arith.subf %900, %901 : vector<8x128xf32>
    %cst_217 = arith.constant 0.833333313 : f32
    %903 = vector.broadcast %cst_217 : f32 to vector<8x128xf32>
    %904 = arith.mulf %902, %903 : vector<8x128xf32>
    %905 = arith.mulf %707, %864 : vector<8x128xf32>
    %906 = arith.mulf %715, %869 : vector<8x128xf32>
    %907 = arith.subf %905, %906 : vector<8x128xf32>
    %cst_218 = arith.constant 0.833333313 : f32
    %908 = vector.broadcast %cst_218 : f32 to vector<8x128xf32>
    %909 = arith.mulf %907, %908 : vector<8x128xf32>
    %910 = tpu.concatenate %691, %874, %879, %884, %889, %894, %899, %904, %909 in 1 : vector<8x128xf32>, vector<8x128xf32>, vector<8x128xf32>, vector<8x128xf32>, vector<8x128xf32>, vector<8x128xf32>, vector<8x128xf32>, vector<8x128xf32>, vector<8x128xf32> -> vector<8x1152xf32>
    %911 = arith.truncf %910 : vector<8x1152xf32> to vector<8x1152xbf16>
    %cst_219 = arith.constant dense<0.000000e+00> : vector<8x128xf32>
    %912 = tpu.matmul %911, %685, %cst_219 {dimension_numbers = #tpu.dot_dimension_numbers<[1], [0], [0], [1], [0, 0, 1, 1], [], []>} : vector<8x1152xbf16>, vector<1152x128xbf16>, vector<8x128xf32> -> vector<8x128xf32>
    %c0_220 = arith.constant 0 : index
    %c0_221 = arith.constant 0 : index
    %913 = vector.load %arg6[%c0_220, %c0_221] : memref<8x128xf32, #tpu.memory_space<vmem>>, vector<8x128xf32>
    tpu.vector_store %arg6[%c0_220, %c0_221], %912 {strides = array<i32>} : memref<8x128xf32, #tpu.memory_space<vmem>>, vector<8x128xf32>,
    return
  }
  func.func @transform_0(%arg0: i32) -> (i32, i32) {
    %c0_i32 = arith.constant 0 : i32
    %c0_i32_0 = arith.constant 0 : i32
    return %arg0, %c0_i32 : i32, i32
  }
  func.func @transform_1(%arg0: i32) -> (i32, i32) {
    %c0_i32 = arith.constant 0 : i32
    %c0_i32_0 = arith.constant 0 : i32
    %c0_i32_1 = arith.constant 0 : i32
    return %c0_i32, %c0_i32_0 : i32, i32
  }
  func.func @transform_2(%arg0: i32) -> (i32, i32) {
    %c0_i32 = arith.constant 0 : i32
    %c0_i32_0 = arith.constant 0 : i32
    %c0_i32_1 = arith.constant 0 : i32
    return %c0_i32, %c0_i32_0 : i32, i32
  }
  func.func @transform_3(%arg0: i32) -> (i32, i32) {
    %c0_i32 = arith.constant 0 : i32
    %c0_i32_0 = arith.constant 0 : i32
    %c0_i32_1 = arith.constant 0 : i32
    return %c0_i32, %c0_i32_0 : i32, i32
  }
  func.func @transform_4(%arg0: i32) -> (i32, i32) {
    %c0_i32 = arith.constant 0 : i32
    %c0_i32_0 = arith.constant 0 : i32
    %c0_i32_1 = arith.constant 0 : i32
    return %c0_i32, %c0_i32_0 : i32, i32
  }
  func.func @transform_5(%arg0: i32) -> (i32, i32) {
    %c0_i32 = arith.constant 0 : i32
    %c0_i32_0 = arith.constant 0 : i32
    return %arg0, %c0_i32 : i32, i32
  }
}

</mosaic_0001>

<llo_original>
// kernel: kqnetwork_forward.1
$region0: #{kqnetwork_forward.1}
  #allocation0 [shape = 'u32[]', space=smem, size = 0x4, offset = 0x4, fixed_abs, tag = 'smem constant byte address 0x4 - core index']
  #allocation1 [shape = 'u32[144,128]{1,0:T(1,128)}', space=vmem, size = 0x12000, scoped, tag = 'internal scratch']
  %s0 = inlined_call_operand.vmem [shape: f32[8,128], index: 0, kind: input, shape index: {}]
  %s1 = inlined_call_operand.hbm [shape: bf16[1152,128], index: 1, kind: input, shape index: {}]
  %s2 = inlined_call_operand.hbm [shape: bf16[1152,128], index: 2, kind: input, shape index: {}]
  %s3 = inlined_call_operand.hbm [shape: bf16[1152,128], index: 3, kind: input, shape index: {}]
  %s4 = inlined_call_operand.hbm [shape: bf16[1152,128], index: 4, kind: input, shape index: {}]
  %s5 = inlined_call_operand.hbm [shape: f32[8,128], index: 5, kind: output, shape index: {}]
  %s6 = sld [smem:[#allocation0]]
  $region46: #{kqnetwork_forward.1} parent=0
    _
  %s8 = ssub.s32 1, %s6
  %s9 = scalar_select 0, %s8, %s6
  $region1: #{kqnetwork_forward.1} parent=0
    #allocation2 [shape = 'u8[294912]{0}', space=vmem, size = 0x48000, scoped, tag = 'input window, operand 1, single buffered']
    #allocation3 [shape = 's32[1]{0}', space=sflag, size = 0x4, scoped, tag = 'scoped memory for kqnetwork_forward.1']
    #allocation4 [shape = 's32[1]{0}', space=sflag, size = 0x4, scoped, tag = 'scoped memory for kqnetwork_forward.1']
    #allocation5 [shape = 'u8[294912]{0}', space=vmem, size = 0x48000, scoped, tag = 'input window, operand 2, single buffered']
    #allocation6 [shape = 's32[1]{0}', space=sflag, size = 0x4, scoped, tag = 'scoped memory for kqnetwork_forward.1']
    #allocation7 [shape = 'u8[294912]{0}', space=vmem, size = 0x48000, scoped, tag = 'input window, operand 3, single buffered']
    #allocation8 [shape = 'u8[294912]{0}', space=vmem, size = 0x48000, scoped, tag = 'input window, operand 4, single buffered']
    #allocation9 [shape = 's32[1]{0}', space=sflag, size = 0x4, scoped, tag = 'scoped memory for kqnetwork_forward.1']
    #allocation10 [shape = 'u8[4096]{0}', space=vmem, size = 0x1000, scoped, tag = 'output window, operand 0, single buffered']
    %10 = vsyncpa [#allocation3], 0
    %11 = vsyncpa [#allocation6], 0
    %12 = vsyncpa [#allocation9], 0
    %13 = vsyncpa [#allocation4], 0
    // Predicated region
    $region2: #{kqnetwork_forward.1} parent=1 // pred_check
      _
    $region3: #{kqnetwork_forward.1} parent=1 // pred_check_branch
      %15 = sbr.rel (0) target = $region5
    $region4: #{kqnetwork_forward.1} parent=1 // pred_region
      _
    $region5: #{kqnetwork_forward.1} parent=1 // pred_fallthru
      _
    // Predicated region
    $region6: #{kqnetwork_forward.1} parent=1 // pred_check
      _
    $region7: #{kqnetwork_forward.1} parent=1 // pred_check_branch
      %17 = sbr.rel (0) target = $region9
    $region8: #{kqnetwork_forward.1} parent=1 // pred_region
      %s19 = ssub.s32 9216, 9216
      %20 = vsyncadd [#allocation3], %s19
      %s21 = sshll.u32 [#allocation2], 4
      %s22 = int_to_ptr.vmem [resolvable:$true] %s21
      %27 = dma.hbm_to_vmem [thread:$0]  %s1, 9216, %s22, [#allocation3], 64, 64, 4
    $region9: #{kqnetwork_forward.1} parent=1 // pred_fallthru
      _
    // Predicated region
    $region10: #{kqnetwork_forward.1} parent=1 // pred_check
      _
    $region11: #{kqnetwork_forward.1} parent=1 // pred_check_branch
      %29 = sbr.rel (0) target = $region13
    $region12: #{kqnetwork_forward.1} parent=1 // pred_region
      %s31 = ssub.s32 9216, 9216
      %32 = vsyncadd [#allocation6], %s31
      %s33 = sshll.u32 [#allocation5], 4
      %s34 = int_to_ptr.vmem [resolvable:$true] %s33
      %39 = dma.hbm_to_vmem [thread:$0]  %s2, 9216, %s34, [#allocation6], 64, 64, 4
    $region13: #{kqnetwork_forward.1} parent=1 // pred_fallthru
      _
    // Predicated region
    $region14: #{kqnetwork_forward.1} parent=1 // pred_check
      _
    $region15: #{kqnetwork_forward.1} parent=1 // pred_check_branch
      %41 = sbr.rel (0) target = $region17
    $region16: #{kqnetwork_forward.1} parent=1 // pred_region
      %s43 = ssub.s32 9216, 9216
      %44 = vsyncadd [#allocation6], %s43
      %s45 = sshll.u32 [#allocation7], 4
      %s46 = int_to_ptr.vmem [resolvable:$true] %s45
      %51 = dma.hbm_to_vmem [thread:$0]  %s3, 9216, %s46, [#allocation6], 64, 64, 4
    $region17: #{kqnetwork_forward.1} parent=1 // pred_fallthru
      _
    // Predicated region
    $region18: #{kqnetwork_forward.1} parent=1 // pred_check
      _
    $region19: #{kqnetwork_forward.1} parent=1 // pred_check_branch
      %53 = sbr.rel (0) target = $region21
    $region20: #{kqnetwork_forward.1} parent=1 // pred_region
      %s55 = ssub.s32 9216, 9216
      %56 = vsyncadd [#allocation9], %s55
      %s57 = sshll.u32 [#allocation8], 4
      %s58 = int_to_ptr.vmem [resolvable:$true] %s57
      %63 = dma.hbm_to_vmem [thread:$0]  %s4, 9216, %s58, [#allocation9], 64, 64, 4
    $region21: #{kqnetwork_forward.1} parent=1 // pred_fallthru
      _
    // Predicated region
    $region22: #{kqnetwork_forward.1} parent=1 // pred_check
      _
    $region23: #{kqnetwork_forward.1} parent=1 // pred_check_branch
      %65 = sbr.rel (0) target = $region25
    $region24: #{kqnetwork_forward.1} parent=1 // pred_region
      %66 = dma.done [#allocation3], 9216
    $region25: #{kqnetwork_forward.1} parent=1 // pred_fallthru
      _
    // Predicated region
    $region26: #{kqnetwork_forward.1} parent=1 // pred_check
      _
    $region27: #{kqnetwork_forward.1} parent=1 // pred_check_branch
      %68 = sbr.rel (0) target = $region29
    $region28: #{kqnetwork_forward.1} parent=1 // pred_region
      %69 = dma.done [#allocation6], 9216
    $region29: #{kqnetwork_forward.1} parent=1 // pred_fallthru
      _
    // Predicated region
    $region30: #{kqnetwork_forward.1} parent=1 // pred_check
      _
    $region31: #{kqnetwork_forward.1} parent=1 // pred_check_branch
      %71 = sbr.rel (0) target = $region33
    $region32: #{kqnetwork_forward.1} parent=1 // pred_region
      %72 = dma.done [#allocation6], 9216
    $region33: #{kqnetwork_forward.1} parent=1 // pred_fallthru
      _
    // Predicated region
    $region34: #{kqnetwork_forward.1} parent=1 // pred_check
      _
    $region35: #{kqnetwork_forward.1} parent=1 // pred_check_branch
      %74 = sbr.rel (0) target = $region37
    $region36: #{kqnetwork_forward.1} parent=1 // pred_region
      %75 = dma.done [#allocation9], 9216
    $region37: #{kqnetwork_forward.1} parent=1 // pred_fallthru
      _
    %v77 = vld [vmem:[%s0] sm:$0xff]
    %v78 = vld [vmem:[#allocation2] sm:$0xf]
    %v79 = vld [vmem:[#allocation2 + $0x4] sm:$0xf]
    %v80 = vld [vmem:[#allocation2 + $0x8] sm:$0xf]
    %v81 = vld [vmem:[#allocation2 + $0xc] sm:$0xf]
    %v82 = vld [vmem:[#allocation2 + $0x10] sm:$0xf]
    %v83 = vld [vmem:[#allocation2 + $0x14] sm:$0xf]
    %v84 = vld [vmem:[#allocation2 + $0x18] sm:$0xf]
    %v85 = vld [vmem:[#allocation2 + $0x1c] sm:$0xf]
    %v86 = vld [vmem:[#allocation2 + $0x20] sm:$0xf]
    %v87 = vld [vmem:[#allocation2 + $0x24] sm:$0xf]
    %v88 = vld [vmem:[#allocation2 + $0x28] sm:$0xf]
    %v89 = vld [vmem:[#allocation2 + $0x2c] sm:$0xf]
    %v90 = vld [vmem:[#allocation2 + $0x30] sm:$0xf]
    %v91 = vld [vmem:[#allocation2 + $0x34] sm:$0xf]
    %v92 = vld [vmem:[#allocation2 + $0x38] sm:$0xf]
    %v93 = vld [vmem:[#allocation2 + $0x3c] sm:$0xf]
    %v94 = vld [vmem:[#allocation2 + $0x40] sm:$0xf]
    %v95 = vld [vmem:[#allocation2 + $0x44] sm:$0xf]
    %v96 = vld [vmem:[#allocation2 + $0x48] sm:$0xf]
    %v97 = vld [vmem:[#allocation2 + $0x4c] sm:$0xf]
    %v98 = vld [vmem:[#allocation2 + $0x50] sm:$0xf]
    %v99 = vld [vmem:[#allocation2 + $0x54] sm:$0xf]
    %v100 = vld [vmem:[#allocation2 + $0x58] sm:$0xf]
    %v101 = vld [vmem:[#allocation2 + $0x5c] sm:$0xf]
    %v102 = vld [vmem:[#allocation2 + $0x60] sm:$0xf]
    %v103 = vld [vmem:[#allocation2 + $0x64] sm:$0xf]
    %v104 = vld [vmem:[#allocation2 + $0x68] sm:$0xf]
    %v105 = vld [vmem:[#allocation2 + $0x6c] sm:$0xf]
    %v106 = vld [vmem:[#allocation2 + $0x70] sm:$0xf]
    %v107 = vld [vmem:[#allocation2 + $0x74] sm:$0xf]
    %v108 = vld [vmem:[#allocation2 + $0x78] sm:$0xf]
    %v109 = vld [vmem:[#allocation2 + $0x7c] sm:$0xf]
    %v110 = vld [vmem:[#allocation2 + $0x80] sm:$0xf]
    %v111 = vld [vmem:[#allocation2 + $0x84] sm:$0xf]
    %v112 = vld [vmem:[#allocation2 + $0x88] sm:$0xf]
    %v113 = vld [vmem:[#allocation2 + $0x8c] sm:$0xf]
    %v114 = vld [vmem:[#allocation2 + $0x90] sm:$0xf]
    %v115 = vld [vmem:[#allocation2 + $0x94] sm:$0xf]
    %v116 = vld [vmem:[#allocation2 + $0x98] sm:$0xf]
    %v117 = vld [vmem:[#allocation2 + $0x9c] sm:$0xf]
    %v118 = vld [vmem:[#allocation2 + $0xa0] sm:$0xf]
    %v119 = vld [vmem:[#allocation2 + $0xa4] sm:$0xf]
    %v120 = vld [vmem:[#allocation2 + $0xa8] sm:$0xf]
    %v121 = vld [vmem:[#allocation2 + $0xac] sm:$0xf]
    %v122 = vld [vmem:[#allocation2 + $0xb0] sm:$0xf]
    %v123 = vld [vmem:[#allocation2 + $0xb4] sm:$0xf]
    %v124 = vld [vmem:[#allocation2 + $0xb8] sm:$0xf]
    %v125 = vld [vmem:[#allocation2 + $0xbc] sm:$0xf]
    %v126 = vld [vmem:[#allocation2 + $0xc0] sm:$0xf]
    %v127 = vld [vmem:[#allocation2 + $0xc4] sm:$0xf]
    %v128 = vld [vmem:[#allocation2 + $0xc8] sm:$0xf]
    %v129 = vld [vmem:[#allocation2 + $0xcc] sm:$0xf]
    %v130 = vld [vmem:[#allocation2 + $0xd0] sm:$0xf]
    %v131 = vld [vmem:[#allocation2 + $0xd4] sm:$0xf]
    %v132 = vld [vmem:[#allocation2 + $0xd8] sm:$0xf]
    %v133 = vld [vmem:[#allocation2 + $0xdc] sm:$0xf]
    %v134 = vld [vmem:[#allocation2 + $0xe0] sm:$0xf]
    %v135 = vld [vmem:[#allocation2 + $0xe4] sm:$0xf]
    %v136 = vld [vmem:[#allocation2 + $0xe8] sm:$0xf]
    %v137 = vld [vmem:[#allocation2 + $0xec] sm:$0xf]
    %v138 = vld [vmem:[#allocation2 + $0xf0] sm:$0xf]
    %v139 = vld [vmem:[#allocation2 + $0xf4] sm:$0xf]
    %v140 = vld [vmem:[#allocation2 + $0xf8] sm:$0xf]
    %v141 = vld [vmem:[#allocation2 + $0xfc] sm:$0xf]
    %v142 = vld [vmem:[#allocation2 + $0x100] sm:$0xf]
    %v143 = vld [vmem:[#allocation2 + $0x104] sm:$0xf]
    %v144 = vld [vmem:[#allocation2 + $0x108] sm:$0xf]
    %v145 = vld [vmem:[#allocation2 + $0x10c] sm:$0xf]
    %v146 = vld [vmem:[#allocation2 + $0x110] sm:$0xf]
    %v147 = vld [vmem:[#allocation2 + $0x114] sm:$0xf]
    %v148 = vld [vmem:[#allocation2 + $0x118] sm:$0xf]
    %v149 = vld [vmem:[#allocation2 + $0x11c] sm:$0xf]
    %v150 = vld [vmem:[#allocation2 + $0x120] sm:$0xf]
    %v151 = vld [vmem:[#allocation2 + $0x124] sm:$0xf]
    %v152 = vld [vmem:[#allocation2 + $0x128] sm:$0xf]
    %v153 = vld [vmem:[#allocation2 + $0x12c] sm:$0xf]
    %v154 = vld [vmem:[#allocation2 + $0x130] sm:$0xf]
    %v155 = vld [vmem:[#allocation2 + $0x134] sm:$0xf]
    %v156 = vld [vmem:[#allocation2 + $0x138] sm:$0xf]
    %v157 = vld [vmem:[#allocation2 + $0x13c] sm:$0xf]
    %v158 = vld [vmem:[#allocation2 + $0x140] sm:$0xf]
    %v159 = vld [vmem:[#allocation2 + $0x144] sm:$0xf]
    %v160 = vld [vmem:[#allocation2 + $0x148] sm:$0xf]
    %v161 = vld [vmem:[#allocation2 + $0x14c] sm:$0xf]
    %v162 = vld [vmem:[#allocation2 + $0x150] sm:$0xf]
    %v163 = vld [vmem:[#allocation2 + $0x154] sm:$0xf]
    %v164 = vld [vmem:[#allocation2 + $0x158] sm:$0xf]
    %v165 = vld [vmem:[#allocation2 + $0x15c] sm:$0xf]
    %v166 = vld [vmem:[#allocation2 + $0x160] sm:$0xf]
    %v167 = vld [vmem:[#allocation2 + $0x164] sm:$0xf]
    %v168 = vld [vmem:[#allocation2 + $0x168] sm:$0xf]
    %v169 = vld [vmem:[#allocation2 + $0x16c] sm:$0xf]
    %v170 = vld [vmem:[#allocation2 + $0x170] sm:$0xf]
    %v171 = vld [vmem:[#allocation2 + $0x174] sm:$0xf]
    %v172 = vld [vmem:[#allocation2 + $0x178] sm:$0xf]
    %v173 = vld [vmem:[#allocation2 + $0x17c] sm:$0xf]
    %v174 = vld [vmem:[#allocation2 + $0x180] sm:$0xf]
    %v175 = vld [vmem:[#allocation2 + $0x184] sm:$0xf]
    %v176 = vld [vmem:[#allocation2 + $0x188] sm:$0xf]
    %v177 = vld [vmem:[#allocation2 + $0x18c] sm:$0xf]
    %v178 = vld [vmem:[#allocation2 + $0x190] sm:$0xf]
    %v179 = vld [vmem:[#allocation2 + $0x194] sm:$0xf]
    %v180 = vld [vmem:[#allocation2 + $0x198] sm:$0xf]
    %v181 = vld [vmem:[#allocation2 + $0x19c] sm:$0xf]
    %v182 = vld [vmem:[#allocation2 + $0x1a0] sm:$0xf]
    %v183 = vld [vmem:[#allocation2 + $0x1a4] sm:$0xf]
    %v184 = vld [vmem:[#allocation2 + $0x1a8] sm:$0xf]
    %v185 = vld [vmem:[#allocation2 + $0x1ac] sm:$0xf]
    %v186 = vld [vmem:[#allocation2 + $0x1b0] sm:$0xf]
    %v187 = vld [vmem:[#allocation2 + $0x1b4] sm:$0xf]
    %v188 = vld [vmem:[#allocation2 + $0x1b8] sm:$0xf]
    %v189 = vld [vmem:[#allocation2 + $0x1bc] sm:$0xf]
    %v190 = vld [vmem:[#allocation2 + $0x1c0] sm:$0xf]
    %v191 = vld [vmem:[#allocation2 + $0x1c4] sm:$0xf]
    %v192 = vld [vmem:[#allocation2 + $0x1c8] sm:$0xf]
    %v193 = vld [vmem:[#allocation2 + $0x1cc] sm:$0xf]
    %v194 = vld [vmem:[#allocation2 + $0x1d0] sm:$0xf]
    %v195 = vld [vmem:[#allocation2 + $0x1d4] sm:$0xf]
    %v196 = vld [vmem:[#allocation2 + $0x1d8] sm:$0xf]
    %v197 = vld [vmem:[#allocation2 + $0x1dc] sm:$0xf]
    %v198 = vld [vmem:[#allocation2 + $0x1e0] sm:$0xf]
    %v199 = vld [vmem:[#allocation2 + $0x1e4] sm:$0xf]
    %v200 = vld [vmem:[#allocation2 + $0x1e8] sm:$0xf]
    %v201 = vld [vmem:[#allocation2 + $0x1ec] sm:$0xf]
    %v202 = vld [vmem:[#allocation2 + $0x1f0] sm:$0xf]
    %v203 = vld [vmem:[#allocation2 + $0x1f4] sm:$0xf]
    %v204 = vld [vmem:[#allocation2 + $0x1f8] sm:$0xf]
    %v205 = vld [vmem:[#allocation2 + $0x1fc] sm:$0xf]
    %v206 = vld [vmem:[#allocation2 + $0x200] sm:$0xf]
    %v207 = vld [vmem:[#allocation2 + $0x204] sm:$0xf]
    %v208 = vld [vmem:[#allocation2 + $0x208] sm:$0xf]
    %v209 = vld [vmem:[#allocation2 + $0x20c] sm:$0xf]
    %v210 = vld [vmem:[#allocation2 + $0x210] sm:$0xf]
    %v211 = vld [vmem:[#allocation2 + $0x214] sm:$0xf]
    %v212 = vld [vmem:[#allocation2 + $0x218] sm:$0xf]
    %v213 = vld [vmem:[#allocation2 + $0x21c] sm:$0xf]
    %v214 = vld [vmem:[#allocation2 + $0x220] sm:$0xf]
    %v215 = vld [vmem:[#allocation2 + $0x224] sm:$0xf]
    %v216 = vld [vmem:[#allocation2 + $0x228] sm:$0xf]
    %v217 = vld [vmem:[#allocation2 + $0x22c] sm:$0xf]
    %v218 = vld [vmem:[#allocation2 + $0x230] sm:$0xf]
    %v219 = vld [vmem:[#allocation2 + $0x234] sm:$0xf]
    %v220 = vld [vmem:[#allocation2 + $0x238] sm:$0xf]
    %v221 = vld [vmem:[#allocation2 + $0x23c] sm:$0xf]
    %v222 = vxor.u32 %v77, 2147483648
    %v223 = vmul.f32 %v222, 1.442695
    %v224 = vpow.pop %v223
    %v225 = vadd.f32 %v224, 1.0
    %v226 = vrcp.pop %v225
    %v227 = vmul.f32 1.0, %v226
    %v228 = vmul.f32 %v77, %v227
    %v229 = vsub.f32 %v77, -2.2
    %v230 = vsub.f32 %v77, -1.8
    %v231 = vsub.f32 %v77, -1.4
    %v232 = vsub.f32 %v77, -1.0
    %v233 = vsub.f32 %v77, -0.6
    %v234 = vsub.f32 %v77, -0.2
    %v235 = vsub.f32 %v77, 0.2
    %v236 = vsub.f32 %v77, 0.6
    %v237 = vsub.f32 %v77, 1.0
    %v238 = vsub.f32 %v77, 1.4
    %v239 = vsub.f32 %v77, 1.8
    %v240 = vsub.f32 %v77, 2.2
    %vm241 = vcmp.ge.f32.partialorder %v77, -2.2
    %v242 = vsel %vm241, 1, 0
    %v243 = vcvt.s32.f32 %v242
    %vm244 = vcmp.ge.f32.partialorder %v77, -1.8
    %v245 = vsel %vm244, 1, 0
    %v246 = vcvt.s32.f32 %v245
    %vm247 = vcmp.ge.f32.partialorder %v77, -1.4
    %v248 = vsel %vm247, 1, 0
    %v249 = vcvt.s32.f32 %v248
    %vm250 = vcmp.ge.f32.partialorder %v77, -1.0
    %v251 = vsel %vm250, 1, 0
    %v252 = vcvt.s32.f32 %v251
    %vm253 = vcmp.ge.f32.partialorder %v77, -0.6
    %v254 = vsel %vm253, 1, 0
    %v255 = vcvt.s32.f32 %v254
    %vm256 = vcmp.ge.f32.partialorder %v77, -0.2
    %v257 = vsel %vm256, 1, 0
    %v258 = vcvt.s32.f32 %v257
    %vm259 = vcmp.ge.f32.partialorder %v77, 0.2
    %v260 = vsel %vm259, 1, 0
    %v261 = vcvt.s32.f32 %v260
    %vm262 = vcmp.ge.f32.partialorder %v77, 0.6
    %v263 = vsel %vm262, 1, 0
    %v264 = vcvt.s32.f32 %v263
    %vm265 = vcmp.ge.f32.partialorder %v77, 1.0
    %v266 = vsel %vm265, 1, 0
    %v267 = vcvt.s32.f32 %v266
    %vm268 = vcmp.ge.f32.partialorder %v77, 1.4
    %v269 = vsel %vm268, 1, 0
    %v270 = vcvt.s32.f32 %v269
    %vm271 = vcmp.ge.f32.partialorder %v77, 1.8
    %v272 = vsel %vm271, 1, 0
    %v273 = vcvt.s32.f32 %v272
    %vm274 = vcmp.ge.f32.partialorder %v77, 2.2
    %v275 = vsel %vm274, 1, 0
    %v276 = vcvt.s32.f32 %v275
    %v277 = vsub.f32 %v243, %v246
    %v278 = vsub.f32 %v246, %v249
    %v279 = vsub.f32 %v249, %v252
    %v280 = vsub.f32 %v252, %v255
    %v281 = vsub.f32 %v255, %v258
    %v282 = vsub.f32 %v258, %v261
    %v283 = vsub.f32 %v261, %v264
    %v284 = vsub.f32 %v264, %v267
    %v285 = vsub.f32 %v267, %v270
    %v286 = vsub.f32 %v270, %v273
    %v287 = vsub.f32 %v273, %v276
    %v288 = vmul.f32 %v229, %v277
    %v289 = vmul.f32 %v231, %v278
    %v290 = vsub.f32 %v288, %v289
    %v291 = vmul.f32 %v290, 2.5
    %v292 = vmul.f32 %v230, %v278
    %v293 = vmul.f32 %v232, %v279
    %v294 = vsub.f32 %v292, %v293
    %v295 = vmul.f32 %v294, 2.5
    %v296 = vmul.f32 %v231, %v279
    %v297 = vmul.f32 %v233, %v280
    %v298 = vsub.f32 %v296, %v297
    %v299 = vmul.f32 %v298, 2.5
    %v300 = vmul.f32 %v232, %v280
    %v301 = vmul.f32 %v234, %v281
    %v302 = vsub.f32 %v300, %v301
    %v303 = vmul.f32 %v302, 2.5
    %v304 = vmul.f32 %v233, %v281
    %v305 = vmul.f32 %v235, %v282
    %v306 = vsub.f32 %v304, %v305
    %v307 = vmul.f32 %v306, 2.5
    %v308 = vmul.f32 %v234, %v282
    %v309 = vmul.f32 %v236, %v283
    %v310 = vsub.f32 %v308, %v309
    %v311 = vmul.f32 %v310, 2.5
    %v312 = vmul.f32 %v235, %v283
    %v313 = vmul.f32 %v237, %v284
    %v314 = vsub.f32 %v312, %v313
    %v315 = vmul.f32 %v314, 2.5
    %v316 = vmul.f32 %v236, %v284
    %v317 = vmul.f32 %v238, %v285
    %v318 = vsub.f32 %v316, %v317
    %v319 = vmul.f32 %v318, 2.5
    %v320 = vmul.f32 %v237, %v285
    %v321 = vmul.f32 %v239, %v286
    %v322 = vsub.f32 %v320, %v321
    %v323 = vmul.f32 %v322, 2.5
    %v324 = vmul.f32 %v238, %v286
    %v325 = vmul.f32 %v240, %v287
    %v326 = vsub.f32 %v324, %v325
    %v327 = vmul.f32 %v326, 2.5
    %v328 = vmul.f32 %v229, %v291
    %v329 = vmul.f32 %v232, %v295
    %v330 = vsub.f32 %v328, %v329
    %v331 = vmul.f32 %v330, 1.25
    %v332 = vmul.f32 %v230, %v295
    %v333 = vmul.f32 %v233, %v299
    %v334 = vsub.f32 %v332, %v333
    %v335 = vmul.f32 %v334, 1.25
    %v336 = vmul.f32 %v231, %v299
    %v337 = vmul.f32 %v234, %v303
    %v338 = vsub.f32 %v336, %v337
    %v339 = vmul.f32 %v338, 1.25
    %v340 = vmul.f32 %v232, %v303
    %v341 = vmul.f32 %v235, %v307
    %v342 = vsub.f32 %v340, %v341
    %v343 = vmul.f32 %v342, 1.25
    %v344 = vmul.f32 %v233, %v307
    %v345 = vmul.f32 %v236, %v311
    %v346 = vsub.f32 %v344, %v345
    %v347 = vmul.f32 %v346, 1.25
    %v348 = vmul.f32 %v234, %v311
    %v349 = vmul.f32 %v237, %v315
    %v350 = vsub.f32 %v348, %v349
    %v351 = vmul.f32 %v350, 1.25
    %v352 = vmul.f32 %v235, %v315
    %v353 = vmul.f32 %v238, %v319
    %v354 = vsub.f32 %v352, %v353
    %v355 = vmul.f32 %v354, 1.25
    %v356 = vmul.f32 %v236, %v319
    %v357 = vmul.f32 %v239, %v323
    %v358 = vsub.f32 %v356, %v357
    %v359 = vmul.f32 %v358, 1.25
    %v360 = vmul.f32 %v237, %v323
    %v361 = vmul.f32 %v240, %v327
    %v362 = vsub.f32 %v360, %v361
    %v363 = vmul.f32 %v362, 1.25
    %v364 = vmul.f32 %v229, %v331
    %v365 = vmul.f32 %v233, %v335
    %v366 = vsub.f32 %v364, %v365
    %v367 = vmul.f32 %v366, 0.8333333
    %v368 = vmul.f32 %v230, %v335
    %v369 = vmul.f32 %v234, %v339
    %v370 = vsub.f32 %v368, %v369
    %v371 = vmul.f32 %v370, 0.8333333
    %v372 = vmul.f32 %v231, %v339
    %v373 = vmul.f32 %v235, %v343
    %v374 = vsub.f32 %v372, %v373
    %v375 = vmul.f32 %v374, 0.8333333
    %v376 = vmul.f32 %v232, %v343
    %v377 = vmul.f32 %v236, %v347
    %v378 = vsub.f32 %v376, %v377
    %v379 = vmul.f32 %v378, 0.8333333
    %v380 = vmul.f32 %v233, %v347
    %v381 = vmul.f32 %v237, %v351
    %v382 = vsub.f32 %v380, %v381
    %v383 = vmul.f32 %v382, 0.8333333
    %v384 = vmul.f32 %v234, %v351
    %v385 = vmul.f32 %v238, %v355
    %v386 = vsub.f32 %v384, %v385
    %v387 = vmul.f32 %v386, 0.8333333
    %v388 = vmul.f32 %v235, %v355
    %v389 = vmul.f32 %v239, %v359
    %v390 = vsub.f32 %v388, %v389
    %v391 = vmul.f32 %v390, 0.8333333
    %v392 = vmul.f32 %v236, %v359
    %v393 = vmul.f32 %v240, %v363
    %v394 = vsub.f32 %v392, %v393
    %v395 = vmul.f32 %v394, 0.8333333
    %v396 = vpack.c.bf16 %v228, %v228
    %v397 = vpack.c.bf16 %v367, %v367
    %v398 = vpack.c.bf16 %v371, %v371
    %v399 = vpack.c.bf16 %v375, %v375
    %v400 = vpack.c.bf16 %v379, %v379
    %v401 = vpack.c.bf16 %v383, %v383
    %v402 = vpack.c.bf16 %v387, %v387
    %v403 = vpack.c.bf16 %v391, %v391
    %v404 = vpack.c.bf16 %v395, %v395
    %v549 = vunpack.c.l.b16 %v78
    %v550 = vunpack.c.l.b16 %v79
    %v551 = vunpack.c.l.b16 %v80
    %v552 = vunpack.c.l.b16 %v81
    %v553 = vunpack.c.l.b16 %v82
    %v554 = vunpack.c.l.b16 %v83
    %v555 = vunpack.c.l.b16 %v84
    %v556 = vunpack.c.l.b16 %v85
    %v557 = vunpack.c.l.b16 %v86
    %v558 = vunpack.c.l.b16 %v87
    %v559 = vunpack.c.l.b16 %v88
    %v560 = vunpack.c.l.b16 %v89
    %v561 = vunpack.c.l.b16 %v90
    %v562 = vunpack.c.l.b16 %v91
    %v563 = vunpack.c.l.b16 %v92
    %v564 = vunpack.c.l.b16 %v93
    %v565 = vunpack.c.l.b16 %v94
    %v566 = vunpack.c.l.b16 %v95
    %v567 = vunpack.c.l.b16 %v96
    %v568 = vunpack.c.l.b16 %v97
    %v569 = vunpack.c.l.b16 %v98
    %v570 = vunpack.c.l.b16 %v99
    %v571 = vunpack.c.l.b16 %v100
    %v572 = vunpack.c.l.b16 %v101
    %v573 = vunpack.c.l.b16 %v102
    %v574 = vunpack.c.l.b16 %v103
    %v575 = vunpack.c.l.b16 %v104
    %v576 = vunpack.c.l.b16 %v105
    %v577 = vunpack.c.l.b16 %v106
    %v578 = vunpack.c.l.b16 %v107
    %v579 = vunpack.c.l.b16 %v108
    %v580 = vunpack.c.l.b16 %v109
    %v581 = vunpack.c.l.b16 %v110
    %v582 = vunpack.c.l.b16 %v111
    %v583 = vunpack.c.l.b16 %v112
    %v584 = vunpack.c.l.b16 %v113
    %v585 = vunpack.c.l.b16 %v114
    %v586 = vunpack.c.l.b16 %v115
    %v587 = vunpack.c.l.b16 %v116
    %v588 = vunpack.c.l.b16 %v117
    %v589 = vunpack.c.l.b16 %v118
    %v590 = vunpack.c.l.b16 %v119
    %v591 = vunpack.c.l.b16 %v120
    %v592 = vunpack.c.l.b16 %v121
    %v593 = vunpack.c.l.b16 %v122
    %v594 = vunpack.c.l.b16 %v123
    %v595 = vunpack.c.l.b16 %v124
    %v596 = vunpack.c.l.b16 %v125
    %v597 = vunpack.c.l.b16 %v126
    %v598 = vunpack.c.l.b16 %v127
    %v599 = vunpack.c.l.b16 %v128
    %v600 = vunpack.c.l.b16 %v129
    %v601 = vunpack.c.l.b16 %v130
    %v602 = vunpack.c.l.b16 %v131
    %v603 = vunpack.c.l.b16 %v132
    %v604 = vunpack.c.l.b16 %v133
    %v605 = vunpack.c.l.b16 %v134
    %v606 = vunpack.c.l.b16 %v135
    %v607 = vunpack.c.l.b16 %v136
    %v608 = vunpack.c.l.b16 %v137
    %v609 = vunpack.c.l.b16 %v138
    %v610 = vunpack.c.l.b16 %v139
    %v611 = vunpack.c.l.b16 %v140
    %v612 = vunpack.c.l.b16 %v141
    %v613 = vunpack.c.l.b16 %v142
    %v614 = vunpack.c.l.b16 %v143
    %v615 = vunpack.c.l.b16 %v144
    %v616 = vunpack.c.l.b16 %v145
    %v617 = vunpack.c.l.b16 %v146
    %v618 = vunpack.c.l.b16 %v147
    %v619 = vunpack.c.l.b16 %v148
    %v620 = vunpack.c.l.b16 %v149
    %v621 = vunpack.c.l.b16 %v150
    %v622 = vunpack.c.l.b16 %v151
    %v623 = vunpack.c.l.b16 %v152
    %v624 = vunpack.c.l.b16 %v153
    %v625 = vunpack.c.l.b16 %v154
    %v626 = vunpack.c.l.b16 %v155
    %v627 = vunpack.c.l.b16 %v156
    %v628 = vunpack.c.l.b16 %v157
    %v629 = vunpack.c.l.b16 %v158
    %v630 = vunpack.c.l.b16 %v159
    %v631 = vunpack.c.l.b16 %v160
    %v632 = vunpack.c.l.b16 %v161
    %v633 = vunpack.c.l.b16 %v162
    %v634 = vunpack.c.l.b16 %v163
    %v635 = vunpack.c.l.b16 %v164
    %v636 = vunpack.c.l.b16 %v165
    %v637 = vunpack.c.l.b16 %v166
    %v638 = vunpack.c.l.b16 %v167
    %v639 = vunpack.c.l.b16 %v168
    %v640 = vunpack.c.l.b16 %v169
    %v641 = vunpack.c.l.b16 %v170
    %v642 = vunpack.c.l.b16 %v171
    %v643 = vunpack.c.l.b16 %v172
    %v644 = vunpack.c.l.b16 %v173
    %v645 = vunpack.c.l.b16 %v174
    %v646 = vunpack.c.l.b16 %v175
    %v647 = vunpack.c.l.b16 %v176
    %v648 = vunpack.c.l.b16 %v177
    %v649 = vunpack.c.l.b16 %v178
    %v650 = vunpack.c.l.b16 %v179
    %v651 = vunpack.c.l.b16 %v180
    %v652 = vunpack.c.l.b16 %v181
    %v653 = vunpack.c.l.b16 %v182
    %v654 = vunpack.c.l.b16 %v183
    %v655 = vunpack.c.l.b16 %v184
    %v656 = vunpack.c.l.b16 %v185
    %v657 = vunpack.c.l.b16 %v186
    %v658 = vunpack.c.l.b16 %v187
    %v659 = vunpack.c.l.b16 %v188
    %v660 = vunpack.c.l.b16 %v189
    %v661 = vunpack.c.l.b16 %v190
    %v662 = vunpack.c.l.b16 %v191
    %v663 = vunpack.c.l.b16 %v192
    %v664 = vunpack.c.l.b16 %v193
    %v665 = vunpack.c.l.b16 %v194
    %v666 = vunpack.c.l.b16 %v195
    %v667 = vunpack.c.l.b16 %v196
    %v668 = vunpack.c.l.b16 %v197
    %v669 = vunpack.c.l.b16 %v198
    %v670 = vunpack.c.l.b16 %v199
    %v671 = vunpack.c.l.b16 %v200
    %v672 = vunpack.c.l.b16 %v201
    %v673 = vunpack.c.l.b16 %v202
    %v674 = vunpack.c.l.b16 %v203
    %v675 = vunpack.c.l.b16 %v204
    %v676 = vunpack.c.l.b16 %v205
    %v677 = vunpack.c.l.b16 %v206
    %v678 = vunpack.c.l.b16 %v207
    %v679 = vunpack.c.l.b16 %v208
    %v680 = vunpack.c.l.b16 %v209
    %v681 = vunpack.c.l.b16 %v210
    %v682 = vunpack.c.l.b16 %v211
    %v683 = vunpack.c.l.b16 %v212
    %v684 = vunpack.c.l.b16 %v213
    %v685 = vunpack.c.l.b16 %v214
    %v686 = vunpack.c.l.b16 %v215
    %v687 = vunpack.c.l.b16 %v216
    %v688 = vunpack.c.l.b16 %v217
    %v689 = vunpack.c.l.b16 %v218
    %v690 = vunpack.c.l.b16 %v219
    %v691 = vunpack.c.l.b16 %v220
    %v692 = vunpack.c.l.b16 %v221
    %v693 = vpack.c.b16 %v550, %v549
    %v694 = vpack.c.b16 %v552, %v551
    %v695 = vpack.c.b16 %v554, %v553
    %v696 = vpack.c.b16 %v556, %v555
    %v697 = vpack.c.b16 %v558, %v557
    %v698 = vpack.c.b16 %v560, %v559
    %v699 = vpack.c.b16 %v562, %v561
    %v700 = vpack.c.b16 %v564, %v563
    %v701 = vpack.c.b16 %v566, %v565
    %v702 = vpack.c.b16 %v568, %v567
    %v703 = vpack.c.b16 %v570, %v569
    %v704 = vpack.c.b16 %v572, %v571
    %v705 = vpack.c.b16 %v574, %v573
    %v706 = vpack.c.b16 %v576, %v575
    %v707 = vpack.c.b16 %v578, %v577
    %v708 = vpack.c.b16 %v580, %v579
    %v709 = vpack.c.b16 %v582, %v581
    %v710 = vpack.c.b16 %v584, %v583
    %v711 = vpack.c.b16 %v586, %v585
    %v712 = vpack.c.b16 %v588, %v587
    %v713 = vpack.c.b16 %v590, %v589
    %v714 = vpack.c.b16 %v592, %v591
    %v715 = vpack.c.b16 %v594, %v593
    %v716 = vpack.c.b16 %v596, %v595
    %v717 = vpack.c.b16 %v598, %v597
    %v718 = vpack.c.b16 %v600, %v599
    %v719 = vpack.c.b16 %v602, %v601
    %v720 = vpack.c.b16 %v604, %v603
    %v721 = vpack.c.b16 %v606, %v605
    %v722 = vpack.c.b16 %v608, %v607
    %v723 = vpack.c.b16 %v610, %v609
    %v724 = vpack.c.b16 %v612, %v611
    %v725 = vpack.c.b16 %v614, %v613
    %v726 = vpack.c.b16 %v616, %v615
    %v727 = vpack.c.b16 %v618, %v617
    %v728 = vpack.c.b16 %v620, %v619
    %v729 = vpack.c.b16 %v622, %v621
    %v730 = vpack.c.b16 %v624, %v623
    %v731 = vpack.c.b16 %v626, %v625
    %v732 = vpack.c.b16 %v628, %v627
    %v733 = vpack.c.b16 %v630, %v629
    %v734 = vpack.c.b16 %v632, %v631
    %v735 = vpack.c.b16 %v634, %v633
    %v736 = vpack.c.b16 %v636, %v635
    %v737 = vpack.c.b16 %v638, %v637
    %v738 = vpack.c.b16 %v640, %v639
    %v739 = vpack.c.b16 %v642, %v641
    %v740 = vpack.c.b16 %v644, %v643
    %v741 = vpack.c.b16 %v646, %v645
    %v742 = vpack.c.b16 %v648, %v647
    %v743 = vpack.c.b16 %v650, %v649
    %v744 = vpack.c.b16 %v652, %v651
    %v745 = vpack.c.b16 %v654, %v653
    %v746 = vpack.c.b16 %v656, %v655
    %v747 = vpack.c.b16 %v658, %v657
    %v748 = vpack.c.b16 %v660, %v659
    %v749 = vpack.c.b16 %v662, %v661
    %v750 = vpack.c.b16 %v664, %v663
    %v751 = vpack.c.b16 %v666, %v665
    %v752 = vpack.c.b16 %v668, %v667
    %v753 = vpack.c.b16 %v670, %v669
    %v754 = vpack.c.b16 %v672, %v671
    %v755 = vpack.c.b16 %v674, %v673
    %v756 = vpack.c.b16 %v676, %v675
    %v757 = vpack.c.b16 %v678, %v677
    %v758 = vpack.c.b16 %v680, %v679
    %v759 = vpack.c.b16 %v682, %v681
    %v760 = vpack.c.b16 %v684, %v683
    %v761 = vpack.c.b16 %v686, %v685
    %v762 = vpack.c.b16 %v688, %v687
    %v763 = vpack.c.b16 %v690, %v689
    %v764 = vpack.c.b16 %v692, %v691
    %837 = vmatprep.subr.bf16.mxu0 0
    %838 = vmatpush1.bf16.msra.mxu0 %v693
    %839 = vmatprep.subr.bf16.mxu0 0
    %840 = vmatpush1.bf16.msra.mxu0 %v694
    %841 = vmatprep.subr.bf16.mxu0 0
    %842 = vmatpush1.bf16.msra.mxu0 %v695
    %843 = vmatprep.subr.bf16.mxu0 0
    %844 = vmatpush1.bf16.msra.mxu0 %v696
    %845 = vmatprep.subr.bf16.mxu0 0
    %846 = vmatpush1.bf16.msra.mxu0 %v697
    %847 = vmatprep.subr.bf16.mxu0 0
    %848 = vmatpush1.bf16.msra.mxu0 %v698
    %849 = vmatprep.subr.bf16.mxu0 0
    %850 = vmatpush1.bf16.msra.mxu0 %v699
    %851 = vmatprep.subr.bf16.mxu0 0
    %852 = vmatpush1.bf16.msra.mxu0 %v700
    %853 = vmatprep.subr.bf16.mxu0 0
    %854 = vmatpush1.bf16.msra.mxu0 %v701
    %855 = vmatprep.subr.bf16.mxu0 0
    %856 = vmatpush1.bf16.msra.mxu0 %v702
    %857 = vmatprep.subr.bf16.mxu0 0
    %858 = vmatpush1.bf16.msra.mxu0 %v703
    %859 = vmatprep.subr.bf16.mxu0 0
    %860 = vmatpush1.bf16.msra.mxu0 %v704
    %861 = vmatprep.subr.bf16.mxu0 0
    %862 = vmatpush1.bf16.msra.mxu0 %v705
    %863 = vmatprep.subr.bf16.mxu0 0
    %864 = vmatpush1.bf16.msra.mxu0 %v706
    %865 = vmatprep.subr.bf16.mxu0 0
    %866 = vmatpush1.bf16.msra.mxu0 %v707
    %867 = vmatprep.subr.bf16.mxu0 0
    %868 = vmatpush1.bf16.msra.mxu0 %v708
    %869 = vmatprep.mubr.bf16.mxu0 %v397
    %870 = vmatmul.mubr.bf16.gmra.mrb[0].mxu0 %v396
    %v871 = vpop.f32.mrb[0].mxu0
    %v872 = vadd.f32 0.0, %v871
    %v873 = vpop.f32.mrb[0].mxu0
    %v874 = vpop.f32.mrb[0].mxu0
    %v875 = vpop.f32.mrb[0].mxu0
    %876 = vdwg.mxu0
    %877 = vmatprep.subr.bf16.mxu0 0
    %878 = vmatpush1.bf16.msra.mxu0 %v709
    %879 = vmatprep.subr.bf16.mxu0 0
    %880 = vmatpush1.bf16.msra.mxu0 %v710
    %881 = vmatprep.subr.bf16.mxu0 0
    %882 = vmatpush1.bf16.msra.mxu0 %v711
    %883 = vmatprep.subr.bf16.mxu0 0
    %884 = vmatpush1.bf16.msra.mxu0 %v712
    %885 = vmatprep.subr.bf16.mxu0 0
    %886 = vmatpush1.bf16.msra.mxu0 %v713
    %887 = vmatprep.subr.bf16.mxu0 0
    %888 = vmatpush1.bf16.msra.mxu0 %v714
    %889 = vmatprep.subr.bf16.mxu0 0
    %890 = vmatpush1.bf16.msra.mxu0 %v715
    %891 = vmatprep.subr.bf16.mxu0 0
    %892 = vmatpush1.bf16.msra.mxu0 %v716
    %893 = vmatprep.subr.bf16.mxu0 0
    %894 = vmatpush1.bf16.msra.mxu0 %v717
    %895 = vmatprep.subr.bf16.mxu0 0
    %896 = vmatpush1.bf16.msra.mxu0 %v718
    %897 = vmatprep.subr.bf16.mxu0 0
    %898 = vmatpush1.bf16.msra.mxu0 %v719
    %899 = vmatprep.subr.bf16.mxu0 0
    %900 = vmatpush1.bf16.msra.mxu0 %v720
    %901 = vmatprep.subr.bf16.mxu0 0
    %902 = vmatpush1.bf16.msra.mxu0 %v721
    %903 = vmatprep.subr.bf16.mxu0 0
    %904 = vmatpush1.bf16.msra.mxu0 %v722
    %905 = vmatprep.subr.bf16.mxu0 0
    %906 = vmatpush1.bf16.msra.mxu0 %v723
    %907 = vmatprep.subr.bf16.mxu0 0
    %908 = vmatpush1.bf16.msra.mxu0 %v724
    %909 = vmatprep.mubr.bf16.mxu0 %v399
    %910 = vmatmul.mubr.bf16.gmra.mrb[0].mxu0 %v398
    %v911 = vpop.f32.mrb[0].mxu0
    %v912 = vadd.f32 %v872, %v911
    %v913 = vpop.f32.mrb[0].mxu0
    %v914 = vpop.f32.mrb[0].mxu0
    %v915 = vpop.f32.mrb[0].mxu0
    %916 = vdwg.mxu0
    %917 = vmatprep.subr.bf16.mxu0 0
    %918 = vmatpush1.bf16.msra.mxu0 %v725
    %919 = vmatprep.subr.bf16.mxu0 0
    %920 = vmatpush1.bf16.msra.mxu0 %v726
    %921 = vmatprep.subr.bf16.mxu0 0
    %922 = vmatpush1.bf16.msra.mxu0 %v727
    %923 = vmatprep.subr.bf16.mxu0 0
    %924 = vmatpush1.bf16.msra.mxu0 %v728
    %925 = vmatprep.subr.bf16.mxu0 0
    %926 = vmatpush1.bf16.msra.mxu0 %v729
    %927 = vmatprep.subr.bf16.mxu0 0
    %928 = vmatpush1.bf16.msra.mxu0 %v730
    %929 = vmatprep.subr.bf16.mxu0 0
    %930 = vmatpush1.bf16.msra.mxu0 %v731
    %931 = vmatprep.subr.bf16.mxu0 0
    %932 = vmatpush1.bf16.msra.mxu0 %v732
    %933 = vmatprep.subr.bf16.mxu0 0
    %934 = vmatpush1.bf16.msra.mxu0 %v733
    %935 = vmatprep.subr.bf16.mxu0 0
    %936 = vmatpush1.bf16.msra.mxu0 %v734
    %937 = vmatprep.subr.bf16.mxu0 0
    %938 = vmatpush1.bf16.msra.mxu0 %v735
    %939 = vmatprep.subr.bf16.mxu0 0
    %940 = vmatpush1.bf16.msra.mxu0 %v736
    %941 = vmatprep.subr.bf16.mxu0 0
    %942 = vmatpush1.bf16.msra.mxu0 %v737
    %943 = vmatprep.subr.bf16.mxu0 0
    %944 = vmatpush1.bf16.msra.mxu0 %v738
    %945 = vmatprep.subr.bf16.mxu0 0
    %946 = vmatpush1.bf16.msra.mxu0 %v739
    %947 = vmatprep.subr.bf16.mxu0 0
    %948 = vmatpush1.bf16.msra.mxu0 %v740
    %949 = vmatprep.mubr.bf16.mxu0 %v401
    %950 = vmatmul.mubr.bf16.gmra.mrb[0].mxu0 %v400
    %v951 = vpop.f32.mrb[0].mxu0
    %v952 = vadd.f32 %v912, %v951
    %v953 = vpop.f32.mrb[0].mxu0
    %v954 = vpop.f32.mrb[0].mxu0
    %v955 = vpop.f32.mrb[0].mxu0
    %956 = vdwg.mxu0
    %957 = vmatprep.subr.bf16.mxu0 0
    %958 = vmatpush1.bf16.msra.mxu0 %v741
    %959 = vmatprep.subr.bf16.mxu0 0
    %960 = vmatpush1.bf16.msra.mxu0 %v742
    %961 = vmatprep.subr.bf16.mxu0 0
    %962 = vmatpush1.bf16.msra.mxu0 %v743
    %963 = vmatprep.subr.bf16.mxu0 0
    %964 = vmatpush1.bf16.msra.mxu0 %v744
    %965 = vmatprep.subr.bf16.mxu0 0
    %966 = vmatpush1.bf16.msra.mxu0 %v745
    %967 = vmatprep.subr.bf16.mxu0 0
    %968 = vmatpush1.bf16.msra.mxu0 %v746
    %969 = vmatprep.subr.bf16.mxu0 0
    %970 = vmatpush1.bf16.msra.mxu0 %v747
    %971 = vmatprep.subr.bf16.mxu0 0
    %972 = vmatpush1.bf16.msra.mxu0 %v748
    %973 = vmatprep.subr.bf16.mxu0 0
    %974 = vmatpush1.bf16.msra.mxu0 %v749
    %975 = vmatprep.subr.bf16.mxu0 0
    %976 = vmatpush1.bf16.msra.mxu0 %v750
    %977 = vmatprep.subr.bf16.mxu0 0
    %978 = vmatpush1.bf16.msra.mxu0 %v751
    %979 = vmatprep.subr.bf16.mxu0 0
    %980 = vmatpush1.bf16.msra.mxu0 %v752
    %981 = vmatprep.subr.bf16.mxu0 0
    %982 = vmatpush1.bf16.msra.mxu0 %v753
    %983 = vmatprep.subr.bf16.mxu0 0
    %984 = vmatpush1.bf16.msra.mxu0 %v754
    %985 = vmatprep.subr.bf16.mxu0 0
    %986 = vmatpush1.bf16.msra.mxu0 %v755
    %987 = vmatprep.subr.bf16.mxu0 0
    %988 = vmatpush1.bf16.msra.mxu0 %v756
    %989 = vmatprep.mubr.bf16.mxu0 %v403
    %990 = vmatmul.mubr.bf16.gmra.mrb[0].mxu0 %v402
    %v991 = vpop.f32.mrb[0].mxu0
    %v992 = vadd.f32 %v952, %v991
    %v993 = vpop.f32.mrb[0].mxu0
    %v994 = vpop.f32.mrb[0].mxu0
    %v995 = vpop.f32.mrb[0].mxu0
    %996 = vdwg.mxu0
    %997 = vmatprep.subr.bf16.mxu0 0
    %998 = vmatpush1.bf16.msra.mxu0 %v757
    %999 = vmatprep.subr.bf16.mxu0 0
    %1000 = vmatpush1.bf16.msra.mxu0 %v758
    %1001 = vmatprep.subr.bf16.mxu0 0
    %1002 = vmatpush1.bf16.msra.mxu0 %v759
    %1003 = vmatprep.subr.bf16.mxu0 0
    %1004 = vmatpush1.bf16.msra.mxu0 %v760
    %1005 = vmatprep.subr.bf16.mxu0 0
    %1006 = vmatpush1.bf16.msra.mxu0 %v761
    %1007 = vmatprep.subr.bf16.mxu0 0
    %1008 = vmatpush1.bf16.msra.mxu0 %v762
    %1009 = vmatprep.subr.bf16.mxu0 0
    %1010 = vmatpush1.bf16.msra.mxu0 %v763
    %1011 = vmatprep.subr.bf16.mxu0 0
    %1012 = vmatpush1.bf16.msra.mxu0 %v764
    %1013 = vmatprep.subr.bf16.mxu0 0
    %1014 = vmatpush1.bf16.msra.mxu0 0
    %1015 = vmatprep.subr.bf16.mxu0 0
    %1016 = vmatpush1.bf16.msra.mxu0 0
    %1017 = vmatprep.subr.bf16.mxu0 0
    %1018 = vmatpush1.bf16.msra.mxu0 0
    %1019 = vmatprep.subr.bf16.mxu0 0
    %1020 = vmatpush1.bf16.msra.mxu0 0
    %1021 = vmatprep.subr.bf16.mxu0 0
    %1022 = vmatpush1.bf16.msra.mxu0 0
    %1023 = vmatprep.subr.bf16.mxu0 0
    %1024 = vmatpush1.bf16.msra.mxu0 0
    %1025 = vmatprep.subr.bf16.mxu0 0
    %1026 = vmatpush1.bf16.msra.mxu0 0
    %1027 = vmatprep.subr.bf16.mxu0 0
    %1028 = vmatpush1.bf16.msra.mxu0 0
    %1029 = vmatprep.mubr.bf16.mxu0 0
    %1030 = vmatmul.mubr.bf16.gmra.mrb[0].mxu0 %v404
    %v1031 = vpop.f32.mrb[0].mxu0
    %v1032 = vadd.f32 %v992, %v1031
    %v1033 = vpop.f32.mrb[0].mxu0
    %v1034 = vpop.f32.mrb[0].mxu0
    %v1035 = vpop.f32.mrb[0].mxu0
    %1036 = vdwg.mxu0
    %v1037 = vld [vmem:[#allocation5] sm:$0xf]
    %v1038 = vld [vmem:[#allocation5 + $0x4] sm:$0xf]
    %v1039 = vld [vmem:[#allocation5 + $0x8] sm:$0xf]
    %v1040 = vld [vmem:[#allocation5 + $0xc] sm:$0xf]
    %v1041 = vld [vmem:[#allocation5 + $0x10] sm:$0xf]
    %v1042 = vld [vmem:[#allocation5 + $0x14] sm:$0xf]
    %v1043 = vld [vmem:[#allocation5 + $0x18] sm:$0xf]
    %v1044 = vld [vmem:[#allocation5 + $0x1c] sm:$0xf]
    %v1045 = vld [vmem:[#allocation5 + $0x20] sm:$0xf]
    %v1046 = vld [vmem:[#allocation5 + $0x24] sm:$0xf]
    %v1047 = vld [vmem:[#allocation5 + $0x28] sm:$0xf]
    %v1048 = vld [vmem:[#allocation5 + $0x2c] sm:$0xf]
    %v1049 = vld [vmem:[#allocation5 + $0x30] sm:$0xf]
    %v1050 = vld [vmem:[#allocation5 + $0x34] sm:$0xf]
    %v1051 = vld [vmem:[#allocation5 + $0x38] sm:$0xf]
    %v1052 = vld [vmem:[#allocation5 + $0x3c] sm:$0xf]
    %v1053 = vld [vmem:[#allocation5 + $0x40] sm:$0xf]
    %v1054 = vld [vmem:[#allocation5 + $0x44] sm:$0xf]
    %v1055 = vld [vmem:[#allocation5 + $0x48] sm:$0xf]
    %v1056 = vld [vmem:[#allocation5 + $0x4c] sm:$0xf]
    %v1057 = vld [vmem:[#allocation5 + $0x50] sm:$0xf]
    %v1058 = vld [vmem:[#allocation5 + $0x54] sm:$0xf]
    %v1059 = vld [vmem:[#allocation5 + $0x58] sm:$0xf]
    %v1060 = vld [vmem:[#allocation5 + $0x5c] sm:$0xf]
    %v1061 = vld [vmem:[#allocation5 + $0x60] sm:$0xf]
    %v1062 = vld [vmem:[#allocation5 + $0x64] sm:$0xf]
    %v1063 = vld [vmem:[#allocation5 + $0x68] sm:$0xf]
    %v1064 = vld [vmem:[#allocation5 + $0x6c] sm:$0xf]
    %v1065 = vld [vmem:[#allocation5 + $0x70] sm:$0xf]
    %v1066 = vld [vmem:[#allocation5 + $0x74] sm:$0xf]
    %v1067 = vld [vmem:[#allocation5 + $0x78] sm:$0xf]
    %v1068 = vld [vmem:[#allocation5 + $0x7c] sm:$0xf]
    %v1069 = vld [vmem:[#allocation5 + $0x80] sm:$0xf]
    %v1070 = vld [vmem:[#allocation5 + $0x84] sm:$0xf]
    %v1071 = vld [vmem:[#allocation5 + $0x88] sm:$0xf]
    %v1072 = vld [vmem:[#allocation5 + $0x8c] sm:$0xf]
    %v1073 = vld [vmem:[#allocation5 + $0x90] sm:$0xf]
    %v1074 = vld [vmem:[#allocation5 + $0x94] sm:$0xf]
    %v1075 = vld [vmem:[#allocation5 + $0x98] sm:$0xf]
    %v1076 = vld [vmem:[#allocation5 + $0x9c] sm:$0xf]
    %v1077 = vld [vmem:[#allocation5 + $0xa0] sm:$0xf]
    %v1078 = vld [vmem:[#allocation5 + $0xa4] sm:$0xf]
    %v1079 = vld [vmem:[#allocation5 + $0xa8] sm:$0xf]
    %v1080 = vld [vmem:[#allocation5 + $0xac] sm:$0xf]
    %v1081 = vld [vmem:[#allocation5 + $0xb0] sm:$0xf]
    %v1082 = vld [vmem:[#allocation5 + $0xb4] sm:$0xf]
    %v1083 = vld [vmem:[#allocation5 + $0xb8] sm:$0xf]
    %v1084 = vld [vmem:[#allocation5 + $0xbc] sm:$0xf]
    %v1085 = vld [vmem:[#allocation5 + $0xc0] sm:$0xf]
    %v1086 = vld [vmem:[#allocation5 + $0xc4] sm:$0xf]
    %v1087 = vld [vmem:[#allocation5 + $0xc8] sm:$0xf]
    %v1088 = vld [vmem:[#allocation5 + $0xcc] sm:$0xf]
    %v1089 = vld [vmem:[#allocation5 + $0xd0] sm:$0xf]
    %v1090 = vld [vmem:[#allocation5 + $0xd4] sm:$0xf]
    %v1091 = vld [vmem:[#allocation5 + $0xd8] sm:$0xf]
    %v1092 = vld [vmem:[#allocation5 + $0xdc] sm:$0xf]
    %v1093 = vld [vmem:[#allocation5 + $0xe0] sm:$0xf]
    %v1094 = vld [vmem:[#allocation5 + $0xe4] sm:$0xf]
    %v1095 = vld [vmem:[#allocation5 + $0xe8] sm:$0xf]
    %v1096 = vld [vmem:[#allocation5 + $0xec] sm:$0xf]
    %v1097 = vld [vmem:[#allocation5 + $0xf0] sm:$0xf]
    %v1098 = vld [vmem:[#allocation5 + $0xf4] sm:$0xf]
    %v1099 = vld [vmem:[#allocation5 + $0xf8] sm:$0xf]
    %v1100 = vld [vmem:[#allocation5 + $0xfc] sm:$0xf]
    %v1101 = vld [vmem:[#allocation5 + $0x100] sm:$0xf]
    %v1102 = vld [vmem:[#allocation5 + $0x104] sm:$0xf]
    %v1103 = vld [vmem:[#allocation5 + $0x108] sm:$0xf]
    %v1104 = vld [vmem:[#allocation5 + $0x10c] sm:$0xf]
    %v1105 = vld [vmem:[#allocation5 + $0x110] sm:$0xf]
    %v1106 = vld [vmem:[#allocation5 + $0x114] sm:$0xf]
    %v1107 = vld [vmem:[#allocation5 + $0x118] sm:$0xf]
    %v1108 = vld [vmem:[#allocation5 + $0x11c] sm:$0xf]
    %v1109 = vld [vmem:[#allocation5 + $0x120] sm:$0xf]
    %v1110 = vld [vmem:[#allocation5 + $0x124] sm:$0xf]
    %v1111 = vld [vmem:[#allocation5 + $0x128] sm:$0xf]
    %v1112 = vld [vmem:[#allocation5 + $0x12c] sm:$0xf]
    %v1113 = vld [vmem:[#allocation5 + $0x130] sm:$0xf]
    %v1114 = vld [vmem:[#allocation5 + $0x134] sm:$0xf]
    %v1115 = vld [vmem:[#allocation5 + $0x138] sm:$0xf]
    %v1116 = vld [vmem:[#allocation5 + $0x13c] sm:$0xf]
    %v1117 = vld [vmem:[#allocation5 + $0x140] sm:$0xf]
    %v1118 = vld [vmem:[#allocation5 + $0x144] sm:$0xf]
    %v1119 = vld [vmem:[#allocation5 + $0x148] sm:$0xf]
    %v1120 = vld [vmem:[#allocation5 + $0x14c] sm:$0xf]
    %v1121 = vld [vmem:[#allocation5 + $0x150] sm:$0xf]
    %v1122 = vld [vmem:[#allocation5 + $0x154] sm:$0xf]
    %v1123 = vld [vmem:[#allocation5 + $0x158] sm:$0xf]
    %v1124 = vld [vmem:[#allocation5 + $0x15c] sm:$0xf]
    %v1125 = vld [vmem:[#allocation5 + $0x160] sm:$0xf]
    %v1126 = vld [vmem:[#allocation5 + $0x164] sm:$0xf]
    %v1127 = vld [vmem:[#allocation5 + $0x168] sm:$0xf]
    %v1128 = vld [vmem:[#allocation5 + $0x16c] sm:$0xf]
    %v1129 = vld [vmem:[#allocation5 + $0x170] sm:$0xf]
    %v1130 = vld [vmem:[#allocation5 + $0x174] sm:$0xf]
    %v1131 = vld [vmem:[#allocation5 + $0x178] sm:$0xf]
    %v1132 = vld [vmem:[#allocation5 + $0x17c] sm:$0xf]
    %v1133 = vld [vmem:[#allocation5 + $0x180] sm:$0xf]
    %v1134 = vld [vmem:[#allocation5 + $0x184] sm:$0xf]
    %v1135 = vld [vmem:[#allocation5 + $0x188] sm:$0xf]
    %v1136 = vld [vmem:[#allocation5 + $0x18c] sm:$0xf]
    %v1137 = vld [vmem:[#allocation5 + $0x190] sm:$0xf]
    %v1138 = vld [vmem:[#allocation5 + $0x194] sm:$0xf]
    %v1139 = vld [vmem:[#allocation5 + $0x198] sm:$0xf]
    %v1140 = vld [vmem:[#allocation5 + $0x19c] sm:$0xf]
    %v1141 = vld [vmem:[#allocation5 + $0x1a0] sm:$0xf]
    %v1142 = vld [vmem:[#allocation5 + $0x1a4] sm:$0xf]
    %v1143 = vld [vmem:[#allocation5 + $0x1a8] sm:$0xf]
    %v1144 = vld [vmem:[#allocation5 + $0x1ac] sm:$0xf]
    %v1145 = vld [vmem:[#allocation5 + $0x1b0] sm:$0xf]
    %v1146 = vld [vmem:[#allocation5 + $0x1b4] sm:$0xf]
    %v1147 = vld [vmem:[#allocation5 + $0x1b8] sm:$0xf]
    %v1148 = vld [vmem:[#allocation5 + $0x1bc] sm:$0xf]
    %v1149 = vld [vmem:[#allocation5 + $0x1c0] sm:$0xf]
    %v1150 = vld [vmem:[#allocation5 + $0x1c4] sm:$0xf]
    %v1151 = vld [vmem:[#allocation5 + $0x1c8] sm:$0xf]
    %v1152 = vld [vmem:[#allocation5 + $0x1cc] sm:$0xf]
    %v1153 = vld [vmem:[#allocation5 + $0x1d0] sm:$0xf]
    %v1154 = vld [vmem:[#allocation5 + $0x1d4] sm:$0xf]
    %v1155 = vld [vmem:[#allocation5 + $0x1d8] sm:$0xf]
    %v1156 = vld [vmem:[#allocation5 + $0x1dc] sm:$0xf]
    %v1157 = vld [vmem:[#allocation5 + $0x1e0] sm:$0xf]
    %v1158 = vld [vmem:[#allocation5 + $0x1e4] sm:$0xf]
    %v1159 = vld [vmem:[#allocation5 + $0x1e8] sm:$0xf]
    %v1160 = vld [vmem:[#allocation5 + $0x1ec] sm:$0xf]
    %v1161 = vld [vmem:[#allocation5 + $0x1f0] sm:$0xf]
    %v1162 = vld [vmem:[#allocation5 + $0x1f4] sm:$0xf]
    %v1163 = vld [vmem:[#allocation5 + $0x1f8] sm:$0xf]
    %v1164 = vld [vmem:[#allocation5 + $0x1fc] sm:$0xf]
    %v1165 = vld [vmem:[#allocation5 + $0x200] sm:$0xf]
    %v1166 = vld [vmem:[#allocation5 + $0x204] sm:$0xf]
    %v1167 = vld [vmem:[#allocation5 + $0x208] sm:$0xf]
    %v1168 = vld [vmem:[#allocation5 + $0x20c] sm:$0xf]
    %v1169 = vld [vmem:[#allocation5 + $0x210] sm:$0xf]
    %v1170 = vld [vmem:[#allocation5 + $0x214] sm:$0xf]
    %v1171 = vld [vmem:[#allocation5 + $0x218] sm:$0xf]
    %v1172 = vld [vmem:[#allocation5 + $0x21c] sm:$0xf]
    %v1173 = vld [vmem:[#allocation5 + $0x220] sm:$0xf]
    %v1174 = vld [vmem:[#allocation5 + $0x224] sm:$0xf]
    %v1175 = vld [vmem:[#allocation5 + $0x228] sm:$0xf]
    %v1176 = vld [vmem:[#allocation5 + $0x22c] sm:$0xf]
    %v1177 = vld [vmem:[#allocation5 + $0x230] sm:$0xf]
    %v1178 = vld [vmem:[#allocation5 + $0x234] sm:$0xf]
    %v1179 = vld [vmem:[#allocation5 + $0x238] sm:$0xf]
    %v1180 = vld [vmem:[#allocation5 + $0x23c] sm:$0xf]
    %v1181 = vxor.u32 %v1032, 2147483648
    %v1182 = vmul.f32 %v1181, 1.442695
    %v1183 = vpow.pop %v1182
    %v1184 = vadd.f32 %v1183, 1.0
    %v1185 = vrcp.pop %v1184
    %v1186 = vmul.f32 1.0, %v1185
    %v1187 = vmul.f32 %v1032, %v1186
    %v1188 = vsub.f32 %v1032, -2.2
    %v1189 = vsub.f32 %v1032, -1.8
    %v1190 = vsub.f32 %v1032, -1.4
    %v1191 = vsub.f32 %v1032, -1.0
    %v1192 = vsub.f32 %v1032, -0.6
    %v1193 = vsub.f32 %v1032, -0.2
    %v1194 = vsub.f32 %v1032, 0.2
    %v1195 = vsub.f32 %v1032, 0.6
    %v1196 = vsub.f32 %v1032, 1.0
    %v1197 = vsub.f32 %v1032, 1.4
    %v1198 = vsub.f32 %v1032, 1.8
    %v1199 = vsub.f32 %v1032, 2.2
    %vm1200 = vcmp.ge.f32.partialorder %v1032, -2.2
    %v1201 = vsel %vm1200, 1, 0
    %v1202 = vcvt.s32.f32 %v1201
    %vm1203 = vcmp.ge.f32.partialorder %v1032, -1.8
    %v1204 = vsel %vm1203, 1, 0
    %v1205 = vcvt.s32.f32 %v1204
    %vm1206 = vcmp.ge.f32.partialorder %v1032, -1.4
    %v1207 = vsel %vm1206, 1, 0
    %v1208 = vcvt.s32.f32 %v1207
    %vm1209 = vcmp.ge.f32.partialorder %v1032, -1.0
    %v1210 = vsel %vm1209, 1, 0
    %v1211 = vcvt.s32.f32 %v1210
    %vm1212 = vcmp.ge.f32.partialorder %v1032, -0.6
    %v1213 = vsel %vm1212, 1, 0
    %v1214 = vcvt.s32.f32 %v1213
    %vm1215 = vcmp.ge.f32.partialorder %v1032, -0.2
    %v1216 = vsel %vm1215, 1, 0
    %v1217 = vcvt.s32.f32 %v1216
    %vm1218 = vcmp.ge.f32.partialorder %v1032, 0.2
    %v1219 = vsel %vm1218, 1, 0
    %v1220 = vcvt.s32.f32 %v1219
    %vm1221 = vcmp.ge.f32.partialorder %v1032, 0.6
    %v1222 = vsel %vm1221, 1, 0
    %v1223 = vcvt.s32.f32 %v1222
    %vm1224 = vcmp.ge.f32.partialorder %v1032, 1.0
    %v1225 = vsel %vm1224, 1, 0
    %v1226 = vcvt.s32.f32 %v1225
    %vm1227 = vcmp.ge.f32.partialorder %v1032, 1.4
    %v1228 = vsel %vm1227, 1, 0
    %v1229 = vcvt.s32.f32 %v1228
    %vm1230 = vcmp.ge.f32.partialorder %v1032, 1.8
    %v1231 = vsel %vm1230, 1, 0
    %v1232 = vcvt.s32.f32 %v1231
    %vm1233 = vcmp.ge.f32.partialorder %v1032, 2.2
    %v1234 = vsel %vm1233, 1, 0
    %v1235 = vcvt.s32.f32 %v1234
    %v1236 = vsub.f32 %v1202, %v1205
    %v1237 = vsub.f32 %v1205, %v1208
    %v1238 = vsub.f32 %v1208, %v1211
    %v1239 = vsub.f32 %v1211, %v1214
    %v1240 = vsub.f32 %v1214, %v1217
    %v1241 = vsub.f32 %v1217, %v1220
    %v1242 = vsub.f32 %v1220, %v1223
    %v1243 = vsub.f32 %v1223, %v1226
    %v1244 = vsub.f32 %v1226, %v1229
    %v1245 = vsub.f32 %v1229, %v1232
    %v1246 = vsub.f32 %v1232, %v1235
    %v1247 = vmul.f32 %v1188, %v1236
    %v1248 = vmul.f32 %v1190, %v1237
    %v1249 = vsub.f32 %v1247, %v1248
    %v1250 = vmul.f32 %v1249, 2.5
    %v1251 = vmul.f32 %v1189, %v1237
    %v1252 = vmul.f32 %v1191, %v1238
    %v1253 = vsub.f32 %v1251, %v1252
    %v1254 = vmul.f32 %v1253, 2.5
    %v1255 = vmul.f32 %v1190, %v1238
    %v1256 = vmul.f32 %v1192, %v1239
    %v1257 = vsub.f32 %v1255, %v1256
    %v1258 = vmul.f32 %v1257, 2.5
    %v1259 = vmul.f32 %v1191, %v1239
    %v1260 = vmul.f32 %v1193, %v1240
    %v1261 = vsub.f32 %v1259, %v1260
    %v1262 = vmul.f32 %v1261, 2.5
    %v1263 = vmul.f32 %v1192, %v1240
    %v1264 = vmul.f32 %v1194, %v1241
    %v1265 = vsub.f32 %v1263, %v1264
    %v1266 = vmul.f32 %v1265, 2.5
    %v1267 = vmul.f32 %v1193, %v1241
    %v1268 = vmul.f32 %v1195, %v1242
    %v1269 = vsub.f32 %v1267, %v1268
    %v1270 = vmul.f32 %v1269, 2.5
    %v1271 = vmul.f32 %v1194, %v1242
    %v1272 = vmul.f32 %v1196, %v1243
    %v1273 = vsub.f32 %v1271, %v1272
    %v1274 = vmul.f32 %v1273, 2.5
    %v1275 = vmul.f32 %v1195, %v1243
    %v1276 = vmul.f32 %v1197, %v1244
    %v1277 = vsub.f32 %v1275, %v1276
    %v1278 = vmul.f32 %v1277, 2.5
    %v1279 = vmul.f32 %v1196, %v1244
    %v1280 = vmul.f32 %v1198, %v1245
    %v1281 = vsub.f32 %v1279, %v1280
    %v1282 = vmul.f32 %v1281, 2.5
    %v1283 = vmul.f32 %v1197, %v1245
    %v1284 = vmul.f32 %v1199, %v1246
    %v1285 = vsub.f32 %v1283, %v1284
    %v1286 = vmul.f32 %v1285, 2.5
    %v1287 = vmul.f32 %v1188, %v1250
    %v1288 = vmul.f32 %v1191, %v1254
    %v1289 = vsub.f32 %v1287, %v1288
    %v1290 = vmul.f32 %v1289, 1.25
    %v1291 = vmul.f32 %v1189, %v1254
    %v1292 = vmul.f32 %v1192, %v1258
    %v1293 = vsub.f32 %v1291, %v1292
    %v1294 = vmul.f32 %v1293, 1.25
    %v1295 = vmul.f32 %v1190, %v1258
    %v1296 = vmul.f32 %v1193, %v1262
    %v1297 = vsub.f32 %v1295, %v1296
    %v1298 = vmul.f32 %v1297, 1.25
    %v1299 = vmul.f32 %v1191, %v1262
    %v1300 = vmul.f32 %v1194, %v1266
    %v1301 = vsub.f32 %v1299, %v1300
    %v1302 = vmul.f32 %v1301, 1.25
    %v1303 = vmul.f32 %v1192, %v1266
    %v1304 = vmul.f32 %v1195, %v1270
    %v1305 = vsub.f32 %v1303, %v1304
    %v1306 = vmul.f32 %v1305, 1.25
    %v1307 = vmul.f32 %v1193, %v1270
    %v1308 = vmul.f32 %v1196, %v1274
    %v1309 = vsub.f32 %v1307, %v1308
    %v1310 = vmul.f32 %v1309, 1.25
    %v1311 = vmul.f32 %v1194, %v1274
    %v1312 = vmul.f32 %v1197, %v1278
    %v1313 = vsub.f32 %v1311, %v1312
    %v1314 = vmul.f32 %v1313, 1.25
    %v1315 = vmul.f32 %v1195, %v1278
    %v1316 = vmul.f32 %v1198, %v1282
    %v1317 = vsub.f32 %v1315, %v1316
    %v1318 = vmul.f32 %v1317, 1.25
    %v1319 = vmul.f32 %v1196, %v1282
    %v1320 = vmul.f32 %v1199, %v1286
    %v1321 = vsub.f32 %v1319, %v1320
    %v1322 = vmul.f32 %v1321, 1.25
    %v1323 = vmul.f32 %v1188, %v1290
    %v1324 = vmul.f32 %v1192, %v1294
    %v1325 = vsub.f32 %v1323, %v1324
    %v1326 = vmul.f32 %v1325, 0.8333333
    %v1327 = vmul.f32 %v1189, %v1294
    %v1328 = vmul.f32 %v1193, %v1298
    %v1329 = vsub.f32 %v1327, %v1328
    %v1330 = vmul.f32 %v1329, 0.8333333
    %v1331 = vmul.f32 %v1190, %v1298
    %v1332 = vmul.f32 %v1194, %v1302
    %v1333 = vsub.f32 %v1331, %v1332
    %v1334 = vmul.f32 %v1333, 0.8333333
    %v1335 = vmul.f32 %v1191, %v1302
    %v1336 = vmul.f32 %v1195, %v1306
    %v1337 = vsub.f32 %v1335, %v1336
    %v1338 = vmul.f32 %v1337, 0.8333333
    %v1339 = vmul.f32 %v1192, %v1306
    %v1340 = vmul.f32 %v1196, %v1310
    %v1341 = vsub.f32 %v1339, %v1340
    %v1342 = vmul.f32 %v1341, 0.8333333
    %v1343 = vmul.f32 %v1193, %v1310
    %v1344 = vmul.f32 %v1197, %v1314
    %v1345 = vsub.f32 %v1343, %v1344
    %v1346 = vmul.f32 %v1345, 0.8333333
    %v1347 = vmul.f32 %v1194, %v1314
    %v1348 = vmul.f32 %v1198, %v1318
    %v1349 = vsub.f32 %v1347, %v1348
    %v1350 = vmul.f32 %v1349, 0.8333333
    %v1351 = vmul.f32 %v1195, %v1318
    %v1352 = vmul.f32 %v1199, %v1322
    %v1353 = vsub.f32 %v1351, %v1352
    %v1354 = vmul.f32 %v1353, 0.8333333
    %v1355 = vpack.c.bf16 %v1187, %v1187
    %v1356 = vpack.c.bf16 %v1326, %v1326
    %v1357 = vpack.c.bf16 %v1330, %v1330
    %v1358 = vpack.c.bf16 %v1334, %v1334
    %v1359 = vpack.c.bf16 %v1338, %v1338
    %v1360 = vpack.c.bf16 %v1342, %v1342
    %v1361 = vpack.c.bf16 %v1346, %v1346
    %v1362 = vpack.c.bf16 %v1350, %v1350
    %v1363 = vpack.c.bf16 %v1354, %v1354
    %v1508 = vunpack.c.l.b16 %v1037
    %v1509 = vunpack.c.l.b16 %v1038
    %v1510 = vunpack.c.l.b16 %v1039
    %v1511 = vunpack.c.l.b16 %v1040
    %v1512 = vunpack.c.l.b16 %v1041
    %v1513 = vunpack.c.l.b16 %v1042
    %v1514 = vunpack.c.l.b16 %v1043
    %v1515 = vunpack.c.l.b16 %v1044
    %v1516 = vunpack.c.l.b16 %v1045
    %v1517 = vunpack.c.l.b16 %v1046
    %v1518 = vunpack.c.l.b16 %v1047
    %v1519 = vunpack.c.l.b16 %v1048
    %v1520 = vunpack.c.l.b16 %v1049
    %v1521 = vunpack.c.l.b16 %v1050
    %v1522 = vunpack.c.l.b16 %v1051
    %v1523 = vunpack.c.l.b16 %v1052
    %v1524 = vunpack.c.l.b16 %v1053
    %v1525 = vunpack.c.l.b16 %v1054
    %v1526 = vunpack.c.l.b16 %v1055
    %v1527 = vunpack.c.l.b16 %v1056
    %v1528 = vunpack.c.l.b16 %v1057
    %v1529 = vunpack.c.l.b16 %v1058
    %v1530 = vunpack.c.l.b16 %v1059
    %v1531 = vunpack.c.l.b16 %v1060
    %v1532 = vunpack.c.l.b16 %v1061
    %v1533 = vunpack.c.l.b16 %v1062
    %v1534 = vunpack.c.l.b16 %v1063
    %v1535 = vunpack.c.l.b16 %v1064
    %v1536 = vunpack.c.l.b16 %v1065
    %v1537 = vunpack.c.l.b16 %v1066
    %v1538 = vunpack.c.l.b16 %v1067
    %v1539 = vunpack.c.l.b16 %v1068
    %v1540 = vunpack.c.l.b16 %v1069
    %v1541 = vunpack.c.l.b16 %v1070
    %v1542 = vunpack.c.l.b16 %v1071
    %v1543 = vunpack.c.l.b16 %v1072
    %v1544 = vunpack.c.l.b16 %v1073
    %v1545 = vunpack.c.l.b16 %v1074
    %v1546 = vunpack.c.l.b16 %v1075
    %v1547 = vunpack.c.l.b16 %v1076
    %v1548 = vunpack.c.l.b16 %v1077
    %v1549 = vunpack.c.l.b16 %v1078
    %v1550 = vunpack.c.l.b16 %v1079
    %v1551 = vunpack.c.l.b16 %v1080
    %v1552 = vunpack.c.l.b16 %v1081
    %v1553 = vunpack.c.l.b16 %v1082
    %v1554 = vunpack.c.l.b16 %v1083
    %v1555 = vunpack.c.l.b16 %v1084
    %v1556 = vunpack.c.l.b16 %v1085
    %v1557 = vunpack.c.l.b16 %v1086
    %v1558 = vunpack.c.l.b16 %v1087
    %v1559 = vunpack.c.l.b16 %v1088
    %v1560 = vunpack.c.l.b16 %v1089
    %v1561 = vunpack.c.l.b16 %v1090
    %v1562 = vunpack.c.l.b16 %v1091
    %v1563 = vunpack.c.l.b16 %v1092
    %v1564 = vunpack.c.l.b16 %v1093
    %v1565 = vunpack.c.l.b16 %v1094
    %v1566 = vunpack.c.l.b16 %v1095
    %v1567 = vunpack.c.l.b16 %v1096
    %v1568 = vunpack.c.l.b16 %v1097
    %v1569 = vunpack.c.l.b16 %v1098
    %v1570 = vunpack.c.l.b16 %v1099
    %v1571 = vunpack.c.l.b16 %v1100
    %v1572 = vunpack.c.l.b16 %v1101
    %v1573 = vunpack.c.l.b16 %v1102
    %v1574 = vunpack.c.l.b16 %v1103
    %v1575 = vunpack.c.l.b16 %v1104
    %v1576 = vunpack.c.l.b16 %v1105
    %v1577 = vunpack.c.l.b16 %v1106
    %v1578 = vunpack.c.l.b16 %v1107
    %v1579 = vunpack.c.l.b16 %v1108
    %v1580 = vunpack.c.l.b16 %v1109
    %v1581 = vunpack.c.l.b16 %v1110
    %v1582 = vunpack.c.l.b16 %v1111
    %v1583 = vunpack.c.l.b16 %v1112
    %v1584 = vunpack.c.l.b16 %v1113
    %v1585 = vunpack.c.l.b16 %v1114
    %v1586 = vunpack.c.l.b16 %v1115
    %v1587 = vunpack.c.l.b16 %v1116
    %v1588 = vunpack.c.l.b16 %v1117
    %v1589 = vunpack.c.l.b16 %v1118
    %v1590 = vunpack.c.l.b16 %v1119
    %v1591 = vunpack.c.l.b16 %v1120
    %v1592 = vunpack.c.l.b16 %v1121
    %v1593 = vunpack.c.l.b16 %v1122
    %v1594 = vunpack.c.l.b16 %v1123
    %v1595 = vunpack.c.l.b16 %v1124
    %v1596 = vunpack.c.l.b16 %v1125
    %v1597 = vunpack.c.l.b16 %v1126
    %v1598 = vunpack.c.l.b16 %v1127
    %v1599 = vunpack.c.l.b16 %v1128
    %v1600 = vunpack.c.l.b16 %v1129
    %v1601 = vunpack.c.l.b16 %v1130
    %v1602 = vunpack.c.l.b16 %v1131
    %v1603 = vunpack.c.l.b16 %v1132
    %v1604 = vunpack.c.l.b16 %v1133
    %v1605 = vunpack.c.l.b16 %v1134
    %v1606 = vunpack.c.l.b16 %v1135
    %v1607 = vunpack.c.l.b16 %v1136
    %v1608 = vunpack.c.l.b16 %v1137
    %v1609 = vunpack.c.l.b16 %v1138
    %v1610 = vunpack.c.l.b16 %v1139
    %v1611 = vunpack.c.l.b16 %v1140
    %v1612 = vunpack.c.l.b16 %v1141
    %v1613 = vunpack.c.l.b16 %v1142
    %v1614 = vunpack.c.l.b16 %v1143
    %v1615 = vunpack.c.l.b16 %v1144
    %v1616 = vunpack.c.l.b16 %v1145
    %v1617 = vunpack.c.l.b16 %v1146
    %v1618 = vunpack.c.l.b16 %v1147
    %v1619 = vunpack.c.l.b16 %v1148
    %v1620 = vunpack.c.l.b16 %v1149
    %v1621 = vunpack.c.l.b16 %v1150
    %v1622 = vunpack.c.l.b16 %v1151
    %v1623 = vunpack.c.l.b16 %v1152
    %v1624 = vunpack.c.l.b16 %v1153
    %v1625 = vunpack.c.l.b16 %v1154
    %v1626 = vunpack.c.l.b16 %v1155
    %v1627 = vunpack.c.l.b16 %v1156
    %v1628 = vunpack.c.l.b16 %v1157
    %v1629 = vunpack.c.l.b16 %v1158
    %v1630 = vunpack.c.l.b16 %v1159
    %v1631 = vunpack.c.l.b16 %v1160
    %v1632 = vunpack.c.l.b16 %v1161
    %v1633 = vunpack.c.l.b16 %v1162
    %v1634 = vunpack.c.l.b16 %v1163
    %v1635 = vunpack.c.l.b16 %v1164
    %v1636 = vunpack.c.l.b16 %v1165
    %v1637 = vunpack.c.l.b16 %v1166
    %v1638 = vunpack.c.l.b16 %v1167
    %v1639 = vunpack.c.l.b16 %v1168
    %v1640 = vunpack.c.l.b16 %v1169
    %v1641 = vunpack.c.l.b16 %v1170
    %v1642 = vunpack.c.l.b16 %v1171
    %v1643 = vunpack.c.l.b16 %v1172
    %v1644 = vunpack.c.l.b16 %v1173
    %v1645 = vunpack.c.l.b16 %v1174
    %v1646 = vunpack.c.l.b16 %v1175
    %v1647 = vunpack.c.l.b16 %v1176
    %v1648 = vunpack.c.l.b16 %v1177
    %v1649 = vunpack.c.l.b16 %v1178
    %v1650 = vunpack.c.l.b16 %v1179
    %v1651 = vunpack.c.l.b16 %v1180
    %v1652 = vpack.c.b16 %v1509, %v1508
    %v1653 = vpack.c.b16 %v1511, %v1510
    %v1654 = vpack.c.b16 %v1513, %v1512
    %v1655 = vpack.c.b16 %v1515, %v1514
    %v1656 = vpack.c.b16 %v1517, %v1516
    %v1657 = vpack.c.b16 %v1519, %v1518
    %v1658 = vpack.c.b16 %v1521, %v1520
    %v1659 = vpack.c.b16 %v1523, %v1522
    %v1660 = vpack.c.b16 %v1525, %v1524
    %v1661 = vpack.c.b16 %v1527, %v1526
    %v1662 = vpack.c.b16 %v1529, %v1528
    %v1663 = vpack.c.b16 %v1531, %v1530
    %v1664 = vpack.c.b16 %v1533, %v1532
    %v1665 = vpack.c.b16 %v1535, %v1534
    %v1666 = vpack.c.b16 %v1537, %v1536
    %v1667 = vpack.c.b16 %v1539, %v1538
    %v1668 = vpack.c.b16 %v1541, %v1540
    %v1669 = vpack.c.b16 %v1543, %v1542
    %v1670 = vpack.c.b16 %v1545, %v1544
    %v1671 = vpack.c.b16 %v1547, %v1546
    %v1672 = vpack.c.b16 %v1549, %v1548
    %v1673 = vpack.c.b16 %v1551, %v1550
    %v1674 = vpack.c.b16 %v1553, %v1552
    %v1675 = vpack.c.b16 %v1555, %v1554
    %v1676 = vpack.c.b16 %v1557, %v1556
    %v1677 = vpack.c.b16 %v1559, %v1558
    %v1678 = vpack.c.b16 %v1561, %v1560
    %v1679 = vpack.c.b16 %v1563, %v1562
    %v1680 = vpack.c.b16 %v1565, %v1564
    %v1681 = vpack.c.b16 %v1567, %v1566
    %v1682 = vpack.c.b16 %v1569, %v1568
    %v1683 = vpack.c.b16 %v1571, %v1570
    %v1684 = vpack.c.b16 %v1573, %v1572
    %v1685 = vpack.c.b16 %v1575, %v1574
    %v1686 = vpack.c.b16 %v1577, %v1576
    %v1687 = vpack.c.b16 %v1579, %v1578
    %v1688 = vpack.c.b16 %v1581, %v1580
    %v1689 = vpack.c.b16 %v1583, %v1582
    %v1690 = vpack.c.b16 %v1585, %v1584
    %v1691 = vpack.c.b16 %v1587, %v1586
    %v1692 = vpack.c.b16 %v1589, %v1588
    %v1693 = vpack.c.b16 %v1591, %v1590
    %v1694 = vpack.c.b16 %v1593, %v1592
    %v1695 = vpack.c.b16 %v1595, %v1594
    %v1696 = vpack.c.b16 %v1597, %v1596
    %v1697 = vpack.c.b16 %v1599, %v1598
    %v1698 = vpack.c.b16 %v1601, %v1600
    %v1699 = vpack.c.b16 %v1603, %v1602
    %v1700 = vpack.c.b16 %v1605, %v1604
    %v1701 = vpack.c.b16 %v1607, %v1606
    %v1702 = vpack.c.b16 %v1609, %v1608
    %v1703 = vpack.c.b16 %v1611, %v1610
    %v1704 = vpack.c.b16 %v1613, %v1612
    %v1705 = vpack.c.b16 %v1615, %v1614
    %v1706 = vpack.c.b16 %v1617, %v1616
    %v1707 = vpack.c.b16 %v1619, %v1618
    %v1708 = vpack.c.b16 %v1621, %v1620
    %v1709 = vpack.c.b16 %v1623, %v1622
    %v1710 = vpack.c.b16 %v1625, %v1624
    %v1711 = vpack.c.b16 %v1627, %v1626
    %v1712 = vpack.c.b16 %v1629, %v1628
    %v1713 = vpack.c.b16 %v1631, %v1630
    %v1714 = vpack.c.b16 %v1633, %v1632
    %v1715 = vpack.c.b16 %v1635, %v1634
    %v1716 = vpack.c.b16 %v1637, %v1636
    %v1717 = vpack.c.b16 %v1639, %v1638
    %v1718 = vpack.c.b16 %v1641, %v1640
    %v1719 = vpack.c.b16 %v1643, %v1642
    %v1720 = vpack.c.b16 %v1645, %v1644
    %v1721 = vpack.c.b16 %v1647, %v1646
    %v1722 = vpack.c.b16 %v1649, %v1648
    %v1723 = vpack.c.b16 %v1651, %v1650
    %1796 = vmatprep.subr.bf16.mxu0 0
    %1797 = vmatpush1.bf16.msra.mxu0 %v1652
    %1798 = vmatprep.subr.bf16.mxu0 0
    %1799 = vmatpush1.bf16.msra.mxu0 %v1653
    %1800 = vmatprep.subr.bf16.mxu0 0
    %1801 = vmatpush1.bf16.msra.mxu0 %v1654
    %1802 = vmatprep.subr.bf16.mxu0 0
    %1803 = vmatpush1.bf16.msra.mxu0 %v1655
    %1804 = vmatprep.subr.bf16.mxu0 0
    %1805 = vmatpush1.bf16.msra.mxu0 %v1656
    %1806 = vmatprep.subr.bf16.mxu0 0
    %1807 = vmatpush1.bf16.msra.mxu0 %v1657
    %1808 = vmatprep.subr.bf16.mxu0 0
    %1809 = vmatpush1.bf16.msra.mxu0 %v1658
    %1810 = vmatprep.subr.bf16.mxu0 0
    %1811 = vmatpush1.bf16.msra.mxu0 %v1659
    %1812 = vmatprep.subr.bf16.mxu0 0
    %1813 = vmatpush1.bf16.msra.mxu0 %v1660
    %1814 = vmatprep.subr.bf16.mxu0 0
    %1815 = vmatpush1.bf16.msra.mxu0 %v1661
    %1816 = vmatprep.subr.bf16.mxu0 0
    %1817 = vmatpush1.bf16.msra.mxu0 %v1662
    %1818 = vmatprep.subr.bf16.mxu0 0
    %1819 = vmatpush1.bf16.msra.mxu0 %v1663
    %1820 = vmatprep.subr.bf16.mxu0 0
    %1821 = vmatpush1.bf16.msra.mxu0 %v1664
    %1822 = vmatprep.subr.bf16.mxu0 0
    %1823 = vmatpush1.bf16.msra.mxu0 %v1665
    %1824 = vmatprep.subr.bf16.mxu0 0
    %1825 = vmatpush1.bf16.msra.mxu0 %v1666
    %1826 = vmatprep.subr.bf16.mxu0 0
    %1827 = vmatpush1.bf16.msra.mxu0 %v1667
    %1828 = vmatprep.mubr.bf16.mxu0 %v1356
    %1829 = vmatmul.mubr.bf16.gmra.mrb[0].mxu0 %v1355
    %v1830 = vpop.f32.mrb[0].mxu0
    %v1831 = vadd.f32 0.0, %v1830
    %v1832 = vpop.f32.mrb[0].mxu0
    %v1833 = vpop.f32.mrb[0].mxu0
    %v1834 = vpop.f32.mrb[0].mxu0
    %1835 = vdwg.mxu0
    %1836 = vmatprep.subr.bf16.mxu0 0
    %1837 = vmatpush1.bf16.msra.mxu0 %v1668
    %1838 = vmatprep.subr.bf16.mxu0 0
    %1839 = vmatpush1.bf16.msra.mxu0 %v1669
    %1840 = vmatprep.subr.bf16.mxu0 0
    %1841 = vmatpush1.bf16.msra.mxu0 %v1670
    %1842 = vmatprep.subr.bf16.mxu0 0
    %1843 = vmatpush1.bf16.msra.mxu0 %v1671
    %1844 = vmatprep.subr.bf16.mxu0 0
    %1845 = vmatpush1.bf16.msra.mxu0 %v1672
    %1846 = vmatprep.subr.bf16.mxu0 0
    %1847 = vmatpush1.bf16.msra.mxu0 %v1673
    %1848 = vmatprep.subr.bf16.mxu0 0
    %1849 = vmatpush1.bf16.msra.mxu0 %v1674
    %1850 = vmatprep.subr.bf16.mxu0 0
    %1851 = vmatpush1.bf16.msra.mxu0 %v1675
    %1852 = vmatprep.subr.bf16.mxu0 0
    %1853 = vmatpush1.bf16.msra.mxu0 %v1676
    %1854 = vmatprep.subr.bf16.mxu0 0
    %1855 = vmatpush1.bf16.msra.mxu0 %v1677
    %1856 = vmatprep.subr.bf16.mxu0 0
    %1857 = vmatpush1.bf16.msra.mxu0 %v1678
    %1858 = vmatprep.subr.bf16.mxu0 0
    %1859 = vmatpush1.bf16.msra.mxu0 %v1679
    %1860 = vmatprep.subr.bf16.mxu0 0
    %1861 = vmatpush1.bf16.msra.mxu0 %v1680
    %1862 = vmatprep.subr.bf16.mxu0 0
    %1863 = vmatpush1.bf16.msra.mxu0 %v1681
    %1864 = vmatprep.subr.bf16.mxu0 0
    %1865 = vmatpush1.bf16.msra.mxu0 %v1682
    %1866 = vmatprep.subr.bf16.mxu0 0
    %1867 = vmatpush1.bf16.msra.mxu0 %v1683
    %1868 = vmatprep.mubr.bf16.mxu0 %v1358
    %1869 = vmatmul.mubr.bf16.gmra.mrb[0].mxu0 %v1357
    %v1870 = vpop.f32.mrb[0].mxu0
    %v1871 = vadd.f32 %v1831, %v1870
    %v1872 = vpop.f32.mrb[0].mxu0
    %v1873 = vpop.f32.mrb[0].mxu0
    %v1874 = vpop.f32.mrb[0].mxu0
    %1875 = vdwg.mxu0
    %1876 = vmatprep.subr.bf16.mxu0 0
    %1877 = vmatpush1.bf16.msra.mxu0 %v1684
    %1878 = vmatprep.subr.bf16.mxu0 0
    %1879 = vmatpush1.bf16.msra.mxu0 %v1685
    %1880 = vmatprep.subr.bf16.mxu0 0
    %1881 = vmatpush1.bf16.msra.mxu0 %v1686
    %1882 = vmatprep.subr.bf16.mxu0 0
    %1883 = vmatpush1.bf16.msra.mxu0 %v1687
    %1884 = vmatprep.subr.bf16.mxu0 0
    %1885 = vmatpush1.bf16.msra.mxu0 %v1688
    %1886 = vmatprep.subr.bf16.mxu0 0
    %1887 = vmatpush1.bf16.msra.mxu0 %v1689
    %1888 = vmatprep.subr.bf16.mxu0 0
    %1889 = vmatpush1.bf16.msra.mxu0 %v1690
    %1890 = vmatprep.subr.bf16.mxu0 0
    %1891 = vmatpush1.bf16.msra.mxu0 %v1691
    %1892 = vmatprep.subr.bf16.mxu0 0
    %1893 = vmatpush1.bf16.msra.mxu0 %v1692
    %1894 = vmatprep.subr.bf16.mxu0 0
    %1895 = vmatpush1.bf16.msra.mxu0 %v1693
    %1896 = vmatprep.subr.bf16.mxu0 0
    %1897 = vmatpush1.bf16.msra.mxu0 %v1694
    %1898 = vmatprep.subr.bf16.mxu0 0
    %1899 = vmatpush1.bf16.msra.mxu0 %v1695
    %1900 = vmatprep.subr.bf16.mxu0 0
    %1901 = vmatpush1.bf16.msra.mxu0 %v1696
    %1902 = vmatprep.subr.bf16.mxu0 0
    %1903 = vmatpush1.bf16.msra.mxu0 %v1697
    %1904 = vmatprep.subr.bf16.mxu0 0
    %1905 = vmatpush1.bf16.msra.mxu0 %v1698
    %1906 = vmatprep.subr.bf16.mxu0 0
    %1907 = vmatpush1.bf16.msra.mxu0 %v1699
    %1908 = vmatprep.mubr.bf16.mxu0 %v1360
    %1909 = vmatmul.mubr.bf16.gmra.mrb[0].mxu0 %v1359
    %v1910 = vpop.f32.mrb[0].mxu0
    %v1911 = vadd.f32 %v1871, %v1910
    %v1912 = vpop.f32.mrb[0].mxu0
    %v1913 = vpop.f32.mrb[0].mxu0
    %v1914 = vpop.f32.mrb[0].mxu0
    %1915 = vdwg.mxu0
    %1916 = vmatprep.subr.bf16.mxu0 0
    %1917 = vmatpush1.bf16.msra.mxu0 %v1700
    %1918 = vmatprep.subr.bf16.mxu0 0
    %1919 = vmatpush1.bf16.msra.mxu0 %v1701
    %1920 = vmatprep.subr.bf16.mxu0 0
    %1921 = vmatpush1.bf16.msra.mxu0 %v1702
    %1922 = vmatprep.subr.bf16.mxu0 0
    %1923 = vmatpush1.bf16.msra.mxu0 %v1703
    %1924 = vmatprep.subr.bf16.mxu0 0
    %1925 = vmatpush1.bf16.msra.mxu0 %v1704
    %1926 = vmatprep.subr.bf16.mxu0 0
    %1927 = vmatpush1.bf16.msra.mxu0 %v1705
    %1928 = vmatprep.subr.bf16.mxu0 0
    %1929 = vmatpush1.bf16.msra.mxu0 %v1706
    %1930 = vmatprep.subr.bf16.mxu0 0
    %1931 = vmatpush1.bf16.msra.mxu0 %v1707
    %1932 = vmatprep.subr.bf16.mxu0 0
    %1933 = vmatpush1.bf16.msra.mxu0 %v1708
    %1934 = vmatprep.subr.bf16.mxu0 0
    %1935 = vmatpush1.bf16.msra.mxu0 %v1709
    %1936 = vmatprep.subr.bf16.mxu0 0
    %1937 = vmatpush1.bf16.msra.mxu0 %v1710
    %1938 = vmatprep.subr.bf16.mxu0 0
    %1939 = vmatpush1.bf16.msra.mxu0 %v1711
    %1940 = vmatprep.subr.bf16.mxu0 0
    %1941 = vmatpush1.bf16.msra.mxu0 %v1712
    %1942 = vmatprep.subr.bf16.mxu0 0
    %1943 = vmatpush1.bf16.msra.mxu0 %v1713
    %1944 = vmatprep.subr.bf16.mxu0 0
    %1945 = vmatpush1.bf16.msra.mxu0 %v1714
    %1946 = vmatprep.subr.bf16.mxu0 0
    %1947 = vmatpush1.bf16.msra.mxu0 %v1715
    %1948 = vmatprep.mubr.bf16.mxu0 %v1362
    %1949 = vmatmul.mubr.bf16.gmra.mrb[0].mxu0 %v1361
    %v1950 = vpop.f32.mrb[0].mxu0
    %v1951 = vadd.f32 %v1911, %v1950
    %v1952 = vpop.f32.mrb[0].mxu0
    %v1953 = vpop.f32.mrb[0].mxu0
    %v1954 = vpop.f32.mrb[0].mxu0
    %1955 = vdwg.mxu0
    %1956 = vmatprep.subr.bf16.mxu0 0
    %1957 = vmatpush1.bf16.msra.mxu0 %v1716
    %1958 = vmatprep.subr.bf16.mxu0 0
    %1959 = vmatpush1.bf16.msra.mxu0 %v1717
    %1960 = vmatprep.subr.bf16.mxu0 0
    %1961 = vmatpush1.bf16.msra.mxu0 %v1718
    %1962 = vmatprep.subr.bf16.mxu0 0
    %1963 = vmatpush1.bf16.msra.mxu0 %v1719
    %1964 = vmatprep.subr.bf16.mxu0 0
    %1965 = vmatpush1.bf16.msra.mxu0 %v1720
    %1966 = vmatprep.subr.bf16.mxu0 0
    %1967 = vmatpush1.bf16.msra.mxu0 %v1721
    %1968 = vmatprep.subr.bf16.mxu0 0
    %1969 = vmatpush1.bf16.msra.mxu0 %v1722
    %1970 = vmatprep.subr.bf16.mxu0 0
    %1971 = vmatpush1.bf16.msra.mxu0 %v1723
    %1972 = vmatprep.subr.bf16.mxu0 0
    %1973 = vmatpush1.bf16.msra.mxu0 0
    %1974 = vmatprep.subr.bf16.mxu0 0
    %1975 = vmatpush1.bf16.msra.mxu0 0
    %1976 = vmatprep.subr.bf16.mxu0 0
    %1977 = vmatpush1.bf16.msra.mxu0 0
    %1978 = vmatprep.subr.bf16.mxu0 0
    %1979 = vmatpush1.bf16.msra.mxu0 0
    %1980 = vmatprep.subr.bf16.mxu0 0
    %1981 = vmatpush1.bf16.msra.mxu0 0
    %1982 = vmatprep.subr.bf16.mxu0 0
    %1983 = vmatpush1.bf16.msra.mxu0 0
    %1984 = vmatprep.subr.bf16.mxu0 0
    %1985 = vmatpush1.bf16.msra.mxu0 0
    %1986 = vmatprep.subr.bf16.mxu0 0
    %1987 = vmatpush1.bf16.msra.mxu0 0
    %1988 = vmatprep.mubr.bf16.mxu0 0
    %1989 = vmatmul.mubr.bf16.gmra.mrb[0].mxu0 %v1363
    %v1990 = vpop.f32.mrb[0].mxu0
    %v1991 = vadd.f32 %v1951, %v1990
    %v1992 = vpop.f32.mrb[0].mxu0
    %v1993 = vpop.f32.mrb[0].mxu0
    %v1994 = vpop.f32.mrb[0].mxu0
    %1995 = vdwg.mxu0
    %v1996 = vld [vmem:[#allocation7] sm:$0xf]
    %v1997 = vld [vmem:[#allocation7 + $0x4] sm:$0xf]
    %v1998 = vld [vmem:[#allocation7 + $0x8] sm:$0xf]
    %v1999 = vld [vmem:[#allocation7 + $0xc] sm:$0xf]
    %v2000 = vld [vmem:[#allocation7 + $0x10] sm:$0xf]
    %v2001 = vld [vmem:[#allocation7 + $0x14] sm:$0xf]
    %v2002 = vld [vmem:[#allocation7 + $0x18] sm:$0xf]
    %v2003 = vld [vmem:[#allocation7 + $0x1c] sm:$0xf]
    %v2004 = vld [vmem:[#allocation7 + $0x20] sm:$0xf]
    %v2005 = vld [vmem:[#allocation7 + $0x24] sm:$0xf]
    %v2006 = vld [vmem:[#allocation7 + $0x28] sm:$0xf]
    %v2007 = vld [vmem:[#allocation7 + $0x2c] sm:$0xf]
    %v2008 = vld [vmem:[#allocation7 + $0x30] sm:$0xf]
    %v2009 = vld [vmem:[#allocation7 + $0x34] sm:$0xf]
    %v2010 = vld [vmem:[#allocation7 + $0x38] sm:$0xf]
    %v2011 = vld [vmem:[#allocation7 + $0x3c] sm:$0xf]
    %v2012 = vld [vmem:[#allocation7 + $0x40] sm:$0xf]
    %v2013 = vld [vmem:[#allocation7 + $0x44] sm:$0xf]
    %v2014 = vld [vmem:[#allocation7 + $0x48] sm:$0xf]
    %v2015 = vld [vmem:[#allocation7 + $0x4c] sm:$0xf]
    %v2016 = vld [vmem:[#allocation7 + $0x50] sm:$0xf]
    %v2017 = vld [vmem:[#allocation7 + $0x54] sm:$0xf]
    %v2018 = vld [vmem:[#allocation7 + $0x58] sm:$0xf]
    %v2019 = vld [vmem:[#allocation7 + $0x5c] sm:$0xf]
    %v2020 = vld [vmem:[#allocation7 + $0x60] sm:$0xf]
    %v2021 = vld [vmem:[#allocation7 + $0x64] sm:$0xf]
    %v2022 = vld [vmem:[#allocation7 + $0x68] sm:$0xf]
    %v2023 = vld [vmem:[#allocation7 + $0x6c] sm:$0xf]
    %v2024 = vld [vmem:[#allocation7 + $0x70] sm:$0xf]
    %v2025 = vld [vmem:[#allocation7 + $0x74] sm:$0xf]
    %v2026 = vld [vmem:[#allocation7 + $0x78] sm:$0xf]
    %v2027 = vld [vmem:[#allocation7 + $0x7c] sm:$0xf]
    %v2028 = vld [vmem:[#allocation7 + $0x80] sm:$0xf]
    %v2029 = vld [vmem:[#allocation7 + $0x84] sm:$0xf]
    %v2030 = vld [vmem:[#allocation7 + $0x88] sm:$0xf]
    %v2031 = vld [vmem:[#allocation7 + $0x8c] sm:$0xf]
    %v2032 = vld [vmem:[#allocation7 + $0x90] sm:$0xf]
    %v2033 = vld [vmem:[#allocation7 + $0x94] sm:$0xf]
    %v2034 = vld [vmem:[#allocation7 + $0x98] sm:$0xf]
    %v2035 = vld [vmem:[#allocation7 + $0x9c] sm:$0xf]
    %v2036 = vld [vmem:[#allocation7 + $0xa0] sm:$0xf]
    %v2037 = vld [vmem:[#allocation7 + $0xa4] sm:$0xf]
    %v2038 = vld [vmem:[#allocation7 + $0xa8] sm:$0xf]
    %v2039 = vld [vmem:[#allocation7 + $0xac] sm:$0xf]
    %v2040 = vld [vmem:[#allocation7 + $0xb0] sm:$0xf]
    %v2041 = vld [vmem:[#allocation7 + $0xb4] sm:$0xf]
    %v2042 = vld [vmem:[#allocation7 + $0xb8] sm:$0xf]
    %v2043 = vld [vmem:[#allocation7 + $0xbc] sm:$0xf]
    %v2044 = vld [vmem:[#allocation7 + $0xc0] sm:$0xf]
    %v2045 = vld [vmem:[#allocation7 + $0xc4] sm:$0xf]
    %v2046 = vld [vmem:[#allocation7 + $0xc8] sm:$0xf]
    %v2047 = vld [vmem:[#allocation7 + $0xcc] sm:$0xf]
    %v2048 = vld [vmem:[#allocation7 + $0xd0] sm:$0xf]
    %v2049 = vld [vmem:[#allocation7 + $0xd4] sm:$0xf]
    %v2050 = vld [vmem:[#allocation7 + $0xd8] sm:$0xf]
    %v2051 = vld [vmem:[#allocation7 + $0xdc] sm:$0xf]
    %v2052 = vld [vmem:[#allocation7 + $0xe0] sm:$0xf]
    %v2053 = vld [vmem:[#allocation7 + $0xe4] sm:$0xf]
    %v2054 = vld [vmem:[#allocation7 + $0xe8] sm:$0xf]
    %v2055 = vld [vmem:[#allocation7 + $0xec] sm:$0xf]
    %v2056 = vld [vmem:[#allocation7 + $0xf0] sm:$0xf]
    %v2057 = vld [vmem:[#allocation7 + $0xf4] sm:$0xf]
    %v2058 = vld [vmem:[#allocation7 + $0xf8] sm:$0xf]
    %v2059 = vld [vmem:[#allocation7 + $0xfc] sm:$0xf]
    %v2060 = vld [vmem:[#allocation7 + $0x100] sm:$0xf]
    %v2061 = vld [vmem:[#allocation7 + $0x104] sm:$0xf]
    %v2062 = vld [vmem:[#allocation7 + $0x108] sm:$0xf]
    %v2063 = vld [vmem:[#allocation7 + $0x10c] sm:$0xf]
    %v2064 = vld [vmem:[#allocation7 + $0x110] sm:$0xf]
    %v2065 = vld [vmem:[#allocation7 + $0x114] sm:$0xf]
    %v2066 = vld [vmem:[#allocation7 + $0x118] sm:$0xf]
    %v2067 = vld [vmem:[#allocation7 + $0x11c] sm:$0xf]
    %v2068 = vld [vmem:[#allocation7 + $0x120] sm:$0xf]
    %v2069 = vld [vmem:[#allocation7 + $0x124] sm:$0xf]
    %v2070 = vld [vmem:[#allocation7 + $0x128] sm:$0xf]
    %v2071 = vld [vmem:[#allocation7 + $0x12c] sm:$0xf]
    %v2072 = vld [vmem:[#allocation7 + $0x130] sm:$0xf]
    %v2073 = vld [vmem:[#allocation7 + $0x134] sm:$0xf]
    %v2074 = vld [vmem:[#allocation7 + $0x138] sm:$0xf]
    %v2075 = vld [vmem:[#allocation7 + $0x13c] sm:$0xf]
    %v2076 = vld [vmem:[#allocation7 + $0x140] sm:$0xf]
    %v2077 = vld [vmem:[#allocation7 + $0x144] sm:$0xf]
    %v2078 = vld [vmem:[#allocation7 + $0x148] sm:$0xf]
    %v2079 = vld [vmem:[#allocation7 + $0x14c] sm:$0xf]
    %v2080 = vld [vmem:[#allocation7 + $0x150] sm:$0xf]
    %v2081 = vld [vmem:[#allocation7 + $0x154] sm:$0xf]
    %v2082 = vld [vmem:[#allocation7 + $0x158] sm:$0xf]
    %v2083 = vld [vmem:[#allocation7 + $0x15c] sm:$0xf]
    %v2084 = vld [vmem:[#allocation7 + $0x160] sm:$0xf]
    %v2085 = vld [vmem:[#allocation7 + $0x164] sm:$0xf]
    %v2086 = vld [vmem:[#allocation7 + $0x168] sm:$0xf]
    %v2087 = vld [vmem:[#allocation7 + $0x16c] sm:$0xf]
    %v2088 = vld [vmem:[#allocation7 + $0x170] sm:$0xf]
    %v2089 = vld [vmem:[#allocation7 + $0x174] sm:$0xf]
    %v2090 = vld [vmem:[#allocation7 + $0x178] sm:$0xf]
    %v2091 = vld [vmem:[#allocation7 + $0x17c] sm:$0xf]
    %v2092 = vld [vmem:[#allocation7 + $0x180] sm:$0xf]
    %v2093 = vld [vmem:[#allocation7 + $0x184] sm:$0xf]
    %v2094 = vld [vmem:[#allocation7 + $0x188] sm:$0xf]
    %v2095 = vld [vmem:[#allocation7 + $0x18c] sm:$0xf]
    %v2096 = vld [vmem:[#allocation7 + $0x190] sm:$0xf]
    %v2097 = vld [vmem:[#allocation7 + $0x194] sm:$0xf]
    %v2098 = vld [vmem:[#allocation7 + $0x198] sm:$0xf]
    %v2099 = vld [vmem:[#allocation7 + $0x19c] sm:$0xf]
    %v2100 = vld [vmem:[#allocation7 + $0x1a0] sm:$0xf]
    %v2101 = vld [vmem:[#allocation7 + $0x1a4] sm:$0xf]
    %v2102 = vld [vmem:[#allocation7 + $0x1a8] sm:$0xf]
    %v2103 = vld [vmem:[#allocation7 + $0x1ac] sm:$0xf]
    %v2104 = vld [vmem:[#allocation7 + $0x1b0] sm:$0xf]
    %v2105 = vld [vmem:[#allocation7 + $0x1b4] sm:$0xf]
    %v2106 = vld [vmem:[#allocation7 + $0x1b8] sm:$0xf]
    %v2107 = vld [vmem:[#allocation7 + $0x1bc] sm:$0xf]
    %v2108 = vld [vmem:[#allocation7 + $0x1c0] sm:$0xf]
    %v2109 = vld [vmem:[#allocation7 + $0x1c4] sm:$0xf]
    %v2110 = vld [vmem:[#allocation7 + $0x1c8] sm:$0xf]
    %v2111 = vld [vmem:[#allocation7 + $0x1cc] sm:$0xf]
    %v2112 = vld [vmem:[#allocation7 + $0x1d0] sm:$0xf]
    %v2113 = vld [vmem:[#allocation7 + $0x1d4] sm:$0xf]
    %v2114 = vld [vmem:[#allocation7 + $0x1d8] sm:$0xf]
    %v2115 = vld [vmem:[#allocation7 + $0x1dc] sm:$0xf]
    %v2116 = vld [vmem:[#allocation7 + $0x1e0] sm:$0xf]
    %v2117 = vld [vmem:[#allocation7 + $0x1e4] sm:$0xf]
    %v2118 = vld [vmem:[#allocation7 + $0x1e8] sm:$0xf]
    %v2119 = vld [vmem:[#allocation7 + $0x1ec] sm:$0xf]
    %v2120 = vld [vmem:[#allocation7 + $0x1f0] sm:$0xf]
    %v2121 = vld [vmem:[#allocation7 + $0x1f4] sm:$0xf]
    %v2122 = vld [vmem:[#allocation7 + $0x1f8] sm:$0xf]
    %v2123 = vld [vmem:[#allocation7 + $0x1fc] sm:$0xf]
    %v2124 = vld [vmem:[#allocation7 + $0x200] sm:$0xf]
    %v2125 = vld [vmem:[#allocation7 + $0x204] sm:$0xf]
    %v2126 = vld [vmem:[#allocation7 + $0x208] sm:$0xf]
    %v2127 = vld [vmem:[#allocation7 + $0x20c] sm:$0xf]
    %v2128 = vld [vmem:[#allocation7 + $0x210] sm:$0xf]
    %v2129 = vld [vmem:[#allocation7 + $0x214] sm:$0xf]
    %v2130 = vld [vmem:[#allocation7 + $0x218] sm:$0xf]
    %v2131 = vld [vmem:[#allocation7 + $0x21c] sm:$0xf]
    %v2132 = vld [vmem:[#allocation7 + $0x220] sm:$0xf]
    %v2133 = vld [vmem:[#allocation7 + $0x224] sm:$0xf]
    %v2134 = vld [vmem:[#allocation7 + $0x228] sm:$0xf]
    %v2135 = vld [vmem:[#allocation7 + $0x22c] sm:$0xf]
    %v2136 = vld [vmem:[#allocation7 + $0x230] sm:$0xf]
    %v2137 = vld [vmem:[#allocation7 + $0x234] sm:$0xf]
    %v2138 = vld [vmem:[#allocation7 + $0x238] sm:$0xf]
    %v2139 = vld [vmem:[#allocation7 + $0x23c] sm:$0xf]
    %v2140 = vxor.u32 %v1991, 2147483648
    %v2141 = vmul.f32 %v2140, 1.442695
    %v2142 = vpow.pop %v2141
    %v2143 = vadd.f32 %v2142, 1.0
    %v2144 = vrcp.pop %v2143
    %v2145 = vmul.f32 1.0, %v2144
    %v2146 = vmul.f32 %v1991, %v2145
    %v2147 = vsub.f32 %v1991, -2.2
    %v2148 = vsub.f32 %v1991, -1.8
    %v2149 = vsub.f32 %v1991, -1.4
    %v2150 = vsub.f32 %v1991, -1.0
    %v2151 = vsub.f32 %v1991, -0.6
    %v2152 = vsub.f32 %v1991, -0.2
    %v2153 = vsub.f32 %v1991, 0.2
    %v2154 = vsub.f32 %v1991, 0.6
    %v2155 = vsub.f32 %v1991, 1.0
    %v2156 = vsub.f32 %v1991, 1.4
    %v2157 = vsub.f32 %v1991, 1.8
    %v2158 = vsub.f32 %v1991, 2.2
    %vm2159 = vcmp.ge.f32.partialorder %v1991, -2.2
    %v2160 = vsel %vm2159, 1, 0
    %v2161 = vcvt.s32.f32 %v2160
    %vm2162 = vcmp.ge.f32.partialorder %v1991, -1.8
    %v2163 = vsel %vm2162, 1, 0
    %v2164 = vcvt.s32.f32 %v2163
    %vm2165 = vcmp.ge.f32.partialorder %v1991, -1.4
    %v2166 = vsel %vm2165, 1, 0
    %v2167 = vcvt.s32.f32 %v2166
    %vm2168 = vcmp.ge.f32.partialorder %v1991, -1.0
    %v2169 = vsel %vm2168, 1, 0
    %v2170 = vcvt.s32.f32 %v2169
    %vm2171 = vcmp.ge.f32.partialorder %v1991, -0.6
    %v2172 = vsel %vm2171, 1, 0
    %v2173 = vcvt.s32.f32 %v2172
    %vm2174 = vcmp.ge.f32.partialorder %v1991, -0.2
    %v2175 = vsel %vm2174, 1, 0
    %v2176 = vcvt.s32.f32 %v2175
    %vm2177 = vcmp.ge.f32.partialorder %v1991, 0.2
    %v2178 = vsel %vm2177, 1, 0
    %v2179 = vcvt.s32.f32 %v2178
    %vm2180 = vcmp.ge.f32.partialorder %v1991, 0.6
    %v2181 = vsel %vm2180, 1, 0
    %v2182 = vcvt.s32.f32 %v2181
    %vm2183 = vcmp.ge.f32.partialorder %v1991, 1.0
    %v2184 = vsel %vm2183, 1, 0
    %v2185 = vcvt.s32.f32 %v2184
    %vm2186 = vcmp.ge.f32.partialorder %v1991, 1.4
    %v2187 = vsel %vm2186, 1, 0
    %v2188 = vcvt.s32.f32 %v2187
    %vm2189 = vcmp.ge.f32.partialorder %v1991, 1.8
    %v2190 = vsel %vm2189, 1, 0
    %v2191 = vcvt.s32.f32 %v2190
    %vm2192 = vcmp.ge.f32.partialorder %v1991, 2.2
    %v2193 = vsel %vm2192, 1, 0
    %v2194 = vcvt.s32.f32 %v2193
    %v2195 = vsub.f32 %v2161, %v2164
    %v2196 = vsub.f32 %v2164, %v2167
    %v2197 = vsub.f32 %v2167, %v2170
    %v2198 = vsub.f32 %v2170, %v2173
    %v2199 = vsub.f32 %v2173, %v2176
    %v2200 = vsub.f32 %v2176, %v2179
    %v2201 = vsub.f32 %v2179, %v2182
    %v2202 = vsub.f32 %v2182, %v2185
    %v2203 = vsub.f32 %v2185, %v2188
    %v2204 = vsub.f32 %v2188, %v2191
    %v2205 = vsub.f32 %v2191, %v2194
    %v2206 = vmul.f32 %v2147, %v2195
    %v2207 = vmul.f32 %v2149, %v2196
    %v2208 = vsub.f32 %v2206, %v2207
    %v2209 = vmul.f32 %v2208, 2.5
    %v2210 = vmul.f32 %v2148, %v2196
    %v2211 = vmul.f32 %v2150, %v2197
    %v2212 = vsub.f32 %v2210, %v2211
    %v2213 = vmul.f32 %v2212, 2.5
    %v2214 = vmul.f32 %v2149, %v2197
    %v2215 = vmul.f32 %v2151, %v2198
    %v2216 = vsub.f32 %v2214, %v2215
    %v2217 = vmul.f32 %v2216, 2.5
    %v2218 = vmul.f32 %v2150, %v2198
    %v2219 = vmul.f32 %v2152, %v2199
    %v2220 = vsub.f32 %v2218, %v2219
    %v2221 = vmul.f32 %v2220, 2.5
    %v2222 = vmul.f32 %v2151, %v2199
    %v2223 = vmul.f32 %v2153, %v2200
    %v2224 = vsub.f32 %v2222, %v2223
    %v2225 = vmul.f32 %v2224, 2.5
    %v2226 = vmul.f32 %v2152, %v2200
    %v2227 = vmul.f32 %v2154, %v2201
    %v2228 = vsub.f32 %v2226, %v2227
    %v2229 = vmul.f32 %v2228, 2.5
    %v2230 = vmul.f32 %v2153, %v2201
    %v2231 = vmul.f32 %v2155, %v2202
    %v2232 = vsub.f32 %v2230, %v2231
    %v2233 = vmul.f32 %v2232, 2.5
    %v2234 = vmul.f32 %v2154, %v2202
    %v2235 = vmul.f32 %v2156, %v2203
    %v2236 = vsub.f32 %v2234, %v2235
    %v2237 = vmul.f32 %v2236, 2.5
    %v2238 = vmul.f32 %v2155, %v2203
    %v2239 = vmul.f32 %v2157, %v2204
    %v2240 = vsub.f32 %v2238, %v2239
    %v2241 = vmul.f32 %v2240, 2.5
    %v2242 = vmul.f32 %v2156, %v2204
    %v2243 = vmul.f32 %v2158, %v2205
    %v2244 = vsub.f32 %v2242, %v2243
    %v2245 = vmul.f32 %v2244, 2.5
    %v2246 = vmul.f32 %v2147, %v2209
    %v2247 = vmul.f32 %v2150, %v2213
    %v2248 = vsub.f32 %v2246, %v2247
    %v2249 = vmul.f32 %v2248, 1.25
    %v2250 = vmul.f32 %v2148, %v2213
    %v2251 = vmul.f32 %v2151, %v2217
    %v2252 = vsub.f32 %v2250, %v2251
    %v2253 = vmul.f32 %v2252, 1.25
    %v2254 = vmul.f32 %v2149, %v2217
    %v2255 = vmul.f32 %v2152, %v2221
    %v2256 = vsub.f32 %v2254, %v2255
    %v2257 = vmul.f32 %v2256, 1.25
    %v2258 = vmul.f32 %v2150, %v2221
    %v2259 = vmul.f32 %v2153, %v2225
    %v2260 = vsub.f32 %v2258, %v2259
    %v2261 = vmul.f32 %v2260, 1.25
    %v2262 = vmul.f32 %v2151, %v2225
    %v2263 = vmul.f32 %v2154, %v2229
    %v2264 = vsub.f32 %v2262, %v2263
    %v2265 = vmul.f32 %v2264, 1.25
    %v2266 = vmul.f32 %v2152, %v2229
    %v2267 = vmul.f32 %v2155, %v2233
    %v2268 = vsub.f32 %v2266, %v2267
    %v2269 = vmul.f32 %v2268, 1.25
    %v2270 = vmul.f32 %v2153, %v2233
    %v2271 = vmul.f32 %v2156, %v2237
    %v2272 = vsub.f32 %v2270, %v2271
    %v2273 = vmul.f32 %v2272, 1.25
    %v2274 = vmul.f32 %v2154, %v2237
    %v2275 = vmul.f32 %v2157, %v2241
    %v2276 = vsub.f32 %v2274, %v2275
    %v2277 = vmul.f32 %v2276, 1.25
    %v2278 = vmul.f32 %v2155, %v2241
    %v2279 = vmul.f32 %v2158, %v2245
    %v2280 = vsub.f32 %v2278, %v2279
    %v2281 = vmul.f32 %v2280, 1.25
    %v2282 = vmul.f32 %v2147, %v2249
    %v2283 = vmul.f32 %v2151, %v2253
    %v2284 = vsub.f32 %v2282, %v2283
    %v2285 = vmul.f32 %v2284, 0.8333333
    %v2286 = vmul.f32 %v2148, %v2253
    %v2287 = vmul.f32 %v2152, %v2257
    %v2288 = vsub.f32 %v2286, %v2287
    %v2289 = vmul.f32 %v2288, 0.8333333
    %v2290 = vmul.f32 %v2149, %v2257
    %v2291 = vmul.f32 %v2153, %v2261
    %v2292 = vsub.f32 %v2290, %v2291
    %v2293 = vmul.f32 %v2292, 0.8333333
    %v2294 = vmul.f32 %v2150, %v2261
    %v2295 = vmul.f32 %v2154, %v2265
    %v2296 = vsub.f32 %v2294, %v2295
    %v2297 = vmul.f32 %v2296, 0.8333333
    %v2298 = vmul.f32 %v2151, %v2265
    %v2299 = vmul.f32 %v2155, %v2269
    %v2300 = vsub.f32 %v2298, %v2299
    %v2301 = vmul.f32 %v2300, 0.8333333
    %v2302 = vmul.f32 %v2152, %v2269
    %v2303 = vmul.f32 %v2156, %v2273
    %v2304 = vsub.f32 %v2302, %v2303
    %v2305 = vmul.f32 %v2304, 0.8333333
    %v2306 = vmul.f32 %v2153, %v2273
    %v2307 = vmul.f32 %v2157, %v2277
    %v2308 = vsub.f32 %v2306, %v2307
    %v2309 = vmul.f32 %v2308, 0.8333333
    %v2310 = vmul.f32 %v2154, %v2277
    %v2311 = vmul.f32 %v2158, %v2281
    %v2312 = vsub.f32 %v2310, %v2311
    %v2313 = vmul.f32 %v2312, 0.8333333
    %v2314 = vpack.c.bf16 %v2146, %v2146
    %v2315 = vpack.c.bf16 %v2285, %v2285
    %v2316 = vpack.c.bf16 %v2289, %v2289
    %v2317 = vpack.c.bf16 %v2293, %v2293
    %v2318 = vpack.c.bf16 %v2297, %v2297
    %v2319 = vpack.c.bf16 %v2301, %v2301
    %v2320 = vpack.c.bf16 %v2305, %v2305
    %v2321 = vpack.c.bf16 %v2309, %v2309
    %v2322 = vpack.c.bf16 %v2313, %v2313
    %v2467 = vunpack.c.l.b16 %v1996
    %v2468 = vunpack.c.l.b16 %v1997
    %v2469 = vunpack.c.l.b16 %v1998
    %v2470 = vunpack.c.l.b16 %v1999
    %v2471 = vunpack.c.l.b16 %v2000
    %v2472 = vunpack.c.l.b16 %v2001
    %v2473 = vunpack.c.l.b16 %v2002
    %v2474 = vunpack.c.l.b16 %v2003
    %v2475 = vunpack.c.l.b16 %v2004
    %v2476 = vunpack.c.l.b16 %v2005
    %v2477 = vunpack.c.l.b16 %v2006
    %v2478 = vunpack.c.l.b16 %v2007
    %v2479 = vunpack.c.l.b16 %v2008
    %v2480 = vunpack.c.l.b16 %v2009
    %v2481 = vunpack.c.l.b16 %v2010
    %v2482 = vunpack.c.l.b16 %v2011
    %v2483 = vunpack.c.l.b16 %v2012
    %v2484 = vunpack.c.l.b16 %v2013
    %v2485 = vunpack.c.l.b16 %v2014
    %v2486 = vunpack.c.l.b16 %v2015
    %v2487 = vunpack.c.l.b16 %v2016
    %v2488 = vunpack.c.l.b16 %v2017
    %v2489 = vunpack.c.l.b16 %v2018
    %v2490 = vunpack.c.l.b16 %v2019
    %v2491 = vunpack.c.l.b16 %v2020
    %v2492 = vunpack.c.l.b16 %v2021
    %v2493 = vunpack.c.l.b16 %v2022
    %v2494 = vunpack.c.l.b16 %v2023
    %v2495 = vunpack.c.l.b16 %v2024
    %v2496 = vunpack.c.l.b16 %v2025
    %v2497 = vunpack.c.l.b16 %v2026
    %v2498 = vunpack.c.l.b16 %v2027
    %v2499 = vunpack.c.l.b16 %v2028
    %v2500 = vunpack.c.l.b16 %v2029
    %v2501 = vunpack.c.l.b16 %v2030
    %v2502 = vunpack.c.l.b16 %v2031
    %v2503 = vunpack.c.l.b16 %v2032
    %v2504 = vunpack.c.l.b16 %v2033
    %v2505 = vunpack.c.l.b16 %v2034
    %v2506 = vunpack.c.l.b16 %v2035
    %v2507 = vunpack.c.l.b16 %v2036
    %v2508 = vunpack.c.l.b16 %v2037
    %v2509 = vunpack.c.l.b16 %v2038
    %v2510 = vunpack.c.l.b16 %v2039
    %v2511 = vunpack.c.l.b16 %v2040
    %v2512 = vunpack.c.l.b16 %v2041
    %v2513 = vunpack.c.l.b16 %v2042
    %v2514 = vunpack.c.l.b16 %v2043
    %v2515 = vunpack.c.l.b16 %v2044
    %v2516 = vunpack.c.l.b16 %v2045
    %v2517 = vunpack.c.l.b16 %v2046
    %v2518 = vunpack.c.l.b16 %v2047
    %v2519 = vunpack.c.l.b16 %v2048
    %v2520 = vunpack.c.l.b16 %v2049
    %v2521 = vunpack.c.l.b16 %v2050
    %v2522 = vunpack.c.l.b16 %v2051
    %v2523 = vunpack.c.l.b16 %v2052
    %v2524 = vunpack.c.l.b16 %v2053
    %v2525 = vunpack.c.l.b16 %v2054
    %v2526 = vunpack.c.l.b16 %v2055
    %v2527 = vunpack.c.l.b16 %v2056
    %v2528 = vunpack.c.l.b16 %v2057
    %v2529 = vunpack.c.l.b16 %v2058
    %v2530 = vunpack.c.l.b16 %v2059
    %v2531 = vunpack.c.l.b16 %v2060
    %v2532 = vunpack.c.l.b16 %v2061
    %v2533 = vunpack.c.l.b16 %v2062
    %v2534 = vunpack.c.l.b16 %v2063
    %v2535 = vunpack.c.l.b16 %v2064
    %v2536 = vunpack.c.l.b16 %v2065
    %v2537 = vunpack.c.l.b16 %v2066
    %v2538 = vunpack.c.l.b16 %v2067
    %v2539 = vunpack.c.l.b16 %v2068
    %v2540 = vunpack.c.l.b16 %v2069
    %v2541 = vunpack.c.l.b16 %v2070
    %v2542 = vunpack.c.l.b16 %v2071
    %v2543 = vunpack.c.l.b16 %v2072
    %v2544 = vunpack.c.l.b16 %v2073
    %v2545 = vunpack.c.l.b16 %v2074
    %v2546 = vunpack.c.l.b16 %v2075
    %v2547 = vunpack.c.l.b16 %v2076
    %v2548 = vunpack.c.l.b16 %v2077
    %v2549 = vunpack.c.l.b16 %v2078
    %v2550 = vunpack.c.l.b16 %v2079
    %v2551 = vunpack.c.l.b16 %v2080
    %v2552 = vunpack.c.l.b16 %v2081
    %v2553 = vunpack.c.l.b16 %v2082
    %v2554 = vunpack.c.l.b16 %v2083
    %v2555 = vunpack.c.l.b16 %v2084
    %v2556 = vunpack.c.l.b16 %v2085
    %v2557 = vunpack.c.l.b16 %v2086
    %v2558 = vunpack.c.l.b16 %v2087
    %v2559 = vunpack.c.l.b16 %v2088
    %v2560 = vunpack.c.l.b16 %v2089
    %v2561 = vunpack.c.l.b16 %v2090
    %v2562 = vunpack.c.l.b16 %v2091
    %v2563 = vunpack.c.l.b16 %v2092
    %v2564 = vunpack.c.l.b16 %v2093
    %v2565 = vunpack.c.l.b16 %v2094
    %v2566 = vunpack.c.l.b16 %v2095
    %v2567 = vunpack.c.l.b16 %v2096
    %v2568 = vunpack.c.l.b16 %v2097
    %v2569 = vunpack.c.l.b16 %v2098
    %v2570 = vunpack.c.l.b16 %v2099
    %v2571 = vunpack.c.l.b16 %v2100
    %v2572 = vunpack.c.l.b16 %v2101
    %v2573 = vunpack.c.l.b16 %v2102
    %v2574 = vunpack.c.l.b16 %v2103
    %v2575 = vunpack.c.l.b16 %v2104
    %v2576 = vunpack.c.l.b16 %v2105
    %v2577 = vunpack.c.l.b16 %v2106
    %v2578 = vunpack.c.l.b16 %v2107
    %v2579 = vunpack.c.l.b16 %v2108
    %v2580 = vunpack.c.l.b16 %v2109
    %v2581 = vunpack.c.l.b16 %v2110
    %v2582 = vunpack.c.l.b16 %v2111
    %v2583 = vunpack.c.l.b16 %v2112
    %v2584 = vunpack.c.l.b16 %v2113
    %v2585 = vunpack.c.l.b16 %v2114
    %v2586 = vunpack.c.l.b16 %v2115
    %v2587 = vunpack.c.l.b16 %v2116
    %v2588 = vunpack.c.l.b16 %v2117
    %v2589 = vunpack.c.l.b16 %v2118
    %v2590 = vunpack.c.l.b16 %v2119
    %v2591 = vunpack.c.l.b16 %v2120
    %v2592 = vunpack.c.l.b16 %v2121
    %v2593 = vunpack.c.l.b16 %v2122
    %v2594 = vunpack.c.l.b16 %v2123
    %v2595 = vunpack.c.l.b16 %v2124
    %v2596 = vunpack.c.l.b16 %v2125
    %v2597 = vunpack.c.l.b16 %v2126
    %v2598 = vunpack.c.l.b16 %v2127
    %v2599 = vunpack.c.l.b16 %v2128
    %v2600 = vunpack.c.l.b16 %v2129
    %v2601 = vunpack.c.l.b16 %v2130
    %v2602 = vunpack.c.l.b16 %v2131
    %v2603 = vunpack.c.l.b16 %v2132
    %v2604 = vunpack.c.l.b16 %v2133
    %v2605 = vunpack.c.l.b16 %v2134
    %v2606 = vunpack.c.l.b16 %v2135
    %v2607 = vunpack.c.l.b16 %v2136
    %v2608 = vunpack.c.l.b16 %v2137
    %v2609 = vunpack.c.l.b16 %v2138
    %v2610 = vunpack.c.l.b16 %v2139
    %v2611 = vpack.c.b16 %v2468, %v2467
    %v2612 = vpack.c.b16 %v2470, %v2469
    %v2613 = vpack.c.b16 %v2472, %v2471
    %v2614 = vpack.c.b16 %v2474, %v2473
    %v2615 = vpack.c.b16 %v2476, %v2475
    %v2616 = vpack.c.b16 %v2478, %v2477
    %v2617 = vpack.c.b16 %v2480, %v2479
    %v2618 = vpack.c.b16 %v2482, %v2481
    %v2619 = vpack.c.b16 %v2484, %v2483
    %v2620 = vpack.c.b16 %v2486, %v2485
    %v2621 = vpack.c.b16 %v2488, %v2487
    %v2622 = vpack.c.b16 %v2490, %v2489
    %v2623 = vpack.c.b16 %v2492, %v2491
    %v2624 = vpack.c.b16 %v2494, %v2493
    %v2625 = vpack.c.b16 %v2496, %v2495
    %v2626 = vpack.c.b16 %v2498, %v2497
    %v2627 = vpack.c.b16 %v2500, %v2499
    %v2628 = vpack.c.b16 %v2502, %v2501
    %v2629 = vpack.c.b16 %v2504, %v2503
    %v2630 = vpack.c.b16 %v2506, %v2505
    %v2631 = vpack.c.b16 %v2508, %v2507
    %v2632 = vpack.c.b16 %v2510, %v2509
    %v2633 = vpack.c.b16 %v2512, %v2511
    %v2634 = vpack.c.b16 %v2514, %v2513
    %v2635 = vpack.c.b16 %v2516, %v2515
    %v2636 = vpack.c.b16 %v2518, %v2517
    %v2637 = vpack.c.b16 %v2520, %v2519
    %v2638 = vpack.c.b16 %v2522, %v2521
    %v2639 = vpack.c.b16 %v2524, %v2523
    %v2640 = vpack.c.b16 %v2526, %v2525
    %v2641 = vpack.c.b16 %v2528, %v2527
    %v2642 = vpack.c.b16 %v2530, %v2529
    %v2643 = vpack.c.b16 %v2532, %v2531
    %v2644 = vpack.c.b16 %v2534, %v2533
    %v2645 = vpack.c.b16 %v2536, %v2535
    %v2646 = vpack.c.b16 %v2538, %v2537
    %v2647 = vpack.c.b16 %v2540, %v2539
    %v2648 = vpack.c.b16 %v2542, %v2541
    %v2649 = vpack.c.b16 %v2544, %v2543
    %v2650 = vpack.c.b16 %v2546, %v2545
    %v2651 = vpack.c.b16 %v2548, %v2547
    %v2652 = vpack.c.b16 %v2550, %v2549
    %v2653 = vpack.c.b16 %v2552, %v2551
    %v2654 = vpack.c.b16 %v2554, %v2553
    %v2655 = vpack.c.b16 %v2556, %v2555
    %v2656 = vpack.c.b16 %v2558, %v2557
    %v2657 = vpack.c.b16 %v2560, %v2559
    %v2658 = vpack.c.b16 %v2562, %v2561
    %v2659 = vpack.c.b16 %v2564, %v2563
    %v2660 = vpack.c.b16 %v2566, %v2565
    %v2661 = vpack.c.b16 %v2568, %v2567
    %v2662 = vpack.c.b16 %v2570, %v2569
    %v2663 = vpack.c.b16 %v2572, %v2571
    %v2664 = vpack.c.b16 %v2574, %v2573
    %v2665 = vpack.c.b16 %v2576, %v2575
    %v2666 = vpack.c.b16 %v2578, %v2577
    %v2667 = vpack.c.b16 %v2580, %v2579
    %v2668 = vpack.c.b16 %v2582, %v2581
    %v2669 = vpack.c.b16 %v2584, %v2583
    %v2670 = vpack.c.b16 %v2586, %v2585
    %v2671 = vpack.c.b16 %v2588, %v2587
    %v2672 = vpack.c.b16 %v2590, %v2589
    %v2673 = vpack.c.b16 %v2592, %v2591
    %v2674 = vpack.c.b16 %v2594, %v2593
    %v2675 = vpack.c.b16 %v2596, %v2595
    %v2676 = vpack.c.b16 %v2598, %v2597
    %v2677 = vpack.c.b16 %v2600, %v2599
    %v2678 = vpack.c.b16 %v2602, %v2601
    %v2679 = vpack.c.b16 %v2604, %v2603
    %v2680 = vpack.c.b16 %v2606, %v2605
    %v2681 = vpack.c.b16 %v2608, %v2607
    %v2682 = vpack.c.b16 %v2610, %v2609
    %2755 = vmatprep.subr.bf16.mxu0 0
    %2756 = vmatpush1.bf16.msra.mxu0 %v2611
    %2757 = vmatprep.subr.bf16.mxu0 0
    %2758 = vmatpush1.bf16.msra.mxu0 %v2612
    %2759 = vmatprep.subr.bf16.mxu0 0
    %2760 = vmatpush1.bf16.msra.mxu0 %v2613
    %2761 = vmatprep.subr.bf16.mxu0 0
    %2762 = vmatpush1.bf16.msra.mxu0 %v2614
    %2763 = vmatprep.subr.bf16.mxu0 0
    %2764 = vmatpush1.bf16.msra.mxu0 %v2615
    %2765 = vmatprep.subr.bf16.mxu0 0
    %2766 = vmatpush1.bf16.msra.mxu0 %v2616
    %2767 = vmatprep.subr.bf16.mxu0 0
    %2768 = vmatpush1.bf16.msra.mxu0 %v2617
    %2769 = vmatprep.subr.bf16.mxu0 0
    %2770 = vmatpush1.bf16.msra.mxu0 %v2618
    %2771 = vmatprep.subr.bf16.mxu0 0
    %2772 = vmatpush1.bf16.msra.mxu0 %v2619
    %2773 = vmatprep.subr.bf16.mxu0 0
    %2774 = vmatpush1.bf16.msra.mxu0 %v2620
    %2775 = vmatprep.subr.bf16.mxu0 0
    %2776 = vmatpush1.bf16.msra.mxu0 %v2621
    %2777 = vmatprep.subr.bf16.mxu0 0
    %2778 = vmatpush1.bf16.msra.mxu0 %v2622
    %2779 = vmatprep.subr.bf16.mxu0 0
    %2780 = vmatpush1.bf16.msra.mxu0 %v2623
    %2781 = vmatprep.subr.bf16.mxu0 0
    %2782 = vmatpush1.bf16.msra.mxu0 %v2624
    %2783 = vmatprep.subr.bf16.mxu0 0
    %2784 = vmatpush1.bf16.msra.mxu0 %v2625
    %2785 = vmatprep.subr.bf16.mxu0 0
    %2786 = vmatpush1.bf16.msra.mxu0 %v2626
    %2787 = vmatprep.mubr.bf16.mxu0 %v2315
    %2788 = vmatmul.mubr.bf16.gmra.mrb[0].mxu0 %v2314
    %v2789 = vpop.f32.mrb[0].mxu0
    %v2790 = vadd.f32 0.0, %v2789
    %v2791 = vpop.f32.mrb[0].mxu0
    %v2792 = vpop.f32.mrb[0].mxu0
    %v2793 = vpop.f32.mrb[0].mxu0
    %2794 = vdwg.mxu0
    %2795 = vmatprep.subr.bf16.mxu0 0
    %2796 = vmatpush1.bf16.msra.mxu0 %v2627
    %2797 = vmatprep.subr.bf16.mxu0 0
    %2798 = vmatpush1.bf16.msra.mxu0 %v2628
    %2799 = vmatprep.subr.bf16.mxu0 0
    %2800 = vmatpush1.bf16.msra.mxu0 %v2629
    %2801 = vmatprep.subr.bf16.mxu0 0
    %2802 = vmatpush1.bf16.msra.mxu0 %v2630
    %2803 = vmatprep.subr.bf16.mxu0 0
    %2804 = vmatpush1.bf16.msra.mxu0 %v2631
    %2805 = vmatprep.subr.bf16.mxu0 0
    %2806 = vmatpush1.bf16.msra.mxu0 %v2632
    %2807 = vmatprep.subr.bf16.mxu0 0
    %2808 = vmatpush1.bf16.msra.mxu0 %v2633
    %2809 = vmatprep.subr.bf16.mxu0 0
    %2810 = vmatpush1.bf16.msra.mxu0 %v2634
    %2811 = vmatprep.subr.bf16.mxu0 0
    %2812 = vmatpush1.bf16.msra.mxu0 %v2635
    %2813 = vmatprep.subr.bf16.mxu0 0
    %2814 = vmatpush1.bf16.msra.mxu0 %v2636
    %2815 = vmatprep.subr.bf16.mxu0 0
    %2816 = vmatpush1.bf16.msra.mxu0 %v2637
    %2817 = vmatprep.subr.bf16.mxu0 0
    %2818 = vmatpush1.bf16.msra.mxu0 %v2638
    %2819 = vmatprep.subr.bf16.mxu0 0
    %2820 = vmatpush1.bf16.msra.mxu0 %v2639
    %2821 = vmatprep.subr.bf16.mxu0 0
    %2822 = vmatpush1.bf16.msra.mxu0 %v2640
    %2823 = vmatprep.subr.bf16.mxu0 0
    %2824 = vmatpush1.bf16.msra.mxu0 %v2641
    %2825 = vmatprep.subr.bf16.mxu0 0
    %2826 = vmatpush1.bf16.msra.mxu0 %v2642
    %2827 = vmatprep.mubr.bf16.mxu0 %v2317
    %2828 = vmatmul.mubr.bf16.gmra.mrb[0].mxu0 %v2316
    %v2829 = vpop.f32.mrb[0].mxu0
    %v2830 = vadd.f32 %v2790, %v2829
    %v2831 = vpop.f32.mrb[0].mxu0
    %v2832 = vpop.f32.mrb[0].mxu0
    %v2833 = vpop.f32.mrb[0].mxu0
    %2834 = vdwg.mxu0
    %2835 = vmatprep.subr.bf16.mxu0 0
    %2836 = vmatpush1.bf16.msra.mxu0 %v2643
    %2837 = vmatprep.subr.bf16.mxu0 0
    %2838 = vmatpush1.bf16.msra.mxu0 %v2644
    %2839 = vmatprep.subr.bf16.mxu0 0
    %2840 = vmatpush1.bf16.msra.mxu0 %v2645
    %2841 = vmatprep.subr.bf16.mxu0 0
    %2842 = vmatpush1.bf16.msra.mxu0 %v2646
    %2843 = vmatprep.subr.bf16.mxu0 0
    %2844 = vmatpush1.bf16.msra.mxu0 %v2647
    %2845 = vmatprep.subr.bf16.mxu0 0
    %2846 = vmatpush1.bf16.msra.mxu0 %v2648
    %2847 = vmatprep.subr.bf16.mxu0 0
    %2848 = vmatpush1.bf16.msra.mxu0 %v2649
    %2849 = vmatprep.subr.bf16.mxu0 0
    %2850 = vmatpush1.bf16.msra.mxu0 %v2650
    %2851 = vmatprep.subr.bf16.mxu0 0
    %2852 = vmatpush1.bf16.msra.mxu0 %v2651
    %2853 = vmatprep.subr.bf16.mxu0 0
    %2854 = vmatpush1.bf16.msra.mxu0 %v2652
    %2855 = vmatprep.subr.bf16.mxu0 0
    %2856 = vmatpush1.bf16.msra.mxu0 %v2653
    %2857 = vmatprep.subr.bf16.mxu0 0
    %2858 = vmatpush1.bf16.msra.mxu0 %v2654
    %2859 = vmatprep.subr.bf16.mxu0 0
    %2860 = vmatpush1.bf16.msra.mxu0 %v2655
    %2861 = vmatprep.subr.bf16.mxu0 0
    %2862 = vmatpush1.bf16.msra.mxu0 %v2656
    %2863 = vmatprep.subr.bf16.mxu0 0
    %2864 = vmatpush1.bf16.msra.mxu0 %v2657
    %2865 = vmatprep.subr.bf16.mxu0 0
    %2866 = vmatpush1.bf16.msra.mxu0 %v2658
    %2867 = vmatprep.mubr.bf16.mxu0 %v2319
    %2868 = vmatmul.mubr.bf16.gmra.mrb[0].mxu0 %v2318
    %v2869 = vpop.f32.mrb[0].mxu0
    %v2870 = vadd.f32 %v2830, %v2869
    %v2871 = vpop.f32.mrb[0].mxu0
    %v2872 = vpop.f32.mrb[0].mxu0
    %v2873 = vpop.f32.mrb[0].mxu0
    %2874 = vdwg.mxu0
    %2875 = vmatprep.subr.bf16.mxu0 0
    %2876 = vmatpush1.bf16.msra.mxu0 %v2659
    %2877 = vmatprep.subr.bf16.mxu0 0
    %2878 = vmatpush1.bf16.msra.mxu0 %v2660
    %2879 = vmatprep.subr.bf16.mxu0 0
    %2880 = vmatpush1.bf16.msra.mxu0 %v2661
    %2881 = vmatprep.subr.bf16.mxu0 0
    %2882 = vmatpush1.bf16.msra.mxu0 %v2662
    %2883 = vmatprep.subr.bf16.mxu0 0
    %2884 = vmatpush1.bf16.msra.mxu0 %v2663
    %2885 = vmatprep.subr.bf16.mxu0 0
    %2886 = vmatpush1.bf16.msra.mxu0 %v2664
    %2887 = vmatprep.subr.bf16.mxu0 0
    %2888 = vmatpush1.bf16.msra.mxu0 %v2665
    %2889 = vmatprep.subr.bf16.mxu0 0
    %2890 = vmatpush1.bf16.msra.mxu0 %v2666
    %2891 = vmatprep.subr.bf16.mxu0 0
    %2892 = vmatpush1.bf16.msra.mxu0 %v2667
    %2893 = vmatprep.subr.bf16.mxu0 0
    %2894 = vmatpush1.bf16.msra.mxu0 %v2668
    %2895 = vmatprep.subr.bf16.mxu0 0
    %2896 = vmatpush1.bf16.msra.mxu0 %v2669
    %2897 = vmatprep.subr.bf16.mxu0 0
    %2898 = vmatpush1.bf16.msra.mxu0 %v2670
    %2899 = vmatprep.subr.bf16.mxu0 0
    %2900 = vmatpush1.bf16.msra.mxu0 %v2671
    %2901 = vmatprep.subr.bf16.mxu0 0
    %2902 = vmatpush1.bf16.msra.mxu0 %v2672
    %2903 = vmatprep.subr.bf16.mxu0 0
    %2904 = vmatpush1.bf16.msra.mxu0 %v2673
    %2905 = vmatprep.subr.bf16.mxu0 0
    %2906 = vmatpush1.bf16.msra.mxu0 %v2674
    %2907 = vmatprep.mubr.bf16.mxu0 %v2321
    %2908 = vmatmul.mubr.bf16.gmra.mrb[0].mxu0 %v2320
    %v2909 = vpop.f32.mrb[0].mxu0
    %v2910 = vadd.f32 %v2870, %v2909
    %v2911 = vpop.f32.mrb[0].mxu0
    %v2912 = vpop.f32.mrb[0].mxu0
    %v2913 = vpop.f32.mrb[0].mxu0
    %2914 = vdwg.mxu0
    %2915 = vmatprep.subr.bf16.mxu0 0
    %2916 = vmatpush1.bf16.msra.mxu0 %v2675
    %2917 = vmatprep.subr.bf16.mxu0 0
    %2918 = vmatpush1.bf16.msra.mxu0 %v2676
    %2919 = vmatprep.subr.bf16.mxu0 0
    %2920 = vmatpush1.bf16.msra.mxu0 %v2677
    %2921 = vmatprep.subr.bf16.mxu0 0
    %2922 = vmatpush1.bf16.msra.mxu0 %v2678
    %2923 = vmatprep.subr.bf16.mxu0 0
    %2924 = vmatpush1.bf16.msra.mxu0 %v2679
    %2925 = vmatprep.subr.bf16.mxu0 0
    %2926 = vmatpush1.bf16.msra.mxu0 %v2680
    %2927 = vmatprep.subr.bf16.mxu0 0
    %2928 = vmatpush1.bf16.msra.mxu0 %v2681
    %2929 = vmatprep.subr.bf16.mxu0 0
    %2930 = vmatpush1.bf16.msra.mxu0 %v2682
    %2931 = vmatprep.subr.bf16.mxu0 0
    %2932 = vmatpush1.bf16.msra.mxu0 0
    %2933 = vmatprep.subr.bf16.mxu0 0
    %2934 = vmatpush1.bf16.msra.mxu0 0
    %2935 = vmatprep.subr.bf16.mxu0 0
    %2936 = vmatpush1.bf16.msra.mxu0 0
    %2937 = vmatprep.subr.bf16.mxu0 0
    %2938 = vmatpush1.bf16.msra.mxu0 0
    %2939 = vmatprep.subr.bf16.mxu0 0
    %2940 = vmatpush1.bf16.msra.mxu0 0
    %2941 = vmatprep.subr.bf16.mxu0 0
    %2942 = vmatpush1.bf16.msra.mxu0 0
    %2943 = vmatprep.subr.bf16.mxu0 0
    %2944 = vmatpush1.bf16.msra.mxu0 0
    %2945 = vmatprep.subr.bf16.mxu0 0
    %2946 = vmatpush1.bf16.msra.mxu0 0
    %2947 = vmatprep.mubr.bf16.mxu0 0
    %2948 = vmatmul.mubr.bf16.gmra.mrb[0].mxu0 %v2322
    %v2949 = vpop.f32.mrb[0].mxu0
    %v2950 = vadd.f32 %v2910, %v2949
    %v2951 = vpop.f32.mrb[0].mxu0
    %v2952 = vpop.f32.mrb[0].mxu0
    %v2953 = vpop.f32.mrb[0].mxu0
    %2954 = vdwg.mxu0
    %v2955 = vld [vmem:[#allocation8] sm:$0xf]
    %v2956 = vld [vmem:[#allocation8 + $0x4] sm:$0xf]
    %v2957 = vld [vmem:[#allocation8 + $0x8] sm:$0xf]
    %v2958 = vld [vmem:[#allocation8 + $0xc] sm:$0xf]
    %v2959 = vld [vmem:[#allocation8 + $0x10] sm:$0xf]
    %v2960 = vld [vmem:[#allocation8 + $0x14] sm:$0xf]
    %v2961 = vld [vmem:[#allocation8 + $0x18] sm:$0xf]
    %v2962 = vld [vmem:[#allocation8 + $0x1c] sm:$0xf]
    %v2963 = vld [vmem:[#allocation8 + $0x20] sm:$0xf]
    %v2964 = vld [vmem:[#allocation8 + $0x24] sm:$0xf]
    %v2965 = vld [vmem:[#allocation8 + $0x28] sm:$0xf]
    %v2966 = vld [vmem:[#allocation8 + $0x2c] sm:$0xf]
    %v2967 = vld [vmem:[#allocation8 + $0x30] sm:$0xf]
    %v2968 = vld [vmem:[#allocation8 + $0x34] sm:$0xf]
    %v2969 = vld [vmem:[#allocation8 + $0x38] sm:$0xf]
    %v2970 = vld [vmem:[#allocation8 + $0x3c] sm:$0xf]
    %v2971 = vld [vmem:[#allocation8 + $0x40] sm:$0xf]
    %v2972 = vld [vmem:[#allocation8 + $0x44] sm:$0xf]
    %v2973 = vld [vmem:[#allocation8 + $0x48] sm:$0xf]
    %v2974 = vld [vmem:[#allocation8 + $0x4c] sm:$0xf]
    %v2975 = vld [vmem:[#allocation8 + $0x50] sm:$0xf]
    %v2976 = vld [vmem:[#allocation8 + $0x54] sm:$0xf]
    %v2977 = vld [vmem:[#allocation8 + $0x58] sm:$0xf]
    %v2978 = vld [vmem:[#allocation8 + $0x5c] sm:$0xf]
    %v2979 = vld [vmem:[#allocation8 + $0x60] sm:$0xf]
    %v2980 = vld [vmem:[#allocation8 + $0x64] sm:$0xf]
    %v2981 = vld [vmem:[#allocation8 + $0x68] sm:$0xf]
    %v2982 = vld [vmem:[#allocation8 + $0x6c] sm:$0xf]
    %v2983 = vld [vmem:[#allocation8 + $0x70] sm:$0xf]
    %v2984 = vld [vmem:[#allocation8 + $0x74] sm:$0xf]
    %v2985 = vld [vmem:[#allocation8 + $0x78] sm:$0xf]
    %v2986 = vld [vmem:[#allocation8 + $0x7c] sm:$0xf]
    %v2987 = vld [vmem:[#allocation8 + $0x80] sm:$0xf]
    %v2988 = vld [vmem:[#allocation8 + $0x84] sm:$0xf]
    %v2989 = vld [vmem:[#allocation8 + $0x88] sm:$0xf]
    %v2990 = vld [vmem:[#allocation8 + $0x8c] sm:$0xf]
    %v2991 = vld [vmem:[#allocation8 + $0x90] sm:$0xf]
    %v2992 = vld [vmem:[#allocation8 + $0x94] sm:$0xf]
    %v2993 = vld [vmem:[#allocation8 + $0x98] sm:$0xf]
    %v2994 = vld [vmem:[#allocation8 + $0x9c] sm:$0xf]
    %v2995 = vld [vmem:[#allocation8 + $0xa0] sm:$0xf]
    %v2996 = vld [vmem:[#allocation8 + $0xa4] sm:$0xf]
    %v2997 = vld [vmem:[#allocation8 + $0xa8] sm:$0xf]
    %v2998 = vld [vmem:[#allocation8 + $0xac] sm:$0xf]
    %v2999 = vld [vmem:[#allocation8 + $0xb0] sm:$0xf]
    %v3000 = vld [vmem:[#allocation8 + $0xb4] sm:$0xf]
    %v3001 = vld [vmem:[#allocation8 + $0xb8] sm:$0xf]
    %v3002 = vld [vmem:[#allocation8 + $0xbc] sm:$0xf]
    %v3003 = vld [vmem:[#allocation8 + $0xc0] sm:$0xf]
    %v3004 = vld [vmem:[#allocation8 + $0xc4] sm:$0xf]
    %v3005 = vld [vmem:[#allocation8 + $0xc8] sm:$0xf]
    %v3006 = vld [vmem:[#allocation8 + $0xcc] sm:$0xf]
    %v3007 = vld [vmem:[#allocation8 + $0xd0] sm:$0xf]
    %v3008 = vld [vmem:[#allocation8 + $0xd4] sm:$0xf]
    %v3009 = vld [vmem:[#allocation8 + $0xd8] sm:$0xf]
    %v3010 = vld [vmem:[#allocation8 + $0xdc] sm:$0xf]
    %v3011 = vld [vmem:[#allocation8 + $0xe0] sm:$0xf]
    %v3012 = vld [vmem:[#allocation8 + $0xe4] sm:$0xf]
    %v3013 = vld [vmem:[#allocation8 + $0xe8] sm:$0xf]
    %v3014 = vld [vmem:[#allocation8 + $0xec] sm:$0xf]
    %v3015 = vld [vmem:[#allocation8 + $0xf0] sm:$0xf]
    %v3016 = vld [vmem:[#allocation8 + $0xf4] sm:$0xf]
    %v3017 = vld [vmem:[#allocation8 + $0xf8] sm:$0xf]
    %v3018 = vld [vmem:[#allocation8 + $0xfc] sm:$0xf]
    %v3019 = vld [vmem:[#allocation8 + $0x100] sm:$0xf]
    %v3020 = vld [vmem:[#allocation8 + $0x104] sm:$0xf]
    %v3021 = vld [vmem:[#allocation8 + $0x108] sm:$0xf]
    %v3022 = vld [vmem:[#allocation8 + $0x10c] sm:$0xf]
    %v3023 = vld [vmem:[#allocation8 + $0x110] sm:$0xf]
    %v3024 = vld [vmem:[#allocation8 + $0x114] sm:$0xf]
    %v3025 = vld [vmem:[#allocation8 + $0x118] sm:$0xf]
    %v3026 = vld [vmem:[#allocation8 + $0x11c] sm:$0xf]
    %v3027 = vld [vmem:[#allocation8 + $0x120] sm:$0xf]
    %v3028 = vld [vmem:[#allocation8 + $0x124] sm:$0xf]
    %v3029 = vld [vmem:[#allocation8 + $0x128] sm:$0xf]
    %v3030 = vld [vmem:[#allocation8 + $0x12c] sm:$0xf]
    %v3031 = vld [vmem:[#allocation8 + $0x130] sm:$0xf]
    %v3032 = vld [vmem:[#allocation8 + $0x134] sm:$0xf]
    %v3033 = vld [vmem:[#allocation8 + $0x138] sm:$0xf]
    %v3034 = vld [vmem:[#allocation8 + $0x13c] sm:$0xf]
    %v3035 = vld [vmem:[#allocation8 + $0x140] sm:$0xf]
    %v3036 = vld [vmem:[#allocation8 + $0x144] sm:$0xf]
    %v3037 = vld [vmem:[#allocation8 + $0x148] sm:$0xf]
    %v3038 = vld [vmem:[#allocation8 + $0x14c] sm:$0xf]
    %v3039 = vld [vmem:[#allocation8 + $0x150] sm:$0xf]
    %v3040 = vld [vmem:[#allocation8 + $0x154] sm:$0xf]
    %v3041 = vld [vmem:[#allocation8 + $0x158] sm:$0xf]
    %v3042 = vld [vmem:[#allocation8 + $0x15c] sm:$0xf]
    %v3043 = vld [vmem:[#allocation8 + $0x160] sm:$0xf]
    %v3044 = vld [vmem:[#allocation8 + $0x164] sm:$0xf]
    %v3045 = vld [vmem:[#allocation8 + $0x168] sm:$0xf]
    %v3046 = vld [vmem:[#allocation8 + $0x16c] sm:$0xf]
    %v3047 = vld [vmem:[#allocation8 + $0x170] sm:$0xf]
    %v3048 = vld [vmem:[#allocation8 + $0x174] sm:$0xf]
    %v3049 = vld [vmem:[#allocation8 + $0x178] sm:$0xf]
    %v3050 = vld [vmem:[#allocation8 + $0x17c] sm:$0xf]
    %v3051 = vld [vmem:[#allocation8 + $0x180] sm:$0xf]
    %v3052 = vld [vmem:[#allocation8 + $0x184] sm:$0xf]
    %v3053 = vld [vmem:[#allocation8 + $0x188] sm:$0xf]
    %v3054 = vld [vmem:[#allocation8 + $0x18c] sm:$0xf]
    %v3055 = vld [vmem:[#allocation8 + $0x190] sm:$0xf]
    %v3056 = vld [vmem:[#allocation8 + $0x194] sm:$0xf]
    %v3057 = vld [vmem:[#allocation8 + $0x198] sm:$0xf]
    %v3058 = vld [vmem:[#allocation8 + $0x19c] sm:$0xf]
    %v3059 = vld [vmem:[#allocation8 + $0x1a0] sm:$0xf]
    %v3060 = vld [vmem:[#allocation8 + $0x1a4] sm:$0xf]
    %v3061 = vld [vmem:[#allocation8 + $0x1a8] sm:$0xf]
    %v3062 = vld [vmem:[#allocation8 + $0x1ac] sm:$0xf]
    %v3063 = vld [vmem:[#allocation8 + $0x1b0] sm:$0xf]
    %v3064 = vld [vmem:[#allocation8 + $0x1b4] sm:$0xf]
    %v3065 = vld [vmem:[#allocation8 + $0x1b8] sm:$0xf]
    %v3066 = vld [vmem:[#allocation8 + $0x1bc] sm:$0xf]
    %v3067 = vld [vmem:[#allocation8 + $0x1c0] sm:$0xf]
    %v3068 = vld [vmem:[#allocation8 + $0x1c4] sm:$0xf]
    %v3069 = vld [vmem:[#allocation8 + $0x1c8] sm:$0xf]
    %v3070 = vld [vmem:[#allocation8 + $0x1cc] sm:$0xf]
    %v3071 = vld [vmem:[#allocation8 + $0x1d0] sm:$0xf]
    %v3072 = vld [vmem:[#allocation8 + $0x1d4] sm:$0xf]
    %v3073 = vld [vmem:[#allocation8 + $0x1d8] sm:$0xf]
    %v3074 = vld [vmem:[#allocation8 + $0x1dc] sm:$0xf]
    %v3075 = vld [vmem:[#allocation8 + $0x1e0] sm:$0xf]
    %v3076 = vld [vmem:[#allocation8 + $0x1e4] sm:$0xf]
    %v3077 = vld [vmem:[#allocation8 + $0x1e8] sm:$0xf]
    %v3078 = vld [vmem:[#allocation8 + $0x1ec] sm:$0xf]
    %v3079 = vld [vmem:[#allocation8 + $0x1f0] sm:$0xf]
    %v3080 = vld [vmem:[#allocation8 + $0x1f4] sm:$0xf]
    %v3081 = vld [vmem:[#allocation8 + $0x1f8] sm:$0xf]
    %v3082 = vld [vmem:[#allocation8 + $0x1fc] sm:$0xf]
    %v3083 = vld [vmem:[#allocation8 + $0x200] sm:$0xf]
    %v3084 = vld [vmem:[#allocation8 + $0x204] sm:$0xf]
    %v3085 = vld [vmem:[#allocation8 + $0x208] sm:$0xf]
    %v3086 = vld [vmem:[#allocation8 + $0x20c] sm:$0xf]
    %v3087 = vld [vmem:[#allocation8 + $0x210] sm:$0xf]
    %v3088 = vld [vmem:[#allocation8 + $0x214] sm:$0xf]
    %v3089 = vld [vmem:[#allocation8 + $0x218] sm:$0xf]
    %v3090 = vld [vmem:[#allocation8 + $0x21c] sm:$0xf]
    %v3091 = vld [vmem:[#allocation8 + $0x220] sm:$0xf]
    %v3092 = vld [vmem:[#allocation8 + $0x224] sm:$0xf]
    %v3093 = vld [vmem:[#allocation8 + $0x228] sm:$0xf]
    %v3094 = vld [vmem:[#allocation8 + $0x22c] sm:$0xf]
    %v3095 = vld [vmem:[#allocation8 + $0x230] sm:$0xf]
    %v3096 = vld [vmem:[#allocation8 + $0x234] sm:$0xf]
    %v3097 = vld [vmem:[#allocation8 + $0x238] sm:$0xf]
    %v3098 = vld [vmem:[#allocation8 + $0x23c] sm:$0xf]
    %v3099 = vxor.u32 %v2950, 2147483648
    %v3100 = vmul.f32 %v3099, 1.442695
    %v3101 = vpow.pop %v3100
    %v3102 = vadd.f32 %v3101, 1.0
    %v3103 = vrcp.pop %v3102
    %v3104 = vmul.f32 1.0, %v3103
    %v3105 = vmul.f32 %v2950, %v3104
    %v3106 = vsub.f32 %v2950, -2.2
    %v3107 = vsub.f32 %v2950, -1.8
    %v3108 = vsub.f32 %v2950, -1.4
    %v3109 = vsub.f32 %v2950, -1.0
    %v3110 = vsub.f32 %v2950, -0.6
    %v3111 = vsub.f32 %v2950, -0.2
    %v3112 = vsub.f32 %v2950, 0.2
    %v3113 = vsub.f32 %v2950, 0.6
    %v3114 = vsub.f32 %v2950, 1.0
    %v3115 = vsub.f32 %v2950, 1.4
    %v3116 = vsub.f32 %v2950, 1.8
    %v3117 = vsub.f32 %v2950, 2.2
    %vm3118 = vcmp.ge.f32.partialorder %v2950, -2.2
    %v3119 = vsel %vm3118, 1, 0
    %v3120 = vcvt.s32.f32 %v3119
    %vm3121 = vcmp.ge.f32.partialorder %v2950, -1.8
    %v3122 = vsel %vm3121, 1, 0
    %v3123 = vcvt.s32.f32 %v3122
    %vm3124 = vcmp.ge.f32.partialorder %v2950, -1.4
    %v3125 = vsel %vm3124, 1, 0
    %v3126 = vcvt.s32.f32 %v3125
    %vm3127 = vcmp.ge.f32.partialorder %v2950, -1.0
    %v3128 = vsel %vm3127, 1, 0
    %v3129 = vcvt.s32.f32 %v3128
    %vm3130 = vcmp.ge.f32.partialorder %v2950, -0.6
    %v3131 = vsel %vm3130, 1, 0
    %v3132 = vcvt.s32.f32 %v3131
    %vm3133 = vcmp.ge.f32.partialorder %v2950, -0.2
    %v3134 = vsel %vm3133, 1, 0
    %v3135 = vcvt.s32.f32 %v3134
    %vm3136 = vcmp.ge.f32.partialorder %v2950, 0.2
    %v3137 = vsel %vm3136, 1, 0
    %v3138 = vcvt.s32.f32 %v3137
    %vm3139 = vcmp.ge.f32.partialorder %v2950, 0.6
    %v3140 = vsel %vm3139, 1, 0
    %v3141 = vcvt.s32.f32 %v3140
    %vm3142 = vcmp.ge.f32.partialorder %v2950, 1.0
    %v3143 = vsel %vm3142, 1, 0
    %v3144 = vcvt.s32.f32 %v3143
    %vm3145 = vcmp.ge.f32.partialorder %v2950, 1.4
    %v3146 = vsel %vm3145, 1, 0
    %v3147 = vcvt.s32.f32 %v3146
    %vm3148 = vcmp.ge.f32.partialorder %v2950, 1.8
    %v3149 = vsel %vm3148, 1, 0
    %v3150 = vcvt.s32.f32 %v3149
    %vm3151 = vcmp.ge.f32.partialorder %v2950, 2.2
    %v3152 = vsel %vm3151, 1, 0
    %v3153 = vcvt.s32.f32 %v3152
    %v3154 = vsub.f32 %v3120, %v3123
    %v3155 = vsub.f32 %v3123, %v3126
    %v3156 = vsub.f32 %v3126, %v3129
    %v3157 = vsub.f32 %v3129, %v3132
    %v3158 = vsub.f32 %v3132, %v3135
    %v3159 = vsub.f32 %v3135, %v3138
    %v3160 = vsub.f32 %v3138, %v3141
    %v3161 = vsub.f32 %v3141, %v3144
    %v3162 = vsub.f32 %v3144, %v3147
    %v3163 = vsub.f32 %v3147, %v3150
    %v3164 = vsub.f32 %v3150, %v3153
    %v3165 = vmul.f32 %v3106, %v3154
    %v3166 = vmul.f32 %v3108, %v3155
    %v3167 = vsub.f32 %v3165, %v3166
    %v3168 = vmul.f32 %v3167, 2.5
    %v3169 = vmul.f32 %v3107, %v3155
    %v3170 = vmul.f32 %v3109, %v3156
    %v3171 = vsub.f32 %v3169, %v3170
    %v3172 = vmul.f32 %v3171, 2.5
    %v3173 = vmul.f32 %v3108, %v3156
    %v3174 = vmul.f32 %v3110, %v3157
    %v3175 = vsub.f32 %v3173, %v3174
    %v3176 = vmul.f32 %v3175, 2.5
    %v3177 = vmul.f32 %v3109, %v3157
    %v3178 = vmul.f32 %v3111, %v3158
    %v3179 = vsub.f32 %v3177, %v3178
    %v3180 = vmul.f32 %v3179, 2.5
    %v3181 = vmul.f32 %v3110, %v3158
    %v3182 = vmul.f32 %v3112, %v3159
    %v3183 = vsub.f32 %v3181, %v3182
    %v3184 = vmul.f32 %v3183, 2.5
    %v3185 = vmul.f32 %v3111, %v3159
    %v3186 = vmul.f32 %v3113, %v3160
    %v3187 = vsub.f32 %v3185, %v3186
    %v3188 = vmul.f32 %v3187, 2.5
    %v3189 = vmul.f32 %v3112, %v3160
    %v3190 = vmul.f32 %v3114, %v3161
    %v3191 = vsub.f32 %v3189, %v3190
    %v3192 = vmul.f32 %v3191, 2.5
    %v3193 = vmul.f32 %v3113, %v3161
    %v3194 = vmul.f32 %v3115, %v3162
    %v3195 = vsub.f32 %v3193, %v3194
    %v3196 = vmul.f32 %v3195, 2.5
    %v3197 = vmul.f32 %v3114, %v3162
    %v3198 = vmul.f32 %v3116, %v3163
    %v3199 = vsub.f32 %v3197, %v3198
    %v3200 = vmul.f32 %v3199, 2.5
    %v3201 = vmul.f32 %v3115, %v3163
    %v3202 = vmul.f32 %v3117, %v3164
    %v3203 = vsub.f32 %v3201, %v3202
    %v3204 = vmul.f32 %v3203, 2.5
    %v3205 = vmul.f32 %v3106, %v3168
    %v3206 = vmul.f32 %v3109, %v3172
    %v3207 = vsub.f32 %v3205, %v3206
    %v3208 = vmul.f32 %v3207, 1.25
    %v3209 = vmul.f32 %v3107, %v3172
    %v3210 = vmul.f32 %v3110, %v3176
    %v3211 = vsub.f32 %v3209, %v3210
    %v3212 = vmul.f32 %v3211, 1.25
    %v3213 = vmul.f32 %v3108, %v3176
    %v3214 = vmul.f32 %v3111, %v3180
    %v3215 = vsub.f32 %v3213, %v3214
    %v3216 = vmul.f32 %v3215, 1.25
    %v3217 = vmul.f32 %v3109, %v3180
    %v3218 = vmul.f32 %v3112, %v3184
    %v3219 = vsub.f32 %v3217, %v3218
    %v3220 = vmul.f32 %v3219, 1.25
    %v3221 = vmul.f32 %v3110, %v3184
    %v3222 = vmul.f32 %v3113, %v3188
    %v3223 = vsub.f32 %v3221, %v3222
    %v3224 = vmul.f32 %v3223, 1.25
    %v3225 = vmul.f32 %v3111, %v3188
    %v3226 = vmul.f32 %v3114, %v3192
    %v3227 = vsub.f32 %v3225, %v3226
    %v3228 = vmul.f32 %v3227, 1.25
    %v3229 = vmul.f32 %v3112, %v3192
    %v3230 = vmul.f32 %v3115, %v3196
    %v3231 = vsub.f32 %v3229, %v3230
    %v3232 = vmul.f32 %v3231, 1.25
    %v3233 = vmul.f32 %v3113, %v3196
    %v3234 = vmul.f32 %v3116, %v3200
    %v3235 = vsub.f32 %v3233, %v3234
    %v3236 = vmul.f32 %v3235, 1.25
    %v3237 = vmul.f32 %v3114, %v3200
    %v3238 = vmul.f32 %v3117, %v3204
    %v3239 = vsub.f32 %v3237, %v3238
    %v3240 = vmul.f32 %v3239, 1.25
    %v3241 = vmul.f32 %v3106, %v3208
    %v3242 = vmul.f32 %v3110, %v3212
    %v3243 = vsub.f32 %v3241, %v3242
    %v3244 = vmul.f32 %v3243, 0.8333333
    %v3245 = vmul.f32 %v3107, %v3212
    %v3246 = vmul.f32 %v3111, %v3216
    %v3247 = vsub.f32 %v3245, %v3246
    %v3248 = vmul.f32 %v3247, 0.8333333
    %v3249 = vmul.f32 %v3108, %v3216
    %v3250 = vmul.f32 %v3112, %v3220
    %v3251 = vsub.f32 %v3249, %v3250
    %v3252 = vmul.f32 %v3251, 0.8333333
    %v3253 = vmul.f32 %v3109, %v3220
    %v3254 = vmul.f32 %v3113, %v3224
    %v3255 = vsub.f32 %v3253, %v3254
    %v3256 = vmul.f32 %v3255, 0.8333333
    %v3257 = vmul.f32 %v3110, %v3224
    %v3258 = vmul.f32 %v3114, %v3228
    %v3259 = vsub.f32 %v3257, %v3258
    %v3260 = vmul.f32 %v3259, 0.8333333
    %v3261 = vmul.f32 %v3111, %v3228
    %v3262 = vmul.f32 %v3115, %v3232
    %v3263 = vsub.f32 %v3261, %v3262
    %v3264 = vmul.f32 %v3263, 0.8333333
    %v3265 = vmul.f32 %v3112, %v3232
    %v3266 = vmul.f32 %v3116, %v3236
    %v3267 = vsub.f32 %v3265, %v3266
    %v3268 = vmul.f32 %v3267, 0.8333333
    %v3269 = vmul.f32 %v3113, %v3236
    %v3270 = vmul.f32 %v3117, %v3240
    %v3271 = vsub.f32 %v3269, %v3270
    %v3272 = vmul.f32 %v3271, 0.8333333
    %v3273 = vpack.c.bf16 %v3105, %v3105
    %v3274 = vpack.c.bf16 %v3244, %v3244
    %v3275 = vpack.c.bf16 %v3248, %v3248
    %v3276 = vpack.c.bf16 %v3252, %v3252
    %v3277 = vpack.c.bf16 %v3256, %v3256
    %v3278 = vpack.c.bf16 %v3260, %v3260
    %v3279 = vpack.c.bf16 %v3264, %v3264
    %v3280 = vpack.c.bf16 %v3268, %v3268
    %v3281 = vpack.c.bf16 %v3272, %v3272
    %v3426 = vunpack.c.l.b16 %v2955
    %v3427 = vunpack.c.l.b16 %v2956
    %v3428 = vunpack.c.l.b16 %v2957
    %v3429 = vunpack.c.l.b16 %v2958
    %v3430 = vunpack.c.l.b16 %v2959
    %v3431 = vunpack.c.l.b16 %v2960
    %v3432 = vunpack.c.l.b16 %v2961
    %v3433 = vunpack.c.l.b16 %v2962
    %v3434 = vunpack.c.l.b16 %v2963
    %v3435 = vunpack.c.l.b16 %v2964
    %v3436 = vunpack.c.l.b16 %v2965
    %v3437 = vunpack.c.l.b16 %v2966
    %v3438 = vunpack.c.l.b16 %v2967
    %v3439 = vunpack.c.l.b16 %v2968
    %v3440 = vunpack.c.l.b16 %v2969
    %v3441 = vunpack.c.l.b16 %v2970
    %v3442 = vunpack.c.l.b16 %v2971
    %v3443 = vunpack.c.l.b16 %v2972
    %v3444 = vunpack.c.l.b16 %v2973
    %v3445 = vunpack.c.l.b16 %v2974
    %v3446 = vunpack.c.l.b16 %v2975
    %v3447 = vunpack.c.l.b16 %v2976
    %v3448 = vunpack.c.l.b16 %v2977
    %v3449 = vunpack.c.l.b16 %v2978
    %v3450 = vunpack.c.l.b16 %v2979
    %v3451 = vunpack.c.l.b16 %v2980
    %v3452 = vunpack.c.l.b16 %v2981
    %v3453 = vunpack.c.l.b16 %v2982
    %v3454 = vunpack.c.l.b16 %v2983
    %v3455 = vunpack.c.l.b16 %v2984
    %v3456 = vunpack.c.l.b16 %v2985
    %v3457 = vunpack.c.l.b16 %v2986
    %v3458 = vunpack.c.l.b16 %v2987
    %v3459 = vunpack.c.l.b16 %v2988
    %v3460 = vunpack.c.l.b16 %v2989
    %v3461 = vunpack.c.l.b16 %v2990
    %v3462 = vunpack.c.l.b16 %v2991
    %v3463 = vunpack.c.l.b16 %v2992
    %v3464 = vunpack.c.l.b16 %v2993
    %v3465 = vunpack.c.l.b16 %v2994
    %v3466 = vunpack.c.l.b16 %v2995
    %v3467 = vunpack.c.l.b16 %v2996
    %v3468 = vunpack.c.l.b16 %v2997
    %v3469 = vunpack.c.l.b16 %v2998
    %v3470 = vunpack.c.l.b16 %v2999
    %v3471 = vunpack.c.l.b16 %v3000
    %v3472 = vunpack.c.l.b16 %v3001
    %v3473 = vunpack.c.l.b16 %v3002
    %v3474 = vunpack.c.l.b16 %v3003
    %v3475 = vunpack.c.l.b16 %v3004
    %v3476 = vunpack.c.l.b16 %v3005
    %v3477 = vunpack.c.l.b16 %v3006
    %v3478 = vunpack.c.l.b16 %v3007
    %v3479 = vunpack.c.l.b16 %v3008
    %v3480 = vunpack.c.l.b16 %v3009
    %v3481 = vunpack.c.l.b16 %v3010
    %v3482 = vunpack.c.l.b16 %v3011
    %v3483 = vunpack.c.l.b16 %v3012
    %v3484 = vunpack.c.l.b16 %v3013
    %v3485 = vunpack.c.l.b16 %v3014
    %v3486 = vunpack.c.l.b16 %v3015
    %v3487 = vunpack.c.l.b16 %v3016
    %v3488 = vunpack.c.l.b16 %v3017
    %v3489 = vunpack.c.l.b16 %v3018
    %v3490 = vunpack.c.l.b16 %v3019
    %v3491 = vunpack.c.l.b16 %v3020
    %v3492 = vunpack.c.l.b16 %v3021
    %v3493 = vunpack.c.l.b16 %v3022
    %v3494 = vunpack.c.l.b16 %v3023
    %v3495 = vunpack.c.l.b16 %v3024
    %v3496 = vunpack.c.l.b16 %v3025
    %v3497 = vunpack.c.l.b16 %v3026
    %v3498 = vunpack.c.l.b16 %v3027
    %v3499 = vunpack.c.l.b16 %v3028
    %v3500 = vunpack.c.l.b16 %v3029
    %v3501 = vunpack.c.l.b16 %v3030
    %v3502 = vunpack.c.l.b16 %v3031
    %v3503 = vunpack.c.l.b16 %v3032
    %v3504 = vunpack.c.l.b16 %v3033
    %v3505 = vunpack.c.l.b16 %v3034
    %v3506 = vunpack.c.l.b16 %v3035
    %v3507 = vunpack.c.l.b16 %v3036
    %v3508 = vunpack.c.l.b16 %v3037
    %v3509 = vunpack.c.l.b16 %v3038
    %v3510 = vunpack.c.l.b16 %v3039
    %v3511 = vunpack.c.l.b16 %v3040
    %v3512 = vunpack.c.l.b16 %v3041
    %v3513 = vunpack.c.l.b16 %v3042
    %v3514 = vunpack.c.l.b16 %v3043
    %v3515 = vunpack.c.l.b16 %v3044
    %v3516 = vunpack.c.l.b16 %v3045
    %v3517 = vunpack.c.l.b16 %v3046
    %v3518 = vunpack.c.l.b16 %v3047
    %v3519 = vunpack.c.l.b16 %v3048
    %v3520 = vunpack.c.l.b16 %v3049
    %v3521 = vunpack.c.l.b16 %v3050
    %v3522 = vunpack.c.l.b16 %v3051
    %v3523 = vunpack.c.l.b16 %v3052
    %v3524 = vunpack.c.l.b16 %v3053
    %v3525 = vunpack.c.l.b16 %v3054
    %v3526 = vunpack.c.l.b16 %v3055
    %v3527 = vunpack.c.l.b16 %v3056
    %v3528 = vunpack.c.l.b16 %v3057
    %v3529 = vunpack.c.l.b16 %v3058
    %v3530 = vunpack.c.l.b16 %v3059
    %v3531 = vunpack.c.l.b16 %v3060
    %v3532 = vunpack.c.l.b16 %v3061
    %v3533 = vunpack.c.l.b16 %v3062
    %v3534 = vunpack.c.l.b16 %v3063
    %v3535 = vunpack.c.l.b16 %v3064
    %v3536 = vunpack.c.l.b16 %v3065
    %v3537 = vunpack.c.l.b16 %v3066
    %v3538 = vunpack.c.l.b16 %v3067
    %v3539 = vunpack.c.l.b16 %v3068
    %v3540 = vunpack.c.l.b16 %v3069
    %v3541 = vunpack.c.l.b16 %v3070
    %v3542 = vunpack.c.l.b16 %v3071
    %v3543 = vunpack.c.l.b16 %v3072
    %v3544 = vunpack.c.l.b16 %v3073
    %v3545 = vunpack.c.l.b16 %v3074
    %v3546 = vunpack.c.l.b16 %v3075
    %v3547 = vunpack.c.l.b16 %v3076
    %v3548 = vunpack.c.l.b16 %v3077
    %v3549 = vunpack.c.l.b16 %v3078
    %v3550 = vunpack.c.l.b16 %v3079
    %v3551 = vunpack.c.l.b16 %v3080
    %v3552 = vunpack.c.l.b16 %v3081
    %v3553 = vunpack.c.l.b16 %v3082
    %v3554 = vunpack.c.l.b16 %v3083
    %v3555 = vunpack.c.l.b16 %v3084
    %v3556 = vunpack.c.l.b16 %v3085
    %v3557 = vunpack.c.l.b16 %v3086
    %v3558 = vunpack.c.l.b16 %v3087
    %v3559 = vunpack.c.l.b16 %v3088
    %v3560 = vunpack.c.l.b16 %v3089
    %v3561 = vunpack.c.l.b16 %v3090
    %v3562 = vunpack.c.l.b16 %v3091
    %v3563 = vunpack.c.l.b16 %v3092
    %v3564 = vunpack.c.l.b16 %v3093
    %v3565 = vunpack.c.l.b16 %v3094
    %v3566 = vunpack.c.l.b16 %v3095
    %v3567 = vunpack.c.l.b16 %v3096
    %v3568 = vunpack.c.l.b16 %v3097
    %v3569 = vunpack.c.l.b16 %v3098
    %v3570 = vpack.c.b16 %v3427, %v3426
    %v3571 = vpack.c.b16 %v3429, %v3428
    %v3572 = vpack.c.b16 %v3431, %v3430
    %v3573 = vpack.c.b16 %v3433, %v3432
    %v3574 = vpack.c.b16 %v3435, %v3434
    %v3575 = vpack.c.b16 %v3437, %v3436
    %v3576 = vpack.c.b16 %v3439, %v3438
    %v3577 = vpack.c.b16 %v3441, %v3440
    %v3578 = vpack.c.b16 %v3443, %v3442
    %v3579 = vpack.c.b16 %v3445, %v3444
    %v3580 = vpack.c.b16 %v3447, %v3446
    %v3581 = vpack.c.b16 %v3449, %v3448
    %v3582 = vpack.c.b16 %v3451, %v3450
    %v3583 = vpack.c.b16 %v3453, %v3452
    %v3584 = vpack.c.b16 %v3455, %v3454
    %v3585 = vpack.c.b16 %v3457, %v3456
    %v3586 = vpack.c.b16 %v3459, %v3458
    %v3587 = vpack.c.b16 %v3461, %v3460
    %v3588 = vpack.c.b16 %v3463, %v3462
    %v3589 = vpack.c.b16 %v3465, %v3464
    %v3590 = vpack.c.b16 %v3467, %v3466
    %v3591 = vpack.c.b16 %v3469, %v3468
    %v3592 = vpack.c.b16 %v3471, %v3470
    %v3593 = vpack.c.b16 %v3473, %v3472
    %v3594 = vpack.c.b16 %v3475, %v3474
    %v3595 = vpack.c.b16 %v3477, %v3476
    %v3596 = vpack.c.b16 %v3479, %v3478
    %v3597 = vpack.c.b16 %v3481, %v3480
    %v3598 = vpack.c.b16 %v3483, %v3482
    %v3599 = vpack.c.b16 %v3485, %v3484
    %v3600 = vpack.c.b16 %v3487, %v3486
    %v3601 = vpack.c.b16 %v3489, %v3488
    %v3602 = vpack.c.b16 %v3491, %v3490
    %v3603 = vpack.c.b16 %v3493, %v3492
    %v3604 = vpack.c.b16 %v3495, %v3494
    %v3605 = vpack.c.b16 %v3497, %v3496
    %v3606 = vpack.c.b16 %v3499, %v3498
    %v3607 = vpack.c.b16 %v3501, %v3500
    %v3608 = vpack.c.b16 %v3503, %v3502
    %v3609 = vpack.c.b16 %v3505, %v3504
    %v3610 = vpack.c.b16 %v3507, %v3506
    %v3611 = vpack.c.b16 %v3509, %v3508
    %v3612 = vpack.c.b16 %v3511, %v3510
    %v3613 = vpack.c.b16 %v3513, %v3512
    %v3614 = vpack.c.b16 %v3515, %v3514
    %v3615 = vpack.c.b16 %v3517, %v3516
    %v3616 = vpack.c.b16 %v3519, %v3518
    %v3617 = vpack.c.b16 %v3521, %v3520
    %v3618 = vpack.c.b16 %v3523, %v3522
    %v3619 = vpack.c.b16 %v3525, %v3524
    %v3620 = vpack.c.b16 %v3527, %v3526
    %v3621 = vpack.c.b16 %v3529, %v3528
    %v3622 = vpack.c.b16 %v3531, %v3530
    %v3623 = vpack.c.b16 %v3533, %v3532
    %v3624 = vpack.c.b16 %v3535, %v3534
    %v3625 = vpack.c.b16 %v3537, %v3536
    %v3626 = vpack.c.b16 %v3539, %v3538
    %v3627 = vpack.c.b16 %v3541, %v3540
    %v3628 = vpack.c.b16 %v3543, %v3542
    %v3629 = vpack.c.b16 %v3545, %v3544
    %v3630 = vpack.c.b16 %v3547, %v3546
    %v3631 = vpack.c.b16 %v3549, %v3548
    %v3632 = vpack.c.b16 %v3551, %v3550
    %v3633 = vpack.c.b16 %v3553, %v3552
    %v3634 = vpack.c.b16 %v3555, %v3554
    %v3635 = vpack.c.b16 %v3557, %v3556
    %v3636 = vpack.c.b16 %v3559, %v3558
    %v3637 = vpack.c.b16 %v3561, %v3560
    %v3638 = vpack.c.b16 %v3563, %v3562
    %v3639 = vpack.c.b16 %v3565, %v3564
    %v3640 = vpack.c.b16 %v3567, %v3566
    %v3641 = vpack.c.b16 %v3569, %v3568
    %3714 = vmatprep.subr.bf16.mxu0 0
    %3715 = vmatpush1.bf16.msra.mxu0 %v3570
    %3716 = vmatprep.subr.bf16.mxu0 0
    %3717 = vmatpush1.bf16.msra.mxu0 %v3571
    %3718 = vmatprep.subr.bf16.mxu0 0
    %3719 = vmatpush1.bf16.msra.mxu0 %v3572
    %3720 = vmatprep.subr.bf16.mxu0 0
    %3721 = vmatpush1.bf16.msra.mxu0 %v3573
    %3722 = vmatprep.subr.bf16.mxu0 0
    %3723 = vmatpush1.bf16.msra.mxu0 %v3574
    %3724 = vmatprep.subr.bf16.mxu0 0
    %3725 = vmatpush1.bf16.msra.mxu0 %v3575
    %3726 = vmatprep.subr.bf16.mxu0 0
    %3727 = vmatpush1.bf16.msra.mxu0 %v3576
    %3728 = vmatprep.subr.bf16.mxu0 0
    %3729 = vmatpush1.bf16.msra.mxu0 %v3577
    %3730 = vmatprep.subr.bf16.mxu0 0
    %3731 = vmatpush1.bf16.msra.mxu0 %v3578
    %3732 = vmatprep.subr.bf16.mxu0 0
    %3733 = vmatpush1.bf16.msra.mxu0 %v3579
    %3734 = vmatprep.subr.bf16.mxu0 0
    %3735 = vmatpush1.bf16.msra.mxu0 %v3580
    %3736 = vmatprep.subr.bf16.mxu0 0
    %3737 = vmatpush1.bf16.msra.mxu0 %v3581
    %3738 = vmatprep.subr.bf16.mxu0 0
    %3739 = vmatpush1.bf16.msra.mxu0 %v3582
    %3740 = vmatprep.subr.bf16.mxu0 0
    %3741 = vmatpush1.bf16.msra.mxu0 %v3583
    %3742 = vmatprep.subr.bf16.mxu0 0
    %3743 = vmatpush1.bf16.msra.mxu0 %v3584
    %3744 = vmatprep.subr.bf16.mxu0 0
    %3745 = vmatpush1.bf16.msra.mxu0 %v3585
    %3746 = vmatprep.mubr.bf16.mxu0 %v3274
    %3747 = vmatmul.mubr.bf16.gmra.mrb[0].mxu0 %v3273
    %v3748 = vpop.f32.mrb[0].mxu0
    %v3749 = vadd.f32 0.0, %v3748
    %v3750 = vpop.f32.mrb[0].mxu0
    %v3751 = vpop.f32.mrb[0].mxu0
    %v3752 = vpop.f32.mrb[0].mxu0
    %3753 = vdwg.mxu0
    %3754 = vmatprep.subr.bf16.mxu0 0
    %3755 = vmatpush1.bf16.msra.mxu0 %v3586
    %3756 = vmatprep.subr.bf16.mxu0 0
    %3757 = vmatpush1.bf16.msra.mxu0 %v3587
    %3758 = vmatprep.subr.bf16.mxu0 0
    %3759 = vmatpush1.bf16.msra.mxu0 %v3588
    %3760 = vmatprep.subr.bf16.mxu0 0
    %3761 = vmatpush1.bf16.msra.mxu0 %v3589
    %3762 = vmatprep.subr.bf16.mxu0 0
    %3763 = vmatpush1.bf16.msra.mxu0 %v3590
    %3764 = vmatprep.subr.bf16.mxu0 0
    %3765 = vmatpush1.bf16.msra.mxu0 %v3591
    %3766 = vmatprep.subr.bf16.mxu0 0
    %3767 = vmatpush1.bf16.msra.mxu0 %v3592
    %3768 = vmatprep.subr.bf16.mxu0 0
    %3769 = vmatpush1.bf16.msra.mxu0 %v3593
    %3770 = vmatprep.subr.bf16.mxu0 0
    %3771 = vmatpush1.bf16.msra.mxu0 %v3594
    %3772 = vmatprep.subr.bf16.mxu0 0
    %3773 = vmatpush1.bf16.msra.mxu0 %v3595
    %3774 = vmatprep.subr.bf16.mxu0 0
    %3775 = vmatpush1.bf16.msra.mxu0 %v3596
    %3776 = vmatprep.subr.bf16.mxu0 0
    %3777 = vmatpush1.bf16.msra.mxu0 %v3597
    %3778 = vmatprep.subr.bf16.mxu0 0
    %3779 = vmatpush1.bf16.msra.mxu0 %v3598
    %3780 = vmatprep.subr.bf16.mxu0 0
    %3781 = vmatpush1.bf16.msra.mxu0 %v3599
    %3782 = vmatprep.subr.bf16.mxu0 0
    %3783 = vmatpush1.bf16.msra.mxu0 %v3600
    %3784 = vmatprep.subr.bf16.mxu0 0
    %3785 = vmatpush1.bf16.msra.mxu0 %v3601
    %3786 = vmatprep.mubr.bf16.mxu0 %v3276
    %3787 = vmatmul.mubr.bf16.gmra.mrb[0].mxu0 %v3275
    %v3788 = vpop.f32.mrb[0].mxu0
    %v3789 = vadd.f32 %v3749, %v3788
    %v3790 = vpop.f32.mrb[0].mxu0
    %v3791 = vpop.f32.mrb[0].mxu0
    %v3792 = vpop.f32.mrb[0].mxu0
    %3793 = vdwg.mxu0
    %3794 = vmatprep.subr.bf16.mxu0 0
    %3795 = vmatpush1.bf16.msra.mxu0 %v3602
    %3796 = vmatprep.subr.bf16.mxu0 0
    %3797 = vmatpush1.bf16.msra.mxu0 %v3603
    %3798 = vmatprep.subr.bf16.mxu0 0
    %3799 = vmatpush1.bf16.msra.mxu0 %v3604
    %3800 = vmatprep.subr.bf16.mxu0 0
    %3801 = vmatpush1.bf16.msra.mxu0 %v3605
    %3802 = vmatprep.subr.bf16.mxu0 0
    %3803 = vmatpush1.bf16.msra.mxu0 %v3606
    %3804 = vmatprep.subr.bf16.mxu0 0
    %3805 = vmatpush1.bf16.msra.mxu0 %v3607
    %3806 = vmatprep.subr.bf16.mxu0 0
    %3807 = vmatpush1.bf16.msra.mxu0 %v3608
    %3808 = vmatprep.subr.bf16.mxu0 0
    %3809 = vmatpush1.bf16.msra.mxu0 %v3609
    %3810 = vmatprep.subr.bf16.mxu0 0
    %3811 = vmatpush1.bf16.msra.mxu0 %v3610
    %3812 = vmatprep.subr.bf16.mxu0 0
    %3813 = vmatpush1.bf16.msra.mxu0 %v3611
    %3814 = vmatprep.subr.bf16.mxu0 0
    %3815 = vmatpush1.bf16.msra.mxu0 %v3612
    %3816 = vmatprep.subr.bf16.mxu0 0
    %3817 = vmatpush1.bf16.msra.mxu0 %v3613
    %3818 = vmatprep.subr.bf16.mxu0 0
    %3819 = vmatpush1.bf16.msra.mxu0 %v3614
    %3820 = vmatprep.subr.bf16.mxu0 0
    %3821 = vmatpush1.bf16.msra.mxu0 %v3615
    %3822 = vmatprep.subr.bf16.mxu0 0
    %3823 = vmatpush1.bf16.msra.mxu0 %v3616
    %3824 = vmatprep.subr.bf16.mxu0 0
    %3825 = vmatpush1.bf16.msra.mxu0 %v3617
    %3826 = vmatprep.mubr.bf16.mxu0 %v3278
    %3827 = vmatmul.mubr.bf16.gmra.mrb[0].mxu0 %v3277
    %v3828 = vpop.f32.mrb[0].mxu0
    %v3829 = vadd.f32 %v3789, %v3828
    %v3830 = vpop.f32.mrb[0].mxu0
    %v3831 = vpop.f32.mrb[0].mxu0
    %v3832 = vpop.f32.mrb[0].mxu0
    %3833 = vdwg.mxu0
    %3834 = vmatprep.subr.bf16.mxu0 0
    %3835 = vmatpush1.bf16.msra.mxu0 %v3618
    %3836 = vmatprep.subr.bf16.mxu0 0
    %3837 = vmatpush1.bf16.msra.mxu0 %v3619
    %3838 = vmatprep.subr.bf16.mxu0 0
    %3839 = vmatpush1.bf16.msra.mxu0 %v3620
    %3840 = vmatprep.subr.bf16.mxu0 0
    %3841 = vmatpush1.bf16.msra.mxu0 %v3621
    %3842 = vmatprep.subr.bf16.mxu0 0
    %3843 = vmatpush1.bf16.msra.mxu0 %v3622
    %3844 = vmatprep.subr.bf16.mxu0 0
    %3845 = vmatpush1.bf16.msra.mxu0 %v3623
    %3846 = vmatprep.subr.bf16.mxu0 0
    %3847 = vmatpush1.bf16.msra.mxu0 %v3624
    %3848 = vmatprep.subr.bf16.mxu0 0
    %3849 = vmatpush1.bf16.msra.mxu0 %v3625
    %3850 = vmatprep.subr.bf16.mxu0 0
    %3851 = vmatpush1.bf16.msra.mxu0 %v3626
    %3852 = vmatprep.subr.bf16.mxu0 0
    %3853 = vmatpush1.bf16.msra.mxu0 %v3627
    %3854 = vmatprep.subr.bf16.mxu0 0
    %3855 = vmatpush1.bf16.msra.mxu0 %v3628
    %3856 = vmatprep.subr.bf16.mxu0 0
    %3857 = vmatpush1.bf16.msra.mxu0 %v3629
    %3858 = vmatprep.subr.bf16.mxu0 0
    %3859 = vmatpush1.bf16.msra.mxu0 %v3630
    %3860 = vmatprep.subr.bf16.mxu0 0
    %3861 = vmatpush1.bf16.msra.mxu0 %v3631
    %3862 = vmatprep.subr.bf16.mxu0 0
    %3863 = vmatpush1.bf16.msra.mxu0 %v3632
    %3864 = vmatprep.subr.bf16.mxu0 0
    %3865 = vmatpush1.bf16.msra.mxu0 %v3633
    %3866 = vmatprep.mubr.bf16.mxu0 %v3280
    %3867 = vmatmul.mubr.bf16.gmra.mrb[0].mxu0 %v3279
    %v3868 = vpop.f32.mrb[0].mxu0
    %v3869 = vadd.f32 %v3829, %v3868
    %v3870 = vpop.f32.mrb[0].mxu0
    %v3871 = vpop.f32.mrb[0].mxu0
    %v3872 = vpop.f32.mrb[0].mxu0
    %3873 = vdwg.mxu0
    %3874 = vmatprep.subr.bf16.mxu0 0
    %3875 = vmatpush1.bf16.msra.mxu0 %v3634
    %3876 = vmatprep.subr.bf16.mxu0 0
    %3877 = vmatpush1.bf16.msra.mxu0 %v3635
    %3878 = vmatprep.subr.bf16.mxu0 0
    %3879 = vmatpush1.bf16.msra.mxu0 %v3636
    %3880 = vmatprep.subr.bf16.mxu0 0
    %3881 = vmatpush1.bf16.msra.mxu0 %v3637
    %3882 = vmatprep.subr.bf16.mxu0 0
    %3883 = vmatpush1.bf16.msra.mxu0 %v3638
    %3884 = vmatprep.subr.bf16.mxu0 0
    %3885 = vmatpush1.bf16.msra.mxu0 %v3639
    %3886 = vmatprep.subr.bf16.mxu0 0
    %3887 = vmatpush1.bf16.msra.mxu0 %v3640
    %3888 = vmatprep.subr.bf16.mxu0 0
    %3889 = vmatpush1.bf16.msra.mxu0 %v3641
    %3890 = vmatprep.subr.bf16.mxu0 0
    %3891 = vmatpush1.bf16.msra.mxu0 0
    %3892 = vmatprep.subr.bf16.mxu0 0
    %3893 = vmatpush1.bf16.msra.mxu0 0
    %3894 = vmatprep.subr.bf16.mxu0 0
    %3895 = vmatpush1.bf16.msra.mxu0 0
    %3896 = vmatprep.subr.bf16.mxu0 0
    %3897 = vmatpush1.bf16.msra.mxu0 0
    %3898 = vmatprep.subr.bf16.mxu0 0
    %3899 = vmatpush1.bf16.msra.mxu0 0
    %3900 = vmatprep.subr.bf16.mxu0 0
    %3901 = vmatpush1.bf16.msra.mxu0 0
    %3902 = vmatprep.subr.bf16.mxu0 0
    %3903 = vmatpush1.bf16.msra.mxu0 0
    %3904 = vmatprep.subr.bf16.mxu0 0
    %3905 = vmatpush1.bf16.msra.mxu0 0
    %3906 = vmatprep.mubr.bf16.mxu0 0
    %3907 = vmatmul.mubr.bf16.gmra.mrb[0].mxu0 %v3281
    %v3908 = vpop.f32.mrb[0].mxu0
    %v3909 = vadd.f32 %v3869, %v3908
    %v3910 = vpop.f32.mrb[0].mxu0
    %v3911 = vpop.f32.mrb[0].mxu0
    %v3912 = vpop.f32.mrb[0].mxu0
    %3913 = vdwg.mxu0
    %3914 = vst [vmem:[#allocation10] sm:$0xff] %v3909
    // Predicated region
    $region38: #{kqnetwork_forward.1} parent=1 // pred_check
      _
    $region39: #{kqnetwork_forward.1} parent=1 // pred_check_branch
      %3916 = sbr.rel (0) target = $region41
    $region40: #{kqnetwork_forward.1} parent=1 // pred_region
      %s3918 = ssub.s32 128, 128
      %3919 = vsyncadd [#allocation4], %s3918
      %s3921 = sshll.u32 [#allocation10], 4
      %s3922 = int_to_ptr.vmem [resolvable:$true] %s3921
      %3924 = dma.vmem_to_hbm [thread:$0]  %s3922, 128, %s5, [#allocation4]
    $region41: #{kqnetwork_forward.1} parent=1 // pred_fallthru
      _
    // Predicated region
    $region42: #{kqnetwork_forward.1} parent=1 // pred_check
      _
    $region43: #{kqnetwork_forward.1} parent=1 // pred_check_branch
      %3926 = sbr.rel (0) target = $region45
    $region44: #{kqnetwork_forward.1} parent=1 // pred_region
      %3927 = dma.done [#allocation4], 128
    $region45: #{kqnetwork_forward.1} parent=1 // pred_fallthru
      _
    %3928 = vsyncpa [#allocation3], 1
    %3929 = vsyncpa [#allocation6], 1
    %3930 = vsyncpa [#allocation9], 1
    %3931 = vsyncpa [#allocation4], 1

</llo_original>
